<compile_context>
chip_gen: v7x
topology: tpu7x:2x2x1
jax: 0.10.0
libtpu: 0.0.40
codegen_flags: <defaults>
</compile_context>

<pallas_src>
import numpy as np
import jax
import jax.numpy as jnp
from jax.experimental import pallas as pl
from jax.experimental.pallas import tpu as pltpu

IN_CH = 3                      # module default in_channel=3
SIZE = 16                      # spatial size (module default 256; small demo size)
BATCH = 2
N_NODE = SIZE // 4
LINEAR_IN = 32 * N_NODE * N_NODE   # 512 for SIZE=16


# ---------------------------------------------------------------------------
# Pallas kernel (whole network, one sample per grid step)
# ---------------------------------------------------------------------------
def _make_kernel(size, in_ch):
    H1, H2, H3 = size, size // 2, size // 4

    def conv_relu_flat(src_ref, w_ref, b_ref, H, W):
        # src_ref: (H+2, W+2, cin) zero-padded input living in VMEM.
        # Single im2col matmul: 9 shifted windows concatenated along lanes.
        taps = []
        for ky in range(3):
            for kx in range(3):
                t = src_ref[pl.ds(ky, H), pl.ds(kx, W), :]          # (H, W, cin)
                taps.append(t.reshape(H * W, t.shape[-1]))          # tile-aligned reshape
        patches = jnp.concatenate(taps, axis=-1)                     # (H*W, 9*cin)
        y = jnp.dot(patches, w_ref[...], preferred_element_type=jnp.float32)
        return jnp.maximum(y + b_ref[...], 0.0)                      # (H*W, cout)

    def kernel(x_ref, w1, b1, w2, b2, w3, b3, w4, b4, wla, wlb, bl,
               o_ref, pad2, t2, u2, pad3, t3, u3, pad4, t4):
        # ---- conv1 + ReLU, re-pad for conv2 --------------------------------
        f1 = conv_relu_flat(x_ref, w1, b1, H1, H1)                   # (H1*H1, 3)
        pad2[...] = jnp.zeros_like(pad2)
        pad2[pl.ds(1, H1), pl.ds(1, H1), :] = f1.reshape(H1, H1, 3)

        # ---- conv2 + ReLU, AvgPool(2,2) via strided VMEM reads, re-pad -----
        f2 = conv_relu_flat(pad2, w2, b2, H1, H1)                    # (H1*H1, 8)
        t2[...] = f2.reshape(H1, H1, 8)
        u2[...] = (t2[pl.ds(0, H2, stride=2), :, :] +
                   t2[pl.ds(1, H2, stride=2), :, :])                 # pooled along H
        p2 = (u2[:, pl.ds(0, H2, stride=2), :] +
              u2[:, pl.ds(1, H2, stride=2), :]) * 0.25               # (H2, H2, 8)
        pad3[...] = jnp.zeros_like(pad3)
        pad3[pl.ds(1, H2), pl.ds(1, H2), :] = p2

        # ---- conv3 + ReLU, AvgPool(2,2), re-pad ----------------------------
        f3 = conv_relu_flat(pad3, w3, b3, H2, H2)                    # (H2*H2, 16)
        t3[...] = f3.reshape(H2, H2, 16)
        u3[...] = (t3[pl.ds(0, H3, stride=2), :, :] +
                   t3[pl.ds(1, H3, stride=2), :, :])
        p3 = (u3[:, pl.ds(0, H3, stride=2), :] +
              u3[:, pl.ds(1, H3, stride=2), :]) * 0.25               # (H3, H3, 16)
        pad4[...] = jnp.zeros_like(pad4)
        pad4[pl.ds(1, H3), pl.ds(1, H3), :] = p3

        # ---- conv4 + ReLU (H3 is tiny: build im2col row-by-row into t4) ----
        for h in range(H3):
            row_taps = [pad4[ky + h, pl.ds(kx, H3), :]
                        for ky in range(3) for kx in range(3)]       # 9 x (H3, 16)
            t4[pl.ds(h * H3, H3), :] = jnp.concatenate(row_taps, axis=-1)
        f4 = jnp.maximum(
            jnp.dot(t4[...], w4[...], preferred_element_type=jnp.float32) + b4[...],
            0.0)                                                     # (H3*H3, 32)

        # ---- fused Linear (weights pre-permuted to (h*W3+w, c) order) ------
        s0 = jnp.sum(f4 * wla[...], axis=0, keepdims=True)           # (1, 32)
        s1 = jnp.sum(f4 * wlb[...], axis=0, keepdims=True)
        o0 = jnp.sum(s0, axis=1, keepdims=True)                      # (1, 1)
        o1 = jnp.sum(s1, axis=1, keepdims=True)
        o_ref[...] = jnp.concatenate([o0, o1], axis=1) + bl[...]     # (1, 2)

    return kernel


# ---------------------------------------------------------------------------
# Wrapper
# ---------------------------------------------------------------------------
def simple_cnn_forward(x_nchw, params):
    w1, b1, w2, b2, w3, b3, w4, b4, wl, bl = params
    N = x_nchw.shape[0]

    # glue: NCHW -> NHWC, zero-pad spatial by 1 (padding of conv1)
    x = jnp.transpose(x_nchw, (0, 2, 3, 1))
    xp = jnp.pad(x, ((0, 0), (1, 1), (1, 1), (0, 0)))                # (N, S+2, S+2, C)

    # conv weights HWIO -> (9*cin, cout); Linear weight columns permuted so the
    # kernel's (h*W+w, c) feature order is consumed directly (NCHW flatten order
    # of the PyTorch module is honored on the host, not at runtime).
    wla = wl[0].reshape(32, N_NODE * N_NODE).T                        # (16, 32)
    wlb = wl[1].reshape(32, N_NODE * N_NODE).T
    args = (w1.reshape(9 * IN_CH, 3), b1.reshape(1, 3),
            w2.reshape(9 * 3, 8),     b2.reshape(1, 8),
            w3.reshape(9 * 8, 16),    b3.reshape(1, 16),
            w4.reshape(9 * 16, 32),   b4.reshape(1, 32),
            wla, wlb, bl.reshape(1, 2))

    in_specs = [pl.BlockSpec((None, SIZE + 2, SIZE + 2, IN_CH),
                             lambda n: (n, 0, 0, 0))]
    in_specs += [pl.BlockSpec(a.shape, lambda n: (0, 0)) for a in args]

    out = pl.pallas_call(
        _make_kernel(SIZE, IN_CH),
        out_shape=jax.ShapeDtypeStruct((N, 1, 2), jnp.float32),
        grid=(N,),
        in_specs=in_specs,
        out_specs=pl.BlockSpec((None, 1, 2), lambda n: (n, 0, 0)),
        scratch_shapes=[
            pltpu.VMEM((SIZE + 2, SIZE + 2, 3), jnp.float32),            # pad2
            pltpu.VMEM((SIZE, SIZE, 8), jnp.float32),                    # t2
            pltpu.VMEM((SIZE // 2, SIZE, 8), jnp.float32),               # u2
            pltpu.VMEM((SIZE // 2 + 2, SIZE // 2 + 2, 8), jnp.float32),  # pad3
            pltpu.VMEM((SIZE // 2, SIZE // 2, 16), jnp.float32),         # t3
            pltpu.VMEM((SIZE // 4, SIZE // 2, 16), jnp.float32),         # u3
            pltpu.VMEM((SIZE // 4 + 2, SIZE // 4 + 2, 16), jnp.float32), # pad4
            pltpu.VMEM((N_NODE * N_NODE, 9 * 16), jnp.float32),          # t4 (conv4 im2col)
        ],
        compiler_params=pltpu.CompilerParams(
            dimension_semantics=("parallel",)),   # one sample per TC on v7x megacore
    )(xp, *args)
    return out.reshape(N, 2)


# ---------------------------------------------------------------------------
# Deterministic parameter init (synthetic; conv weights stored HWIO)
# ---------------------------------------------------------------------------
def init_params(key):
    ks = jax.random.split(key, 10)
    def w(k, shape, s): return (s * jax.random.normal(k, shape)).astype(jnp.float32)
    w1 = w(ks[0], (3, 3, IN_CH, 3), 0.20); b1 = w(ks[1], (3,), 0.10)
    w2 = w(ks[2], (3, 3, 3, 8), 0.20);     b2 = w(ks[3], (8,), 0.10)
    w3 = w(ks[4], (3, 3, 8, 16), 0.15);    b3 = w(ks[5], (16,), 0.10)
    w4 = w(ks[6], (3, 3, 16, 32), 0.10);   b4 = w(ks[7], (32,), 0.10)
    wl = w(ks[8], (2, LINEAR_IN), 0.05);   bl = w(ks[9], (2,), 0.10)
    return (w1, b1, w2, b2, w3, b3, w4, b4, wl, bl)


# ---------------------------------------------------------------------------
# Pure NumPy reference (mirrors the PyTorch forward)
# ---------------------------------------------------------------------------
def _reference_forward(x_nchw, params):
    w1, b1, w2, b2, w3, b3, w4, b4, wl, bl = [np.asarray(p, np.float64) for p in params]
    x = np.transpose(np.asarray(x_nchw, np.float64), (0, 2, 3, 1))

    def conv(x, w, b):
        N, H, W, Cin = x.shape
        Cout = w.shape[-1]
        xp = np.pad(x, ((0, 0), (1, 1), (1, 1), (0, 0)))
        out = np.zeros((N, H, W, Cout))
        for ky in range(3):
            for kx in range(3):
                out += np.einsum('nhwc,co->nhwo',
                                 xp[:, ky:ky + H, kx:kx + W, :], w[ky, kx])
        return out + b

    def pool(x):
        N, H, W, C = x.shape
        return x.reshape(N, H // 2, 2, W // 2, 2, C).mean(axis=(2, 4))

    h = np.maximum(conv(x, w1, b1), 0.0)
    h = pool(np.maximum(conv(h, w2, b2), 0.0))
    h = pool(np.maximum(conv(h, w3, b3), 0.0))
    h = np.maximum(conv(h, w4, b4), 0.0)
    feat = np.transpose(h, (0, 3, 1, 2)).reshape(x.shape[0], -1)   # NCHW flatten
    return feat @ wl.T + bl


if __name__ == "__main__":
    key = jax.random.PRNGKey(0)
    kx, kp = jax.random.split(key)
    x = jax.random.normal(kx, (BATCH, IN_CH, SIZE, SIZE), dtype=jnp.float32)
    params = init_params(kp)

    out = jax.jit(lambda xx: simple_cnn_forward(xx, params))(x)
    out = jax.block_until_ready(out)

    assert out.shape == (BATCH, 2)
    ref = _reference_forward(np.asarray(x), params)
    np.testing.assert_allclose(np.asarray(out), ref, rtol=1e-2, atol=1e-3)
    print("KERNEL_OK")
</pallas_src>

<mosaic_0001>
module attributes {stable_mosaic.version = 11 : i64} {
  func.func @kernel(%arg0: i32, %arg1: memref<1x18x18x3xf32, #tpu.memory_space<vmem>>, %arg2: memref<27x3xf32, #tpu.memory_space<vmem>>, %arg3: memref<1x3xf32, #tpu.memory_space<vmem>>, %arg4: memref<27x8xf32, #tpu.memory_space<vmem>>, %arg5: memref<1x8xf32, #tpu.memory_space<vmem>>, %arg6: memref<72x16xf32, #tpu.memory_space<vmem>>, %arg7: memref<1x16xf32, #tpu.memory_space<vmem>>, %arg8: memref<144x32xf32, #tpu.memory_space<vmem>>, %arg9: memref<1x32xf32, #tpu.memory_space<vmem>>, %arg10: memref<16x32xf32, #tpu.memory_space<vmem>>, %arg11: memref<16x32xf32, #tpu.memory_space<vmem>>, %arg12: memref<1x2xf32, #tpu.memory_space<vmem>>, %arg13: memref<1x1x2xf32, #tpu.memory_space<vmem>>, %arg14: memref<18x18x3xf32, #tpu.memory_space<vmem>>, %arg15: memref<16x16x8xf32, #tpu.memory_space<vmem>>, %arg16: memref<8x16x8xf32, #tpu.memory_space<vmem>>, %arg17: memref<10x10x8xf32, #tpu.memory_space<vmem>>, %arg18: memref<8x8x16xf32, #tpu.memory_space<vmem>>, %arg19: memref<4x8x16xf32, #tpu.memory_space<vmem>>, %arg20: memref<6x6x16xf32, #tpu.memory_space<vmem>>, %arg21: memref<16x144xf32, #tpu.memory_space<vmem>>) attributes {dimension_semantics = [#tpu.dimension_semantics<parallel>], iteration_bounds = array<i64: 2>, scalar_prefetch = 0 : i64, scratch_operands = 8 : i64, tpu.core_type = #tpu.core_type<tc>, window_params = [{transform_indices = @transform_0, window_bounds = array<i64: 1, 18, 18, 3>}, {pipeline_mode = #tpu.pipeline_mode<synchronous>, transform_indices = @transform_1, window_bounds = array<i64: 27, 3>}, {pipeline_mode = #tpu.pipeline_mode<synchronous>, transform_indices = @transform_2, window_bounds = array<i64: 1, 3>}, {pipeline_mode = #tpu.pipeline_mode<synchronous>, transform_indices = @transform_3, window_bounds = array<i64: 27, 8>}, {pipeline_mode = #tpu.pipeline_mode<synchronous>, transform_indices = @transform_4, window_bounds = array<i64: 1, 8>}, {pipeline_mode = #tpu.pipeline_mode<synchronous>, transform_indices = @transform_5, window_bounds = array<i64: 72, 16>}, {pipeline_mode = #tpu.pipeline_mode<synchronous>, transform_indices = @transform_6, window_bounds = array<i64: 1, 16>}, {pipeline_mode = #tpu.pipeline_mode<synchronous>, transform_indices = @transform_7, window_bounds = array<i64: 144, 32>}, {pipeline_mode = #tpu.pipeline_mode<synchronous>, transform_indices = @transform_8, window_bounds = array<i64: 1, 32>}, {pipeline_mode = #tpu.pipeline_mode<synchronous>, transform_indices = @transform_9, window_bounds = array<i64: 16, 32>}, {pipeline_mode = #tpu.pipeline_mode<synchronous>, transform_indices = @transform_10, window_bounds = array<i64: 16, 32>}, {pipeline_mode = #tpu.pipeline_mode<synchronous>, transform_indices = @transform_11, window_bounds = array<i64: 1, 2>}, {transform_indices = @transform_12, window_bounds = array<i64: 1, 1, 2>}]} {
    %c0 = arith.constant 0 : index
    %c0_0 = arith.constant 0 : index
    %c0_1 = arith.constant 0 : index
    %c0_2 = arith.constant 0 : index
    %0 = vector.load %arg1[%c0, %c0_0, %c0_1, %c0_2] : memref<1x18x18x3xf32, #tpu.memory_space<vmem>>, vector<1x16x16x3xf32>
    %1 = vector.shape_cast %0 : vector<1x16x16x3xf32> to vector<16x16x3xf32>
    %2 = vector.shape_cast %1 : vector<16x16x3xf32> to vector<256x3xf32>
    %c0_3 = arith.constant 0 : index
    %c0_4 = arith.constant 0 : index
    %c1 = arith.constant 1 : index
    %c0_5 = arith.constant 0 : index
    %3 = vector.load %arg1[%c0_3, %c0_4, %c1, %c0_5] : memref<1x18x18x3xf32, #tpu.memory_space<vmem>>, vector<1x16x16x3xf32>
    %4 = vector.shape_cast %3 : vector<1x16x16x3xf32> to vector<16x16x3xf32>
    %5 = vector.shape_cast %4 : vector<16x16x3xf32> to vector<256x3xf32>
    %c0_6 = arith.constant 0 : index
    %c0_7 = arith.constant 0 : index
    %c2 = arith.constant 2 : index
    %c0_8 = arith.constant 0 : index
    %6 = vector.load %arg1[%c0_6, %c0_7, %c2, %c0_8] : memref<1x18x18x3xf32, #tpu.memory_space<vmem>>, vector<1x16x16x3xf32>
    %7 = vector.shape_cast %6 : vector<1x16x16x3xf32> to vector<16x16x3xf32>
    %8 = vector.shape_cast %7 : vector<16x16x3xf32> to vector<256x3xf32>
    %c0_9 = arith.constant 0 : index
    %c1_10 = arith.constant 1 : index
    %c0_11 = arith.constant 0 : index
    %c0_12 = arith.constant 0 : index
    %9 = vector.load %arg1[%c0_9, %c1_10, %c0_11, %c0_12] : memref<1x18x18x3xf32, #tpu.memory_space<vmem>>, vector<1x16x16x3xf32>
    %10 = vector.shape_cast %9 : vector<1x16x16x3xf32> to vector<16x16x3xf32>
    %11 = vector.shape_cast %10 : vector<16x16x3xf32> to vector<256x3xf32>
    %c0_13 = arith.constant 0 : index
    %c1_14 = arith.constant 1 : index
    %c1_15 = arith.constant 1 : index
    %c0_16 = arith.constant 0 : index
    %12 = vector.load %arg1[%c0_13, %c1_14, %c1_15, %c0_16] : memref<1x18x18x3xf32, #tpu.memory_space<vmem>>, vector<1x16x16x3xf32>
    %13 = vector.shape_cast %12 : vector<1x16x16x3xf32> to vector<16x16x3xf32>
    %14 = vector.shape_cast %13 : vector<16x16x3xf32> to vector<256x3xf32>
    %c0_17 = arith.constant 0 : index
    %c1_18 = arith.constant 1 : index
    %c2_19 = arith.constant 2 : index
    %c0_20 = arith.constant 0 : index
    %15 = vector.load %arg1[%c0_17, %c1_18, %c2_19, %c0_20] : memref<1x18x18x3xf32, #tpu.memory_space<vmem>>, vector<1x16x16x3xf32>
    %16 = vector.shape_cast %15 : vector<1x16x16x3xf32> to vector<16x16x3xf32>
    %17 = vector.shape_cast %16 : vector<16x16x3xf32> to vector<256x3xf32>
    %c0_21 = arith.constant 0 : index
    %c2_22 = arith.constant 2 : index
    %c0_23 = arith.constant 0 : index
    %c0_24 = arith.constant 0 : index
    %18 = vector.load %arg1[%c0_21, %c2_22, %c0_23, %c0_24] : memref<1x18x18x3xf32, #tpu.memory_space<vmem>>, vector<1x16x16x3xf32>
    %19 = vector.shape_cast %18 : vector<1x16x16x3xf32> to vector<16x16x3xf32>
    %20 = vector.shape_cast %19 : vector<16x16x3xf32> to vector<256x3xf32>
    %c0_25 = arith.constant 0 : index
    %c2_26 = arith.constant 2 : index
    %c1_27 = arith.constant 1 : index
    %c0_28 = arith.constant 0 : index
    %21 = vector.load %arg1[%c0_25, %c2_26, %c1_27, %c0_28] : memref<1x18x18x3xf32, #tpu.memory_space<vmem>>, vector<1x16x16x3xf32>
    %22 = vector.shape_cast %21 : vector<1x16x16x3xf32> to vector<16x16x3xf32>
    %23 = vector.shape_cast %22 : vector<16x16x3xf32> to vector<256x3xf32>
    %c0_29 = arith.constant 0 : index
    %c2_30 = arith.constant 2 : index
    %c2_31 = arith.constant 2 : index
    %c0_32 = arith.constant 0 : index
    %24 = vector.load %arg1[%c0_29, %c2_30, %c2_31, %c0_32] : memref<1x18x18x3xf32, #tpu.memory_space<vmem>>, vector<1x16x16x3xf32>
    %25 = vector.shape_cast %24 : vector<1x16x16x3xf32> to vector<16x16x3xf32>
    %26 = vector.shape_cast %25 : vector<16x16x3xf32> to vector<256x3xf32>
    %27 = tpu.concatenate %2, %5, %8, %11, %14, %17, %20, %23, %26 in 1 : vector<256x3xf32>, vector<256x3xf32>, vector<256x3xf32>, vector<256x3xf32>, vector<256x3xf32>, vector<256x3xf32>, vector<256x3xf32>, vector<256x3xf32>, vector<256x3xf32> -> vector<256x27xf32>
    %c0_33 = arith.constant 0 : index
    %c0_34 = arith.constant 0 : index
    %28 = vector.load %arg2[%c0_33, %c0_34] : memref<27x3xf32, #tpu.memory_space<vmem>>, vector<27x3xf32>
    %cst = arith.constant dense<0.000000e+00> : vector<256x3xf32>
    %29 = tpu.matmul %27, %28, %cst {dimension_numbers = #tpu.dot_dimension_numbers<[1], [0], [0], [1], [0, 0, 1, 1], [], []>} : vector<256x27xf32>, vector<27x3xf32>, vector<256x3xf32> -> vector<256x3xf32>
    %c0_35 = arith.constant 0 : index
    %c0_36 = arith.constant 0 : index
    %30 = vector.load %arg3[%c0_35, %c0_36] : memref<1x3xf32, #tpu.memory_space<vmem>>, vector<1x3xf32>
    %31 = vector.broadcast %30 : vector<1x3xf32> to vector<256x3xf32>
    %32 = arith.addf %29, %31 : vector<256x3xf32>
    %cst_37 = arith.constant 0.000000e+00 : f32
    %33 = vector.broadcast %cst_37 : f32 to vector<256x3xf32>
    %34 = arith.maximumf %32, %33 : vector<256x3xf32>
    %cst_38 = arith.constant 0.000000e+00 : f32
    %35 = vector.broadcast %cst_38 : f32 to vector<18x18x3xf32>
    %c0_39 = arith.constant 0 : index
    %c0_40 = arith.constant 0 : index
    %c0_41 = arith.constant 0 : index
    %36 = vector.load %arg14[%c0_39, %c0_40, %c0_41] : memref<18x18x3xf32, #tpu.memory_space<vmem>>, vector<18x18x3xf32>
    tpu.vector_store %arg14[%c0_39, %c0_40, %c0_41], %35 {strides = array<i32>} : memref<18x18x3xf32, #tpu.memory_space<vmem>>, vector<18x18x3xf32>,
    %37 = vector.shape_cast %34 : vector<256x3xf32> to vector<16x16x3xf32>
    %c1_42 = arith.constant 1 : index
    %c1_43 = arith.constant 1 : index
    %c0_44 = arith.constant 0 : index
    %38 = vector.load %arg14[%c1_42, %c1_43, %c0_44] : memref<18x18x3xf32, #tpu.memory_space<vmem>>, vector<16x16x3xf32>
    tpu.vector_store %arg14[%c1_42, %c1_43, %c0_44], %37 {strides = array<i32>} : memref<18x18x3xf32, #tpu.memory_space<vmem>>, vector<16x16x3xf32>,
    %c0_45 = arith.constant 0 : index
    %c0_46 = arith.constant 0 : index
    %c0_47 = arith.constant 0 : index
    %39 = vector.load %arg14[%c0_45, %c0_46, %c0_47] : memref<18x18x3xf32, #tpu.memory_space<vmem>>, vector<16x16x3xf32>
    %40 = vector.shape_cast %39 : vector<16x16x3xf32> to vector<256x3xf32>
    %c0_48 = arith.constant 0 : index
    %c1_49 = arith.constant 1 : index
    %c0_50 = arith.constant 0 : index
    %41 = vector.load %arg14[%c0_48, %c1_49, %c0_50] : memref<18x18x3xf32, #tpu.memory_space<vmem>>, vector<16x16x3xf32>
    %42 = vector.shape_cast %41 : vector<16x16x3xf32> to vector<256x3xf32>
    %c0_51 = arith.constant 0 : index
    %c2_52 = arith.constant 2 : index
    %c0_53 = arith.constant 0 : index
    %43 = vector.load %arg14[%c0_51, %c2_52, %c0_53] : memref<18x18x3xf32, #tpu.memory_space<vmem>>, vector<16x16x3xf32>
    %44 = vector.shape_cast %43 : vector<16x16x3xf32> to vector<256x3xf32>
    %c1_54 = arith.constant 1 : index
    %c0_55 = arith.constant 0 : index
    %c0_56 = arith.constant 0 : index
    %45 = vector.load %arg14[%c1_54, %c0_55, %c0_56] : memref<18x18x3xf32, #tpu.memory_space<vmem>>, vector<16x16x3xf32>
    %46 = vector.shape_cast %45 : vector<16x16x3xf32> to vector<256x3xf32>
    %c1_57 = arith.constant 1 : index
    %c1_58 = arith.constant 1 : index
    %c0_59 = arith.constant 0 : index
    %47 = vector.load %arg14[%c1_57, %c1_58, %c0_59] : memref<18x18x3xf32, #tpu.memory_space<vmem>>, vector<16x16x3xf32>
    %48 = vector.shape_cast %47 : vector<16x16x3xf32> to vector<256x3xf32>
    %c1_60 = arith.constant 1 : index
    %c2_61 = arith.constant 2 : index
    %c0_62 = arith.constant 0 : index
    %49 = vector.load %arg14[%c1_60, %c2_61, %c0_62] : memref<18x18x3xf32, #tpu.memory_space<vmem>>, vector<16x16x3xf32>
    %50 = vector.shape_cast %49 : vector<16x16x3xf32> to vector<256x3xf32>
    %c2_63 = arith.constant 2 : index
    %c0_64 = arith.constant 0 : index
    %c0_65 = arith.constant 0 : index
    %51 = vector.load %arg14[%c2_63, %c0_64, %c0_65] : memref<18x18x3xf32, #tpu.memory_space<vmem>>, vector<16x16x3xf32>
    %52 = vector.shape_cast %51 : vector<16x16x3xf32> to vector<256x3xf32>
    %c2_66 = arith.constant 2 : index
    %c1_67 = arith.constant 1 : index
    %c0_68 = arith.constant 0 : index
    %53 = vector.load %arg14[%c2_66, %c1_67, %c0_68] : memref<18x18x3xf32, #tpu.memory_space<vmem>>, vector<16x16x3xf32>
    %54 = vector.shape_cast %53 : vector<16x16x3xf32> to vector<256x3xf32>
    %c2_69 = arith.constant 2 : index
    %c2_70 = arith.constant 2 : index
    %c0_71 = arith.constant 0 : index
    %55 = vector.load %arg14[%c2_69, %c2_70, %c0_71] : memref<18x18x3xf32, #tpu.memory_space<vmem>>, vector<16x16x3xf32>
    %56 = vector.shape_cast %55 : vector<16x16x3xf32> to vector<256x3xf32>
    %57 = tpu.concatenate %40, %42, %44, %46, %48, %50, %52, %54, %56 in 1 : vector<256x3xf32>, vector<256x3xf32>, vector<256x3xf32>, vector<256x3xf32>, vector<256x3xf32>, vector<256x3xf32>, vector<256x3xf32>, vector<256x3xf32>, vector<256x3xf32> -> vector<256x27xf32>
    %c0_72 = arith.constant 0 : index
    %c0_73 = arith.constant 0 : index
    %58 = vector.load %arg4[%c0_72, %c0_73] : memref<27x8xf32, #tpu.memory_space<vmem>>, vector<27x8xf32>
    %cst_74 = arith.constant dense<0.000000e+00> : vector<256x8xf32>
    %59 = tpu.matmul %57, %58, %cst_74 {dimension_numbers = #tpu.dot_dimension_numbers<[1], [0], [0], [1], [0, 0, 1, 1], [], []>} : vector<256x27xf32>, vector<27x8xf32>, vector<256x8xf32> -> vector<256x8xf32>
    %c0_75 = arith.constant 0 : index
    %c0_76 = arith.constant 0 : index
    %60 = vector.load %arg5[%c0_75, %c0_76] : memref<1x8xf32, #tpu.memory_space<vmem>>, vector<1x8xf32>
    %61 = vector.broadcast %60 : vector<1x8xf32> to vector<256x8xf32>
    %62 = arith.addf %59, %61 : vector<256x8xf32>
    %cst_77 = arith.constant 0.000000e+00 : f32
    %63 = vector.broadcast %cst_77 : f32 to vector<256x8xf32>
    %64 = arith.maximumf %62, %63 : vector<256x8xf32>
    %65 = vector.shape_cast %64 : vector<256x8xf32> to vector<16x16x8xf32>
    %c0_78 = arith.constant 0 : index
    %c0_79 = arith.constant 0 : index
    %c0_80 = arith.constant 0 : index
    %66 = vector.load %arg15[%c0_78, %c0_79, %c0_80] : memref<16x16x8xf32, #tpu.memory_space<vmem>>, vector<16x16x8xf32>
    tpu.vector_store %arg15[%c0_78, %c0_79, %c0_80], %65 {strides = array<i32>} : memref<16x16x8xf32, #tpu.memory_space<vmem>>, vector<16x16x8xf32>,
    %c0_81 = arith.constant 0 : index
    %c0_82 = arith.constant 0 : index
    %c0_83 = arith.constant 0 : index
    %67 = tpu.strided_load %arg15[%c0_81, %c0_82, %c0_83] {strides = array<i32: 2, 1, 1>} : memref<16x16x8xf32, #tpu.memory_space<vmem>>, vector<8x16x8xf32>
    %c1_84 = arith.constant 1 : index
    %c0_85 = arith.constant 0 : index
    %c0_86 = arith.constant 0 : index
    %68 = tpu.strided_load %arg15[%c1_84, %c0_85, %c0_86] {strides = array<i32: 2, 1, 1>} : memref<16x16x8xf32, #tpu.memory_space<vmem>>, vector<8x16x8xf32>
    %69 = arith.addf %67, %68 : vector<8x16x8xf32>
    %c0_87 = arith.constant 0 : index
    %c0_88 = arith.constant 0 : index
    %c0_89 = arith.constant 0 : index
    %70 = vector.load %arg16[%c0_87, %c0_88, %c0_89] : memref<8x16x8xf32, #tpu.memory_space<vmem>>, vector<8x16x8xf32>
    tpu.vector_store %arg16[%c0_87, %c0_88, %c0_89], %69 {strides = array<i32>} : memref<8x16x8xf32, #tpu.memory_space<vmem>>, vector<8x16x8xf32>,
    %c0_90 = arith.constant 0 : index
    %c0_91 = arith.constant 0 : index
    %c0_92 = arith.constant 0 : index
    %71 = tpu.strided_load %arg16[%c0_90, %c0_91, %c0_92] {strides = array<i32: 1, 2, 1>} : memref<8x16x8xf32, #tpu.memory_space<vmem>>, vector<8x8x8xf32>
    %c0_93 = arith.constant 0 : index
    %c1_94 = arith.constant 1 : index
    %c0_95 = arith.constant 0 : index
    %72 = tpu.strided_load %arg16[%c0_93, %c1_94, %c0_95] {strides = array<i32: 1, 2, 1>} : memref<8x16x8xf32, #tpu.memory_space<vmem>>, vector<8x8x8xf32>
    %73 = arith.addf %71, %72 : vector<8x8x8xf32>
    %cst_96 = arith.constant 2.500000e-01 : f32
    %74 = vector.broadcast %cst_96 : f32 to vector<8x8x8xf32>
    %75 = arith.mulf %73, %74 : vector<8x8x8xf32>
    %cst_97 = arith.constant 0.000000e+00 : f32
    %76 = vector.broadcast %cst_97 : f32 to vector<10x10x8xf32>
    %c0_98 = arith.constant 0 : index
    %c0_99 = arith.constant 0 : index
    %c0_100 = arith.constant 0 : index
    %77 = vector.load %arg17[%c0_98, %c0_99, %c0_100] : memref<10x10x8xf32, #tpu.memory_space<vmem>>, vector<10x10x8xf32>
    tpu.vector_store %arg17[%c0_98, %c0_99, %c0_100], %76 {strides = array<i32>} : memref<10x10x8xf32, #tpu.memory_space<vmem>>, vector<10x10x8xf32>,
    %c1_101 = arith.constant 1 : index
    %c1_102 = arith.constant 1 : index
    %c0_103 = arith.constant 0 : index
    %78 = vector.load %arg17[%c1_101, %c1_102, %c0_103] : memref<10x10x8xf32, #tpu.memory_space<vmem>>, vector<8x8x8xf32>
    tpu.vector_store %arg17[%c1_101, %c1_102, %c0_103], %75 {strides = array<i32>} : memref<10x10x8xf32, #tpu.memory_space<vmem>>, vector<8x8x8xf32>,
    %c0_104 = arith.constant 0 : index
    %c0_105 = arith.constant 0 : index
    %c0_106 = arith.constant 0 : index
    %79 = vector.load %arg17[%c0_104, %c0_105, %c0_106] : memref<10x10x8xf32, #tpu.memory_space<vmem>>, vector<8x8x8xf32>
    %80 = vector.shape_cast %79 : vector<8x8x8xf32> to vector<64x8xf32>
    %c0_107 = arith.constant 0 : index
    %c1_108 = arith.constant 1 : index
    %c0_109 = arith.constant 0 : index
    %81 = vector.load %arg17[%c0_107, %c1_108, %c0_109] : memref<10x10x8xf32, #tpu.memory_space<vmem>>, vector<8x8x8xf32>
    %82 = vector.shape_cast %81 : vector<8x8x8xf32> to vector<64x8xf32>
    %c0_110 = arith.constant 0 : index
    %c2_111 = arith.constant 2 : index
    %c0_112 = arith.constant 0 : index
    %83 = vector.load %arg17[%c0_110, %c2_111, %c0_112] : memref<10x10x8xf32, #tpu.memory_space<vmem>>, vector<8x8x8xf32>
    %84 = vector.shape_cast %83 : vector<8x8x8xf32> to vector<64x8xf32>
    %c1_113 = arith.constant 1 : index
    %c0_114 = arith.constant 0 : index
    %c0_115 = arith.constant 0 : index
    %85 = vector.load %arg17[%c1_113, %c0_114, %c0_115] : memref<10x10x8xf32, #tpu.memory_space<vmem>>, vector<8x8x8xf32>
    %86 = vector.shape_cast %85 : vector<8x8x8xf32> to vector<64x8xf32>
    %c1_116 = arith.constant 1 : index
    %c1_117 = arith.constant 1 : index
    %c0_118 = arith.constant 0 : index
    %87 = vector.load %arg17[%c1_116, %c1_117, %c0_118] : memref<10x10x8xf32, #tpu.memory_space<vmem>>, vector<8x8x8xf32>
    %88 = vector.shape_cast %87 : vector<8x8x8xf32> to vector<64x8xf32>
    %c1_119 = arith.constant 1 : index
    %c2_120 = arith.constant 2 : index
    %c0_121 = arith.constant 0 : index
    %89 = vector.load %arg17[%c1_119, %c2_120, %c0_121] : memref<10x10x8xf32, #tpu.memory_space<vmem>>, vector<8x8x8xf32>
    %90 = vector.shape_cast %89 : vector<8x8x8xf32> to vector<64x8xf32>
    %c2_122 = arith.constant 2 : index
    %c0_123 = arith.constant 0 : index
    %c0_124 = arith.constant 0 : index
    %91 = vector.load %arg17[%c2_122, %c0_123, %c0_124] : memref<10x10x8xf32, #tpu.memory_space<vmem>>, vector<8x8x8xf32>
    %92 = vector.shape_cast %91 : vector<8x8x8xf32> to vector<64x8xf32>
    %c2_125 = arith.constant 2 : index
    %c1_126 = arith.constant 1 : index
    %c0_127 = arith.constant 0 : index
    %93 = vector.load %arg17[%c2_125, %c1_126, %c0_127] : memref<10x10x8xf32, #tpu.memory_space<vmem>>, vector<8x8x8xf32>
    %94 = vector.shape_cast %93 : vector<8x8x8xf32> to vector<64x8xf32>
    %c2_128 = arith.constant 2 : index
    %c2_129 = arith.constant 2 : index
    %c0_130 = arith.constant 0 : index
    %95 = vector.load %arg17[%c2_128, %c2_129, %c0_130] : memref<10x10x8xf32, #tpu.memory_space<vmem>>, vector<8x8x8xf32>
    %96 = vector.shape_cast %95 : vector<8x8x8xf32> to vector<64x8xf32>
    %97 = tpu.concatenate %80, %82, %84, %86, %88, %90, %92, %94, %96 in 1 : vector<64x8xf32>, vector<64x8xf32>, vector<64x8xf32>, vector<64x8xf32>, vector<64x8xf32>, vector<64x8xf32>, vector<64x8xf32>, vector<64x8xf32>, vector<64x8xf32> -> vector<64x72xf32>
    %c0_131 = arith.constant 0 : index
    %c0_132 = arith.constant 0 : index
    %98 = vector.load %arg6[%c0_131, %c0_132] : memref<72x16xf32, #tpu.memory_space<vmem>>, vector<72x16xf32>
    %cst_133 = arith.constant dense<0.000000e+00> : vector<64x16xf32>
    %99 = tpu.matmul %97, %98, %cst_133 {dimension_numbers = #tpu.dot_dimension_numbers<[1], [0], [0], [1], [0, 0, 1, 1], [], []>} : vector<64x72xf32>, vector<72x16xf32>, vector<64x16xf32> -> vector<64x16xf32>
    %c0_134 = arith.constant 0 : index
    %c0_135 = arith.constant 0 : index
    %100 = vector.load %arg7[%c0_134, %c0_135] : memref<1x16xf32, #tpu.memory_space<vmem>>, vector<1x16xf32>
    %101 = vector.broadcast %100 : vector<1x16xf32> to vector<64x16xf32>
    %102 = arith.addf %99, %101 : vector<64x16xf32>
    %cst_136 = arith.constant 0.000000e+00 : f32
    %103 = vector.broadcast %cst_136 : f32 to vector<64x16xf32>
    %104 = arith.maximumf %102, %103 : vector<64x16xf32>
    %105 = vector.shape_cast %104 : vector<64x16xf32> to vector<8x8x16xf32>
    %c0_137 = arith.constant 0 : index
    %c0_138 = arith.constant 0 : index
    %c0_139 = arith.constant 0 : index
    %106 = vector.load %arg18[%c0_137, %c0_138, %c0_139] : memref<8x8x16xf32, #tpu.memory_space<vmem>>, vector<8x8x16xf32>
    tpu.vector_store %arg18[%c0_137, %c0_138, %c0_139], %105 {strides = array<i32>} : memref<8x8x16xf32, #tpu.memory_space<vmem>>, vector<8x8x16xf32>,
    %c0_140 = arith.constant 0 : index
    %c0_141 = arith.constant 0 : index
    %c0_142 = arith.constant 0 : index
    %107 = tpu.strided_load %arg18[%c0_140, %c0_141, %c0_142] {strides = array<i32: 2, 1, 1>} : memref<8x8x16xf32, #tpu.memory_space<vmem>>, vector<4x8x16xf32>
    %c1_143 = arith.constant 1 : index
    %c0_144 = arith.constant 0 : index
    %c0_145 = arith.constant 0 : index
    %108 = tpu.strided_load %arg18[%c1_143, %c0_144, %c0_145] {strides = array<i32: 2, 1, 1>} : memref<8x8x16xf32, #tpu.memory_space<vmem>>, vector<4x8x16xf32>
    %109 = arith.addf %107, %108 : vector<4x8x16xf32>
    %c0_146 = arith.constant 0 : index
    %c0_147 = arith.constant 0 : index
    %c0_148 = arith.constant 0 : index
    %110 = vector.load %arg19[%c0_146, %c0_147, %c0_148] : memref<4x8x16xf32, #tpu.memory_space<vmem>>, vector<4x8x16xf32>
    tpu.vector_store %arg19[%c0_146, %c0_147, %c0_148], %109 {strides = array<i32>} : memref<4x8x16xf32, #tpu.memory_space<vmem>>, vector<4x8x16xf32>,
    %c0_149 = arith.constant 0 : index
    %c0_150 = arith.constant 0 : index
    %c0_151 = arith.constant 0 : index
    %111 = tpu.strided_load %arg19[%c0_149, %c0_150, %c0_151] {strides = array<i32: 1, 2, 1>} : memref<4x8x16xf32, #tpu.memory_space<vmem>>, vector<4x4x16xf32>
    %c0_152 = arith.constant 0 : index
    %c1_153 = arith.constant 1 : index
    %c0_154 = arith.constant 0 : index
    %112 = tpu.strided_load %arg19[%c0_152, %c1_153, %c0_154] {strides = array<i32: 1, 2, 1>} : memref<4x8x16xf32, #tpu.memory_space<vmem>>, vector<4x4x16xf32>
    %113 = arith.addf %111, %112 : vector<4x4x16xf32>
    %cst_155 = arith.constant 2.500000e-01 : f32
    %114 = vector.broadcast %cst_155 : f32 to vector<4x4x16xf32>
    %115 = arith.mulf %113, %114 : vector<4x4x16xf32>
    %cst_156 = arith.constant 0.000000e+00 : f32
    %116 = vector.broadcast %cst_156 : f32 to vector<6x6x16xf32>
    %c0_157 = arith.constant 0 : index
    %c0_158 = arith.constant 0 : index
    %c0_159 = arith.constant 0 : index
    %117 = vector.load %arg20[%c0_157, %c0_158, %c0_159] : memref<6x6x16xf32, #tpu.memory_space<vmem>>, vector<6x6x16xf32>
    tpu.vector_store %arg20[%c0_157, %c0_158, %c0_159], %116 {strides = array<i32>} : memref<6x6x16xf32, #tpu.memory_space<vmem>>, vector<6x6x16xf32>,
    %c1_160 = arith.constant 1 : index
    %c1_161 = arith.constant 1 : index
    %c0_162 = arith.constant 0 : index
    %118 = vector.load %arg20[%c1_160, %c1_161, %c0_162] : memref<6x6x16xf32, #tpu.memory_space<vmem>>, vector<4x4x16xf32>
    tpu.vector_store %arg20[%c1_160, %c1_161, %c0_162], %115 {strides = array<i32>} : memref<6x6x16xf32, #tpu.memory_space<vmem>>, vector<4x4x16xf32>,
    %c0_163 = arith.constant 0 : index
    %c0_164 = arith.constant 0 : index
    %c0_165 = arith.constant 0 : index
    %119 = vector.load %arg20[%c0_163, %c0_164, %c0_165] : memref<6x6x16xf32, #tpu.memory_space<vmem>>, vector<1x4x16xf32>
    %120 = vector.shape_cast %119 : vector<1x4x16xf32> to vector<4x16xf32>
    %c0_166 = arith.constant 0 : index
    %c1_167 = arith.constant 1 : index
    %c0_168 = arith.constant 0 : index
    %121 = vector.load %arg20[%c0_166, %c1_167, %c0_168] : memref<6x6x16xf32, #tpu.memory_space<vmem>>, vector<1x4x16xf32>
    %122 = vector.shape_cast %121 : vector<1x4x16xf32> to vector<4x16xf32>
    %c0_169 = arith.constant 0 : index
    %c2_170 = arith.constant 2 : index
    %c0_171 = arith.constant 0 : index
    %123 = vector.load %arg20[%c0_169, %c2_170, %c0_171] : memref<6x6x16xf32, #tpu.memory_space<vmem>>, vector<1x4x16xf32>
    %124 = vector.shape_cast %123 : vector<1x4x16xf32> to vector<4x16xf32>
    %c1_172 = arith.constant 1 : index
    %c0_173 = arith.constant 0 : index
    %c0_174 = arith.constant 0 : index
    %125 = vector.load %arg20[%c1_172, %c0_173, %c0_174] : memref<6x6x16xf32, #tpu.memory_space<vmem>>, vector<1x4x16xf32>
    %126 = vector.shape_cast %125 : vector<1x4x16xf32> to vector<4x16xf32>
    %c1_175 = arith.constant 1 : index
    %c1_176 = arith.constant 1 : index
    %c0_177 = arith.constant 0 : index
    %127 = vector.load %arg20[%c1_175, %c1_176, %c0_177] : memref<6x6x16xf32, #tpu.memory_space<vmem>>, vector<1x4x16xf32>
    %128 = vector.shape_cast %127 : vector<1x4x16xf32> to vector<4x16xf32>
    %c1_178 = arith.constant 1 : index
    %c2_179 = arith.constant 2 : index
    %c0_180 = arith.constant 0 : index
    %129 = vector.load %arg20[%c1_178, %c2_179, %c0_180] : memref<6x6x16xf32, #tpu.memory_space<vmem>>, vector<1x4x16xf32>
    %130 = vector.shape_cast %129 : vector<1x4x16xf32> to vector<4x16xf32>
    %c2_181 = arith.constant 2 : index
    %c0_182 = arith.constant 0 : index
    %c0_183 = arith.constant 0 : index
    %131 = vector.load %arg20[%c2_181, %c0_182, %c0_183] : memref<6x6x16xf32, #tpu.memory_space<vmem>>, vector<1x4x16xf32>
    %132 = vector.shape_cast %131 : vector<1x4x16xf32> to vector<4x16xf32>
    %c2_184 = arith.constant 2 : index
    %c1_185 = arith.constant 1 : index
    %c0_186 = arith.constant 0 : index
    %133 = vector.load %arg20[%c2_184, %c1_185, %c0_186] : memref<6x6x16xf32, #tpu.memory_space<vmem>>, vector<1x4x16xf32>
    %134 = vector.shape_cast %133 : vector<1x4x16xf32> to vector<4x16xf32>
    %c2_187 = arith.constant 2 : index
    %c2_188 = arith.constant 2 : index
    %c0_189 = arith.constant 0 : index
    %135 = vector.load %arg20[%c2_187, %c2_188, %c0_189] : memref<6x6x16xf32, #tpu.memory_space<vmem>>, vector<1x4x16xf32>
    %136 = vector.shape_cast %135 : vector<1x4x16xf32> to vector<4x16xf32>
    %137 = tpu.concatenate %120, %122, %124, %126, %128, %130, %132, %134, %136 in 1 : vector<4x16xf32>, vector<4x16xf32>, vector<4x16xf32>, vector<4x16xf32>, vector<4x16xf32>, vector<4x16xf32>, vector<4x16xf32>, vector<4x16xf32>, vector<4x16xf32> -> vector<4x144xf32>
    %c0_190 = arith.constant 0 : index
    %c0_191 = arith.constant 0 : index
    %138 = vector.load %arg21[%c0_190, %c0_191] : memref<16x144xf32, #tpu.memory_space<vmem>>, vector<4x144xf32>
    tpu.vector_store %arg21[%c0_190, %c0_191], %137 {strides = array<i32>} : memref<16x144xf32, #tpu.memory_space<vmem>>, vector<4x144xf32>,
    %c1_192 = arith.constant 1 : index
    %c0_193 = arith.constant 0 : index
    %c0_194 = arith.constant 0 : index
    %139 = vector.load %arg20[%c1_192, %c0_193, %c0_194] : memref<6x6x16xf32, #tpu.memory_space<vmem>>, vector<1x4x16xf32>
    %140 = vector.shape_cast %139 : vector<1x4x16xf32> to vector<4x16xf32>
    %c1_195 = arith.constant 1 : index
    %c1_196 = arith.constant 1 : index
    %c0_197 = arith.constant 0 : index
    %141 = vector.load %arg20[%c1_195, %c1_196, %c0_197] : memref<6x6x16xf32, #tpu.memory_space<vmem>>, vector<1x4x16xf32>
    %142 = vector.shape_cast %141 : vector<1x4x16xf32> to vector<4x16xf32>
    %c1_198 = arith.constant 1 : index
    %c2_199 = arith.constant 2 : index
    %c0_200 = arith.constant 0 : index
    %143 = vector.load %arg20[%c1_198, %c2_199, %c0_200] : memref<6x6x16xf32, #tpu.memory_space<vmem>>, vector<1x4x16xf32>
    %144 = vector.shape_cast %143 : vector<1x4x16xf32> to vector<4x16xf32>
    %c2_201 = arith.constant 2 : index
    %c0_202 = arith.constant 0 : index
    %c0_203 = arith.constant 0 : index
    %145 = vector.load %arg20[%c2_201, %c0_202, %c0_203] : memref<6x6x16xf32, #tpu.memory_space<vmem>>, vector<1x4x16xf32>
    %146 = vector.shape_cast %145 : vector<1x4x16xf32> to vector<4x16xf32>
    %c2_204 = arith.constant 2 : index
    %c1_205 = arith.constant 1 : index
    %c0_206 = arith.constant 0 : index
    %147 = vector.load %arg20[%c2_204, %c1_205, %c0_206] : memref<6x6x16xf32, #tpu.memory_space<vmem>>, vector<1x4x16xf32>
    %148 = vector.shape_cast %147 : vector<1x4x16xf32> to vector<4x16xf32>
    %c2_207 = arith.constant 2 : index
    %c2_208 = arith.constant 2 : index
    %c0_209 = arith.constant 0 : index
    %149 = vector.load %arg20[%c2_207, %c2_208, %c0_209] : memref<6x6x16xf32, #tpu.memory_space<vmem>>, vector<1x4x16xf32>
    %150 = vector.shape_cast %149 : vector<1x4x16xf32> to vector<4x16xf32>
    %c3 = arith.constant 3 : index
    %c0_210 = arith.constant 0 : index
    %c0_211 = arith.constant 0 : index
    %151 = vector.load %arg20[%c3, %c0_210, %c0_211] : memref<6x6x16xf32, #tpu.memory_space<vmem>>, vector<1x4x16xf32>
    %152 = vector.shape_cast %151 : vector<1x4x16xf32> to vector<4x16xf32>
    %c3_212 = arith.constant 3 : index
    %c1_213 = arith.constant 1 : index
    %c0_214 = arith.constant 0 : index
    %153 = vector.load %arg20[%c3_212, %c1_213, %c0_214] : memref<6x6x16xf32, #tpu.memory_space<vmem>>, vector<1x4x16xf32>
    %154 = vector.shape_cast %153 : vector<1x4x16xf32> to vector<4x16xf32>
    %c3_215 = arith.constant 3 : index
    %c2_216 = arith.constant 2 : index
    %c0_217 = arith.constant 0 : index
    %155 = vector.load %arg20[%c3_215, %c2_216, %c0_217] : memref<6x6x16xf32, #tpu.memory_space<vmem>>, vector<1x4x16xf32>
    %156 = vector.shape_cast %155 : vector<1x4x16xf32> to vector<4x16xf32>
    %157 = tpu.concatenate %140, %142, %144, %146, %148, %150, %152, %154, %156 in 1 : vector<4x16xf32>, vector<4x16xf32>, vector<4x16xf32>, vector<4x16xf32>, vector<4x16xf32>, vector<4x16xf32>, vector<4x16xf32>, vector<4x16xf32>, vector<4x16xf32> -> vector<4x144xf32>
    %c4 = arith.constant 4 : index
    %c0_218 = arith.constant 0 : index
    %158 = vector.load %arg21[%c4, %c0_218] : memref<16x144xf32, #tpu.memory_space<vmem>>, vector<4x144xf32>
    tpu.vector_store %arg21[%c4, %c0_218], %157 {strides = array<i32>} : memref<16x144xf32, #tpu.memory_space<vmem>>, vector<4x144xf32>,
    %c2_219 = arith.constant 2 : index
    %c0_220 = arith.constant 0 : index
    %c0_221 = arith.constant 0 : index
    %159 = vector.load %arg20[%c2_219, %c0_220, %c0_221] : memref<6x6x16xf32, #tpu.memory_space<vmem>>, vector<1x4x16xf32>
    %160 = vector.shape_cast %159 : vector<1x4x16xf32> to vector<4x16xf32>
    %c2_222 = arith.constant 2 : index
    %c1_223 = arith.constant 1 : index
    %c0_224 = arith.constant 0 : index
    %161 = vector.load %arg20[%c2_222, %c1_223, %c0_224] : memref<6x6x16xf32, #tpu.memory_space<vmem>>, vector<1x4x16xf32>
    %162 = vector.shape_cast %161 : vector<1x4x16xf32> to vector<4x16xf32>
    %c2_225 = arith.constant 2 : index
    %c2_226 = arith.constant 2 : index
    %c0_227 = arith.constant 0 : index
    %163 = vector.load %arg20[%c2_225, %c2_226, %c0_227] : memref<6x6x16xf32, #tpu.memory_space<vmem>>, vector<1x4x16xf32>
    %164 = vector.shape_cast %163 : vector<1x4x16xf32> to vector<4x16xf32>
    %c3_228 = arith.constant 3 : index
    %c0_229 = arith.constant 0 : index
    %c0_230 = arith.constant 0 : index
    %165 = vector.load %arg20[%c3_228, %c0_229, %c0_230] : memref<6x6x16xf32, #tpu.memory_space<vmem>>, vector<1x4x16xf32>
    %166 = vector.shape_cast %165 : vector<1x4x16xf32> to vector<4x16xf32>
    %c3_231 = arith.constant 3 : index
    %c1_232 = arith.constant 1 : index
    %c0_233 = arith.constant 0 : index
    %167 = vector.load %arg20[%c3_231, %c1_232, %c0_233] : memref<6x6x16xf32, #tpu.memory_space<vmem>>, vector<1x4x16xf32>
    %168 = vector.shape_cast %167 : vector<1x4x16xf32> to vector<4x16xf32>
    %c3_234 = arith.constant 3 : index
    %c2_235 = arith.constant 2 : index
    %c0_236 = arith.constant 0 : index
    %169 = vector.load %arg20[%c3_234, %c2_235, %c0_236] : memref<6x6x16xf32, #tpu.memory_space<vmem>>, vector<1x4x16xf32>
    %170 = vector.shape_cast %169 : vector<1x4x16xf32> to vector<4x16xf32>
    %c4_237 = arith.constant 4 : index
    %c0_238 = arith.constant 0 : index
    %c0_239 = arith.constant 0 : index
    %171 = vector.load %arg20[%c4_237, %c0_238, %c0_239] : memref<6x6x16xf32, #tpu.memory_space<vmem>>, vector<1x4x16xf32>
    %172 = vector.shape_cast %171 : vector<1x4x16xf32> to vector<4x16xf32>
    %c4_240 = arith.constant 4 : index
    %c1_241 = arith.constant 1 : index
    %c0_242 = arith.constant 0 : index
    %173 = vector.load %arg20[%c4_240, %c1_241, %c0_242] : memref<6x6x16xf32, #tpu.memory_space<vmem>>, vector<1x4x16xf32>
    %174 = vector.shape_cast %173 : vector<1x4x16xf32> to vector<4x16xf32>
    %c4_243 = arith.constant 4 : index
    %c2_244 = arith.constant 2 : index
    %c0_245 = arith.constant 0 : index
    %175 = vector.load %arg20[%c4_243, %c2_244, %c0_245] : memref<6x6x16xf32, #tpu.memory_space<vmem>>, vector<1x4x16xf32>
    %176 = vector.shape_cast %175 : vector<1x4x16xf32> to vector<4x16xf32>
    %177 = tpu.concatenate %160, %162, %164, %166, %168, %170, %172, %174, %176 in 1 : vector<4x16xf32>, vector<4x16xf32>, vector<4x16xf32>, vector<4x16xf32>, vector<4x16xf32>, vector<4x16xf32>, vector<4x16xf32>, vector<4x16xf32>, vector<4x16xf32> -> vector<4x144xf32>
    %c8 = arith.constant 8 : index
    %c0_246 = arith.constant 0 : index
    %178 = vector.load %arg21[%c8, %c0_246] : memref<16x144xf32, #tpu.memory_space<vmem>>, vector<4x144xf32>
    tpu.vector_store %arg21[%c8, %c0_246], %177 {strides = array<i32>} : memref<16x144xf32, #tpu.memory_space<vmem>>, vector<4x144xf32>,
    %c3_247 = arith.constant 3 : index
    %c0_248 = arith.constant 0 : index
    %c0_249 = arith.constant 0 : index
    %179 = vector.load %arg20[%c3_247, %c0_248, %c0_249] : memref<6x6x16xf32, #tpu.memory_space<vmem>>, vector<1x4x16xf32>
    %180 = vector.shape_cast %179 : vector<1x4x16xf32> to vector<4x16xf32>
    %c3_250 = arith.constant 3 : index
    %c1_251 = arith.constant 1 : index
    %c0_252 = arith.constant 0 : index
    %181 = vector.load %arg20[%c3_250, %c1_251, %c0_252] : memref<6x6x16xf32, #tpu.memory_space<vmem>>, vector<1x4x16xf32>
    %182 = vector.shape_cast %181 : vector<1x4x16xf32> to vector<4x16xf32>
    %c3_253 = arith.constant 3 : index
    %c2_254 = arith.constant 2 : index
    %c0_255 = arith.constant 0 : index
    %183 = vector.load %arg20[%c3_253, %c2_254, %c0_255] : memref<6x6x16xf32, #tpu.memory_space<vmem>>, vector<1x4x16xf32>
    %184 = vector.shape_cast %183 : vector<1x4x16xf32> to vector<4x16xf32>
    %c4_256 = arith.constant 4 : index
    %c0_257 = arith.constant 0 : index
    %c0_258 = arith.constant 0 : index
    %185 = vector.load %arg20[%c4_256, %c0_257, %c0_258] : memref<6x6x16xf32, #tpu.memory_space<vmem>>, vector<1x4x16xf32>
    %186 = vector.shape_cast %185 : vector<1x4x16xf32> to vector<4x16xf32>
    %c4_259 = arith.constant 4 : index
    %c1_260 = arith.constant 1 : index
    %c0_261 = arith.constant 0 : index
    %187 = vector.load %arg20[%c4_259, %c1_260, %c0_261] : memref<6x6x16xf32, #tpu.memory_space<vmem>>, vector<1x4x16xf32>
    %188 = vector.shape_cast %187 : vector<1x4x16xf32> to vector<4x16xf32>
    %c4_262 = arith.constant 4 : index
    %c2_263 = arith.constant 2 : index
    %c0_264 = arith.constant 0 : index
    %189 = vector.load %arg20[%c4_262, %c2_263, %c0_264] : memref<6x6x16xf32, #tpu.memory_space<vmem>>, vector<1x4x16xf32>
    %190 = vector.shape_cast %189 : vector<1x4x16xf32> to vector<4x16xf32>
    %c5 = arith.constant 5 : index
    %c0_265 = arith.constant 0 : index
    %c0_266 = arith.constant 0 : index
    %191 = vector.load %arg20[%c5, %c0_265, %c0_266] : memref<6x6x16xf32, #tpu.memory_space<vmem>>, vector<1x4x16xf32>
    %192 = vector.shape_cast %191 : vector<1x4x16xf32> to vector<4x16xf32>
    %c5_267 = arith.constant 5 : index
    %c1_268 = arith.constant 1 : index
    %c0_269 = arith.constant 0 : index
    %193 = vector.load %arg20[%c5_267, %c1_268, %c0_269] : memref<6x6x16xf32, #tpu.memory_space<vmem>>, vector<1x4x16xf32>
    %194 = vector.shape_cast %193 : vector<1x4x16xf32> to vector<4x16xf32>
    %c5_270 = arith.constant 5 : index
    %c2_271 = arith.constant 2 : index
    %c0_272 = arith.constant 0 : index
    %195 = vector.load %arg20[%c5_270, %c2_271, %c0_272] : memref<6x6x16xf32, #tpu.memory_space<vmem>>, vector<1x4x16xf32>
    %196 = vector.shape_cast %195 : vector<1x4x16xf32> to vector<4x16xf32>
    %197 = tpu.concatenate %180, %182, %184, %186, %188, %190, %192, %194, %196 in 1 : vector<4x16xf32>, vector<4x16xf32>, vector<4x16xf32>, vector<4x16xf32>, vector<4x16xf32>, vector<4x16xf32>, vector<4x16xf32>, vector<4x16xf32>, vector<4x16xf32> -> vector<4x144xf32>
    %c12 = arith.constant 12 : index
    %c0_273 = arith.constant 0 : index
    %198 = vector.load %arg21[%c12, %c0_273] : memref<16x144xf32, #tpu.memory_space<vmem>>, vector<4x144xf32>
    tpu.vector_store %arg21[%c12, %c0_273], %197 {strides = array<i32>} : memref<16x144xf32, #tpu.memory_space<vmem>>, vector<4x144xf32>,
    %c0_274 = arith.constant 0 : index
    %c0_275 = arith.constant 0 : index
    %199 = vector.load %arg21[%c0_274, %c0_275] : memref<16x144xf32, #tpu.memory_space<vmem>>, vector<16x144xf32>
    %c0_276 = arith.constant 0 : index
    %c0_277 = arith.constant 0 : index
    %200 = vector.load %arg8[%c0_276, %c0_277] : memref<144x32xf32, #tpu.memory_space<vmem>>, vector<144x32xf32>
    %cst_278 = arith.constant dense<0.000000e+00> : vector<16x32xf32>
    %201 = tpu.matmul %199, %200, %cst_278 {dimension_numbers = #tpu.dot_dimension_numbers<[1], [0], [0], [1], [0, 0, 1, 1], [], []>} : vector<16x144xf32>, vector<144x32xf32>, vector<16x32xf32> -> vector<16x32xf32>
    %c0_279 = arith.constant 0 : index
    %c0_280 = arith.constant 0 : index
    %202 = vector.load %arg9[%c0_279, %c0_280] : memref<1x32xf32, #tpu.memory_space<vmem>>, vector<1x32xf32>
    %203 = vector.broadcast %202 : vector<1x32xf32> to vector<16x32xf32>
    %204 = arith.addf %201, %203 : vector<16x32xf32>
    %cst_281 = arith.constant 0.000000e+00 : f32
    %205 = vector.broadcast %cst_281 : f32 to vector<16x32xf32>
    %206 = arith.maximumf %204, %205 : vector<16x32xf32>
    %c0_282 = arith.constant 0 : index
    %c0_283 = arith.constant 0 : index
    %207 = vector.load %arg10[%c0_282, %c0_283] : memref<16x32xf32, #tpu.memory_space<vmem>>, vector<16x32xf32>
    %208 = arith.mulf %206, %207 : vector<16x32xf32>
    %cst_284 = arith.constant dense<0.000000e+00> : vector<32xf32>
    %209 = vector.multi_reduction <add>, %208, %cst_284 [0] : vector<16x32xf32> to vector<32xf32>
    %210 = vector.shape_cast %209 : vector<32xf32> to vector<1x32xf32>
    %c0_285 = arith.constant 0 : index
    %c0_286 = arith.constant 0 : index
    %211 = vector.load %arg11[%c0_285, %c0_286] : memref<16x32xf32, #tpu.memory_space<vmem>>, vector<16x32xf32>
    %212 = arith.mulf %206, %211 : vector<16x32xf32>
    %cst_287 = arith.constant dense<0.000000e+00> : vector<32xf32>
    %213 = vector.multi_reduction <add>, %212, %cst_287 [0] : vector<16x32xf32> to vector<32xf32>
    %214 = vector.shape_cast %213 : vector<32xf32> to vector<1x32xf32>
    %cst_288 = arith.constant dense<0.000000e+00> : vector<1xf32>
    %215 = vector.multi_reduction <add>, %210, %cst_288 [1] : vector<1x32xf32> to vector<1xf32>
    %216 = vector.shape_cast %215 : vector<1xf32> to vector<1x1xf32>
    %cst_289 = arith.constant dense<0.000000e+00> : vector<1xf32>
    %217 = vector.multi_reduction <add>, %214, %cst_289 [1] : vector<1x32xf32> to vector<1xf32>
    %218 = vector.shape_cast %217 : vector<1xf32> to vector<1x1xf32>
    %219 = tpu.concatenate %216, %218 in 1 : vector<1x1xf32>, vector<1x1xf32> -> vector<1x2xf32>
    %c0_290 = arith.constant 0 : index
    %c0_291 = arith.constant 0 : index
    %220 = vector.load %arg12[%c0_290, %c0_291] : memref<1x2xf32, #tpu.memory_space<vmem>>, vector<1x2xf32>
    %221 = arith.addf %219, %220 : vector<1x2xf32>
    %c0_292 = arith.constant 0 : index
    %c0_293 = arith.constant 0 : index
    %c0_294 = arith.constant 0 : index
    %222 = vector.load %arg13[%c0_292, %c0_293, %c0_294] : memref<1x1x2xf32, #tpu.memory_space<vmem>>, vector<1x1x2xf32>
    %223 = vector.shape_cast %222 : vector<1x1x2xf32> to vector<1x2xf32>
    %224 = vector.shape_cast %221 : vector<1x2xf32> to vector<1x1x2xf32>
    tpu.vector_store %arg13[%c0_292, %c0_293, %c0_294], %224 {strides = array<i32>} : memref<1x1x2xf32, #tpu.memory_space<vmem>>, vector<1x1x2xf32>,
    return
  }
  func.func @transform_0(%arg0: i32) -> (i32, i32, i32, i32) {
    %c0_i32 = arith.constant 0 : i32
    %c0_i32_0 = arith.constant 0 : i32
    %c0_i32_1 = arith.constant 0 : i32
    %c0_i32_2 = arith.constant 0 : i32
    return %arg0, %c0_i32, %c0_i32_0, %c0_i32_1 : i32, i32, i32, i32
  }
  func.func @transform_1(%arg0: i32) -> (i32, i32) {
    %c0_i32 = arith.constant 0 : i32
    %c0_i32_0 = arith.constant 0 : i32
    %c0_i32_1 = arith.constant 0 : i32
    return %c0_i32, %c0_i32_0 : i32, i32
  }
  func.func @transform_2(%arg0: i32) -> (i32, i32) {
    %c0_i32 = arith.constant 0 : i32
    %c0_i32_0 = arith.constant 0 : i32
    %c0_i32_1 = arith.constant 0 : i32
    return %c0_i32, %c0_i32_0 : i32, i32
  }
  func.func @transform_3(%arg0: i32) -> (i32, i32) {
    %c0_i32 = arith.constant 0 : i32
    %c0_i32_0 = arith.constant 0 : i32
    %c0_i32_1 = arith.constant 0 : i32
    return %c0_i32, %c0_i32_0 : i32, i32
  }
  func.func @transform_4(%arg0: i32) -> (i32, i32) {
    %c0_i32 = arith.constant 0 : i32
    %c0_i32_0 = arith.constant 0 : i32
    %c0_i32_1 = arith.constant 0 : i32
    return %c0_i32, %c0_i32_0 : i32, i32
  }
  func.func @transform_5(%arg0: i32) -> (i32, i32) {
    %c0_i32 = arith.constant 0 : i32
    %c0_i32_0 = arith.constant 0 : i32
    %c0_i32_1 = arith.constant 0 : i32
    return %c0_i32, %c0_i32_0 : i32, i32
  }
  func.func @transform_6(%arg0: i32) -> (i32, i32) {
    %c0_i32 = arith.constant 0 : i32
    %c0_i32_0 = arith.constant 0 : i32
    %c0_i32_1 = arith.constant 0 : i32
    return %c0_i32, %c0_i32_0 : i32, i32
  }
  func.func @transform_7(%arg0: i32) -> (i32, i32) {
    %c0_i32 = arith.constant 0 : i32
    %c0_i32_0 = arith.constant 0 : i32
    %c0_i32_1 = arith.constant 0 : i32
    return %c0_i32, %c0_i32_0 : i32, i32
  }
  func.func @transform_8(%arg0: i32) -> (i32, i32) {
    %c0_i32 = arith.constant 0 : i32
    %c0_i32_0 = arith.constant 0 : i32
    %c0_i32_1 = arith.constant 0 : i32
    return %c0_i32, %c0_i32_0 : i32, i32
  }
  func.func @transform_9(%arg0: i32) -> (i32, i32) {
    %c0_i32 = arith.constant 0 : i32
    %c0_i32_0 = arith.constant 0 : i32
    %c0_i32_1 = arith.constant 0 : i32
    return %c0_i32, %c0_i32_0 : i32, i32
  }
  func.func @transform_10(%arg0: i32) -> (i32, i32) {
    %c0_i32 = arith.constant 0 : i32
    %c0_i32_0 = arith.constant 0 : i32
    %c0_i32_1 = arith.constant 0 : i32
    return %c0_i32, %c0_i32_0 : i32, i32
  }
  func.func @transform_11(%arg0: i32) -> (i32, i32) {
    %c0_i32 = arith.constant 0 : i32
    %c0_i32_0 = arith.constant 0 : i32
    %c0_i32_1 = arith.constant 0 : i32
    return %c0_i32, %c0_i32_0 : i32, i32
  }
  func.func @transform_12(%arg0: i32) -> (i32, i32, i32) {
    %c0_i32 = arith.constant 0 : i32
    %c0_i32_0 = arith.constant 0 : i32
    %c0_i32_1 = arith.constant 0 : i32
    return %arg0, %c0_i32, %c0_i32_0 : i32, i32, i32
  }
}

</mosaic_0001>

<llo_original>
// kernel: _lambda_.1
$region0: #{_lambda_.1}
  #allocation0 [shape = 'u32[]', space=smem, size = 0x4, offset = 0x4, fixed_abs, tag = 'smem constant byte address 0x4 - core index']
  #allocation1 [shape = 'u32[144,128]{1,0:T(1,128)}', space=vmem, size = 0x12000, scoped, tag = 'internal scratch']
  #allocation2 [shape = 'f32[18,18,3]{2,1,0:T(8,128)}', space=vmem, size = 0x36000, scoped, tag = 'scratch operand']
  #allocation3 [shape = 'f32[16,16,8]{2,1,0:T(8,128)}', space=vmem, size = 0x20000, scoped, tag = 'scratch operand']
  #allocation4 [shape = 'f32[8,16,8]{2,1,0:T(8,128)}', space=vmem, size = 0x10000, scoped, tag = 'scratch operand']
  #allocation5 [shape = 'f32[10,10,8]{2,1,0:T(8,128)}', space=vmem, size = 0x14000, scoped, tag = 'scratch operand']
  #allocation6 [shape = 'f32[8,8,16]{2,1,0:T(8,128)}', space=vmem, size = 0x8000, scoped, tag = 'scratch operand']
  #allocation7 [shape = 'f32[4,8,16]{2,1,0:T(8,128)}', space=vmem, size = 0x4000, scoped, tag = 'scratch operand']
  #allocation8 [shape = 'f32[6,6,16]{2,1,0:T(8,128)}', space=vmem, size = 0x6000, scoped, tag = 'scratch operand']
  #allocation9 [shape = 'f32[16,144]{1,0:T(8,128)}', space=vmem, size = 0x4000, scoped, tag = 'scratch operand']
  %s0 = inlined_call_operand.vmem [shape: f32[2,18,18,3], index: 0, kind: input, shape index: {}]
  %s1 = inlined_call_operand.vmem [shape: f32[27,3], index: 1, kind: input, shape index: {}]
  %s2 = inlined_call_operand.vmem [shape: f32[1,3], index: 2, kind: input, shape index: {}]
  %s3 = inlined_call_operand.vmem [shape: f32[27,8], index: 3, kind: input, shape index: {}]
  %s4 = inlined_call_operand.vmem [shape: f32[1,8], index: 4, kind: input, shape index: {}]
  %s5 = inlined_call_operand.vmem [shape: f32[72,16], index: 5, kind: input, shape index: {}]
  %s6 = inlined_call_operand.vmem [shape: f32[1,16], index: 6, kind: input, shape index: {}]
  %s7 = inlined_call_operand.vmem [shape: f32[144,32], index: 7, kind: input, shape index: {}]
  %s8 = inlined_call_operand.vmem [shape: f32[1,32], index: 8, kind: input, shape index: {}]
  %s9 = inlined_call_operand.vmem [shape: f32[16,32], index: 9, kind: input, shape index: {}]
  %s10 = inlined_call_operand.vmem [shape: f32[16,32], index: 10, kind: input, shape index: {}]
  %s11 = inlined_call_operand.vmem [shape: f32[1,2], index: 11, kind: input, shape index: {}]
  %s12 = inlined_call_operand.hbm [shape: f32[2,1,2], index: 12, kind: output, shape index: {}]
  %s13 = sld [smem:[#allocation0]]
  $region81: #{_lambda_.1} parent=0
    _
  %s15 = ssub.s32 1, %s13
  %s16 = scalar_select 0, %s15, %s13
  $region1: #{_lambda_.1} parent=0
    #allocation10 [shape = 'u8[1024]{0}', space=vmem, size = 0x400, scoped, tag = 'output window, operand 0']
    #allocation11 [shape = 's32[2]{0}', space=sflag, size = 0x8, scoped, tag = 'scoped memory for _lambda_.1']
    %17 = vsyncpa [#allocation11], 0
    %s18 = scalar_lea.sflag [#allocation11], 1
    %19 = vsyncpa %s18, 0
    loop: start=0, step=1, limit=4
    $region2: #{_lambda_.1} parent=1 // loop_pre_header
      _
    $region3: #{_lambda_.1} parent=1 // loop_header
      %s21 = sphi 0, %s25
      %p22 = scmp.ge.s32.totalorder %s21, 4
      %s31 = sphi 0, %s33
      %s34 = sphi 0, %s31
      %s35 = sphi 0, %s34
      %s51 = sphi 0, %s35
      %s55 = sphi 0, %s55
      %s57 = sphi 0, %s55
      %s58 = sphi 0, %s57
      %s72 = sphi 0, %s58
      %s76 = sphi 0, %s76
      %s78 = sphi 0, %s76
      %s79 = sphi 0, %s78
      %s93 = sphi 0, %s79
      %s97 = sphi 0, %s97
      %s99 = sphi 0, %s97
      %s100 = sphi 0, %s99
      %s114 = sphi 0, %s100
      %s118 = sphi 0, %s118
      %s120 = sphi 0, %s118
      %s121 = sphi 0, %s120
      %s135 = sphi 0, %s121
      %s139 = sphi 0, %s139
      %s141 = sphi 0, %s139
      %s142 = sphi 0, %s141
      %s156 = sphi 0, %s142
      %s160 = sphi 0, %s160
      %s162 = sphi 0, %s160
      %s163 = sphi 0, %s162
      %s177 = sphi 0, %s163
      %s181 = sphi 0, %s181
      %s183 = sphi 0, %s181
      %s184 = sphi 0, %s183
      %s198 = sphi 0, %s184
      %s202 = sphi 0, %s202
      %s204 = sphi 0, %s202
      %s205 = sphi 0, %s204
      %s219 = sphi 0, %s205
      %s223 = sphi 0, %s223
      %s225 = sphi 0, %s223
      %s226 = sphi 0, %s225
      %s240 = sphi 0, %s226
      %s244 = sphi 0, %s244
      %s246 = sphi 0, %s244
      %s247 = sphi 0, %s246
      %s261 = sphi 0, %s247
      %s265 = sphi 0, %s265
      %s267 = sphi 0, %s265
      %s268 = sphi 0, %s267
      %s282 = sphi 0, %s268
      %s288 = sphi 0, %s290
      %s291 = sphi 0, %s288
      %s292 = sphi 0, %s291
      %s308 = sphi 0, %s292
    $region4: #{_lambda_.1} parent=1 // loop_header_branch
      %24 = sbr.rel (%p22) target = $region8
    $region5: #{_lambda_.1} parent=1 // loop_body
      %s26 = ssub.s32 %s21, 1
      %s27 = ssub.s32 %s21, 2
      %s28 = sadd.s32 %s21, 1
      %s29 = ssub.s32 %s21, %s28
      %p30 = scmp.eq.s32.totalorder %s29, 0
      %s32 = sadd.s32 %s31, 1
      %s33 = scalar_select %p30, %s31, %s32
      %p36 = pneg %p30
      %p37 = scmp.eq.s32.totalorder %s21, 1
      %p38 = por %p36, %p37
      %p39 = scmp.ne.s32.totalorder %s31, %s34
      %p40 = scmp.eq.s32.totalorder %s21, 0
      %p41 = por %p39, %p40
      %p42 = scmp.ne.s32.totalorder %s31, %s34
      %p43 = scmp.eq.s32.totalorder %s26, 1
      %p44 = por %p42, %p43
      %p45 = scmp.ne.s32.totalorder %s34, %s35
      %p46 = scmp.eq.s32.totalorder %s26, 0
      %p47 = por %p45, %p46
      %p48 = scmp.ne.s32.totalorder %s34, %s35
      %p49 = scmp.eq.s32.totalorder %s27, 1
      %p50 = por %p48, %p49
      %p52 = scmp.ne.s32.totalorder %s35, %s51
      %p53 = scmp.eq.s32.totalorder %s27, 0
      %p54 = por %p52, %p53
      %s56 = sadd.s32 %s55, 1
      %p59 = scmp.eq.s32.totalorder %s21, 1
      %p60 = scmp.ne.s32.totalorder %s55, %s57
      %p61 = scmp.eq.s32.totalorder %s21, 0
      %p62 = por %p60, %p61
      %p63 = scmp.ne.s32.totalorder %s55, %s57
      %p64 = scmp.eq.s32.totalorder %s26, 1
      %p65 = por %p63, %p64
      %p66 = scmp.ne.s32.totalorder %s57, %s58
      %p67 = scmp.eq.s32.totalorder %s26, 0
      %p68 = por %p66, %p67
      %p69 = scmp.ne.s32.totalorder %s57, %s58
      %p70 = scmp.eq.s32.totalorder %s27, 1
      %p71 = por %p69, %p70
      %p73 = scmp.ne.s32.totalorder %s58, %s72
      %p74 = scmp.eq.s32.totalorder %s27, 0
      %p75 = por %p73, %p74
      %s77 = sadd.s32 %s76, 1
      %p80 = scmp.eq.s32.totalorder %s21, 1
      %p81 = scmp.ne.s32.totalorder %s76, %s78
      %p82 = scmp.eq.s32.totalorder %s21, 0
      %p83 = por %p81, %p82
      %p84 = scmp.ne.s32.totalorder %s76, %s78
      %p85 = scmp.eq.s32.totalorder %s26, 1
      %p86 = por %p84, %p85
      %p87 = scmp.ne.s32.totalorder %s78, %s79
      %p88 = scmp.eq.s32.totalorder %s26, 0
      %p89 = por %p87, %p88
      %p90 = scmp.ne.s32.totalorder %s78, %s79
      %p91 = scmp.eq.s32.totalorder %s27, 1
      %p92 = por %p90, %p91
      %p94 = scmp.ne.s32.totalorder %s79, %s93
      %p95 = scmp.eq.s32.totalorder %s27, 0
      %p96 = por %p94, %p95
      %s98 = sadd.s32 %s97, 1
      %p101 = scmp.eq.s32.totalorder %s21, 1
      %p102 = scmp.ne.s32.totalorder %s97, %s99
      %p103 = scmp.eq.s32.totalorder %s21, 0
      %p104 = por %p102, %p103
      %p105 = scmp.ne.s32.totalorder %s97, %s99
      %p106 = scmp.eq.s32.totalorder %s26, 1
      %p107 = por %p105, %p106
      %p108 = scmp.ne.s32.totalorder %s99, %s100
      %p109 = scmp.eq.s32.totalorder %s26, 0
      %p110 = por %p108, %p109
      %p111 = scmp.ne.s32.totalorder %s99, %s100
      %p112 = scmp.eq.s32.totalorder %s27, 1
      %p113 = por %p111, %p112
      %p115 = scmp.ne.s32.totalorder %s100, %s114
      %p116 = scmp.eq.s32.totalorder %s27, 0
      %p117 = por %p115, %p116
      %s119 = sadd.s32 %s118, 1
      %p122 = scmp.eq.s32.totalorder %s21, 1
      %p123 = scmp.ne.s32.totalorder %s118, %s120
      %p124 = scmp.eq.s32.totalorder %s21, 0
      %p125 = por %p123, %p124
      %p126 = scmp.ne.s32.totalorder %s118, %s120
      %p127 = scmp.eq.s32.totalorder %s26, 1
      %p128 = por %p126, %p127
      %p129 = scmp.ne.s32.totalorder %s120, %s121
      %p130 = scmp.eq.s32.totalorder %s26, 0
      %p131 = por %p129, %p130
      %p132 = scmp.ne.s32.totalorder %s120, %s121
      %p133 = scmp.eq.s32.totalorder %s27, 1
      %p134 = por %p132, %p133
      %p136 = scmp.ne.s32.totalorder %s121, %s135
      %p137 = scmp.eq.s32.totalorder %s27, 0
      %p138 = por %p136, %p137
      %s140 = sadd.s32 %s139, 1
      %p143 = scmp.eq.s32.totalorder %s21, 1
      %p144 = scmp.ne.s32.totalorder %s139, %s141
      %p145 = scmp.eq.s32.totalorder %s21, 0
      %p146 = por %p144, %p145
      %p147 = scmp.ne.s32.totalorder %s139, %s141
      %p148 = scmp.eq.s32.totalorder %s26, 1
      %p149 = por %p147, %p148
      %p150 = scmp.ne.s32.totalorder %s141, %s142
      %p151 = scmp.eq.s32.totalorder %s26, 0
      %p152 = por %p150, %p151
      %p153 = scmp.ne.s32.totalorder %s141, %s142
      %p154 = scmp.eq.s32.totalorder %s27, 1
      %p155 = por %p153, %p154
      %p157 = scmp.ne.s32.totalorder %s142, %s156
      %p158 = scmp.eq.s32.totalorder %s27, 0
      %p159 = por %p157, %p158
      %s161 = sadd.s32 %s160, 1
      %p164 = scmp.eq.s32.totalorder %s21, 1
      %p165 = scmp.ne.s32.totalorder %s160, %s162
      %p166 = scmp.eq.s32.totalorder %s21, 0
      %p167 = por %p165, %p166
      %p168 = scmp.ne.s32.totalorder %s160, %s162
      %p169 = scmp.eq.s32.totalorder %s26, 1
      %p170 = por %p168, %p169
      %p171 = scmp.ne.s32.totalorder %s162, %s163
      %p172 = scmp.eq.s32.totalorder %s26, 0
      %p173 = por %p171, %p172
      %p174 = scmp.ne.s32.totalorder %s162, %s163
      %p175 = scmp.eq.s32.totalorder %s27, 1
      %p176 = por %p174, %p175
      %p178 = scmp.ne.s32.totalorder %s163, %s177
      %p179 = scmp.eq.s32.totalorder %s27, 0
      %p180 = por %p178, %p179
      %s182 = sadd.s32 %s181, 1
      %p185 = scmp.eq.s32.totalorder %s21, 1
      %p186 = scmp.ne.s32.totalorder %s181, %s183
      %p187 = scmp.eq.s32.totalorder %s21, 0
      %p188 = por %p186, %p187
      %p189 = scmp.ne.s32.totalorder %s181, %s183
      %p190 = scmp.eq.s32.totalorder %s26, 1
      %p191 = por %p189, %p190
      %p192 = scmp.ne.s32.totalorder %s183, %s184
      %p193 = scmp.eq.s32.totalorder %s26, 0
      %p194 = por %p192, %p193
      %p195 = scmp.ne.s32.totalorder %s183, %s184
      %p196 = scmp.eq.s32.totalorder %s27, 1
      %p197 = por %p195, %p196
      %p199 = scmp.ne.s32.totalorder %s184, %s198
      %p200 = scmp.eq.s32.totalorder %s27, 0
      %p201 = por %p199, %p200
      %s203 = sadd.s32 %s202, 1
      %p206 = scmp.eq.s32.totalorder %s21, 1
      %p207 = scmp.ne.s32.totalorder %s202, %s204
      %p208 = scmp.eq.s32.totalorder %s21, 0
      %p209 = por %p207, %p208
      %p210 = scmp.ne.s32.totalorder %s202, %s204
      %p211 = scmp.eq.s32.totalorder %s26, 1
      %p212 = por %p210, %p211
      %p213 = scmp.ne.s32.totalorder %s204, %s205
      %p214 = scmp.eq.s32.totalorder %s26, 0
      %p215 = por %p213, %p214
      %p216 = scmp.ne.s32.totalorder %s204, %s205
      %p217 = scmp.eq.s32.totalorder %s27, 1
      %p218 = por %p216, %p217
      %p220 = scmp.ne.s32.totalorder %s205, %s219
      %p221 = scmp.eq.s32.totalorder %s27, 0
      %p222 = por %p220, %p221
      %s224 = sadd.s32 %s223, 1
      %p227 = scmp.eq.s32.totalorder %s21, 1
      %p228 = scmp.ne.s32.totalorder %s223, %s225
      %p229 = scmp.eq.s32.totalorder %s21, 0
      %p230 = por %p228, %p229
      %p231 = scmp.ne.s32.totalorder %s223, %s225
      %p232 = scmp.eq.s32.totalorder %s26, 1
      %p233 = por %p231, %p232
      %p234 = scmp.ne.s32.totalorder %s225, %s226
      %p235 = scmp.eq.s32.totalorder %s26, 0
      %p236 = por %p234, %p235
      %p237 = scmp.ne.s32.totalorder %s225, %s226
      %p238 = scmp.eq.s32.totalorder %s27, 1
      %p239 = por %p237, %p238
      %p241 = scmp.ne.s32.totalorder %s226, %s240
      %p242 = scmp.eq.s32.totalorder %s27, 0
      %p243 = por %p241, %p242
      %s245 = sadd.s32 %s244, 1
      %p248 = scmp.eq.s32.totalorder %s21, 1
      %p249 = scmp.ne.s32.totalorder %s244, %s246
      %p250 = scmp.eq.s32.totalorder %s21, 0
      %p251 = por %p249, %p250
      %p252 = scmp.ne.s32.totalorder %s244, %s246
      %p253 = scmp.eq.s32.totalorder %s26, 1
      %p254 = por %p252, %p253
      %p255 = scmp.ne.s32.totalorder %s246, %s247
      %p256 = scmp.eq.s32.totalorder %s26, 0
      %p257 = por %p255, %p256
      %p258 = scmp.ne.s32.totalorder %s246, %s247
      %p259 = scmp.eq.s32.totalorder %s27, 1
      %p260 = por %p258, %p259
      %p262 = scmp.ne.s32.totalorder %s247, %s261
      %p263 = scmp.eq.s32.totalorder %s27, 0
      %p264 = por %p262, %p263
      %s266 = sadd.s32 %s265, 1
      %p269 = scmp.eq.s32.totalorder %s21, 1
      %p270 = scmp.ne.s32.totalorder %s265, %s267
      %p271 = scmp.eq.s32.totalorder %s21, 0
      %p272 = por %p270, %p271
      %p273 = scmp.ne.s32.totalorder %s265, %s267
      %p274 = scmp.eq.s32.totalorder %s26, 1
      %p275 = por %p273, %p274
      %p276 = scmp.ne.s32.totalorder %s267, %s268
      %p277 = scmp.eq.s32.totalorder %s26, 0
      %p278 = por %p276, %p277
      %p279 = scmp.ne.s32.totalorder %s267, %s268
      %p280 = scmp.eq.s32.totalorder %s27, 1
      %p281 = por %p279, %p280
      %p283 = scmp.ne.s32.totalorder %s268, %s282
      %p284 = scmp.eq.s32.totalorder %s27, 0
      %p285 = por %p283, %p284
      %s286 = ssub.s32 %s21, %s28
      %p287 = scmp.eq.s32.totalorder %s286, 0
      %s289 = sadd.s32 %s288, 1
      %s290 = scalar_select %p287, %s288, %s289
      %p293 = pneg %p287
      %p294 = scmp.eq.s32.totalorder %s21, 1
      %p295 = por %p293, %p294
      %p296 = scmp.ne.s32.totalorder %s288, %s291
      %p297 = scmp.eq.s32.totalorder %s21, 0
      %p298 = por %p296, %p297
      %p299 = scmp.ne.s32.totalorder %s288, %s291
      %p300 = scmp.eq.s32.totalorder %s26, 1
      %p301 = por %p299, %p300
      %p302 = scmp.ne.s32.totalorder %s291, %s292
      %p303 = scmp.eq.s32.totalorder %s26, 0
      %p304 = por %p302, %p303
      %p305 = scmp.ne.s32.totalorder %s291, %s292
      %p306 = scmp.eq.s32.totalorder %s27, 1
      %p307 = por %p305, %p306
      %p309 = scmp.ne.s32.totalorder %s292, %s308
      %p310 = scmp.eq.s32.totalorder %s27, 0
      %p311 = por %p309, %p310
      %p312 = scmp.le.s32.totalorder 1, %s21
      %p313 = scmp.lt.s32.totalorder %s21, 3
      %p314 = pnand %p312, %p313
      %p315 = pneg %p314
      // Predicated region
      $region9: #{_lambda_.1} parent=5 // pred_check
        _
      $region10: #{_lambda_.1} parent=5 // pred_check_branch
        %317 = sbr.rel (%p314) target = $region12
      $region11: #{_lambda_.1} parent=5 // pred_region
        %s318 = ssub.s32 %s21, 1
        // Predicated region
        $region13: #{_lambda_.1} parent=11 // pred_check
          %p319 = pneg %p68
        $region14: #{_lambda_.1} parent=11 // pred_check_branch
          %321 = sbr.rel (%p319) target = $region16
        $region15: #{_lambda_.1} parent=11 // pred_region
          _
        $region16: #{_lambda_.1} parent=11 // pred_fallthru
          _
        // Predicated region
        $region17: #{_lambda_.1} parent=11 // pred_check
          %p322 = pneg %p89
        $region18: #{_lambda_.1} parent=11 // pred_check_branch
          %324 = sbr.rel (%p322) target = $region20
        $region19: #{_lambda_.1} parent=11 // pred_region
          _
        $region20: #{_lambda_.1} parent=11 // pred_fallthru
          _
        // Predicated region
        $region21: #{_lambda_.1} parent=11 // pred_check
          %p325 = pneg %p110
        $region22: #{_lambda_.1} parent=11 // pred_check_branch
          %327 = sbr.rel (%p325) target = $region24
        $region23: #{_lambda_.1} parent=11 // pred_region
          _
        $region24: #{_lambda_.1} parent=11 // pred_fallthru
          _
        // Predicated region
        $region25: #{_lambda_.1} parent=11 // pred_check
          %p328 = pneg %p131
        $region26: #{_lambda_.1} parent=11 // pred_check_branch
          %330 = sbr.rel (%p328) target = $region28
        $region27: #{_lambda_.1} parent=11 // pred_region
          _
        $region28: #{_lambda_.1} parent=11 // pred_fallthru
          _
        // Predicated region
        $region29: #{_lambda_.1} parent=11 // pred_check
          %p331 = pneg %p152
        $region30: #{_lambda_.1} parent=11 // pred_check_branch
          %333 = sbr.rel (%p331) target = $region32
        $region31: #{_lambda_.1} parent=11 // pred_region
          _
        $region32: #{_lambda_.1} parent=11 // pred_fallthru
          _
        // Predicated region
        $region33: #{_lambda_.1} parent=11 // pred_check
          %p334 = pneg %p173
        $region34: #{_lambda_.1} parent=11 // pred_check_branch
          %336 = sbr.rel (%p334) target = $region36
        $region35: #{_lambda_.1} parent=11 // pred_region
          _
        $region36: #{_lambda_.1} parent=11 // pred_fallthru
          _
        // Predicated region
        $region37: #{_lambda_.1} parent=11 // pred_check
          %p337 = pneg %p194
        $region38: #{_lambda_.1} parent=11 // pred_check_branch
          %339 = sbr.rel (%p337) target = $region40
        $region39: #{_lambda_.1} parent=11 // pred_region
          _
        $region40: #{_lambda_.1} parent=11 // pred_fallthru
          _
        // Predicated region
        $region41: #{_lambda_.1} parent=11 // pred_check
          %p340 = pneg %p215
        $region42: #{_lambda_.1} parent=11 // pred_check_branch
          %342 = sbr.rel (%p340) target = $region44
        $region43: #{_lambda_.1} parent=11 // pred_region
          _
        $region44: #{_lambda_.1} parent=11 // pred_fallthru
          _
        // Predicated region
        $region45: #{_lambda_.1} parent=11 // pred_check
          %p343 = pneg %p236
        $region46: #{_lambda_.1} parent=11 // pred_check_branch
          %345 = sbr.rel (%p343) target = $region48
        $region47: #{_lambda_.1} parent=11 // pred_region
          _
        $region48: #{_lambda_.1} parent=11 // pred_fallthru
          _
        // Predicated region
        $region49: #{_lambda_.1} parent=11 // pred_check
          %p346 = pneg %p257
        $region50: #{_lambda_.1} parent=11 // pred_check_branch
          %348 = sbr.rel (%p346) target = $region52
        $region51: #{_lambda_.1} parent=11 // pred_region
          _
        $region52: #{_lambda_.1} parent=11 // pred_fallthru
          _
        // Predicated region
        $region53: #{_lambda_.1} parent=11 // pred_check
          %p349 = pneg %p278
        $region54: #{_lambda_.1} parent=11 // pred_check_branch
          %351 = sbr.rel (%p349) target = $region56
        $region55: #{_lambda_.1} parent=11 // pred_region
          _
        $region56: #{_lambda_.1} parent=11 // pred_fallthru
          _
      $region12: #{_lambda_.1} parent=5 // pred_fallthru
        _
      %p352 = scmp.lt.s32.totalorder %s21, 2
      // Predicated region
      $region57: #{_lambda_.1} parent=5 // pred_check
        %p353 = pneg %p352
      $region58: #{_lambda_.1} parent=5 // pred_check_branch
        %355 = sbr.rel (%p353) target = $region60
      $region59: #{_lambda_.1} parent=5 // pred_region
        // Predicated region
        $region61: #{_lambda_.1} parent=59 // pred_check
          %p356 = pneg %p41
        $region62: #{_lambda_.1} parent=59 // pred_check_branch
          %358 = sbr.rel (%p356) target = $region64
        $region63: #{_lambda_.1} parent=59 // pred_region
          %p359 = scmp.lt.s32.totalorder %s21, 1
          %s360 = scalar_select %p359, %s21, 1
          %s361 = smul.addr %s360, 54
          %s362 = smul.addr %s361, 8
          %s363 = scalar_lea.vmem %s0, %s362
        $region64: #{_lambda_.1} parent=59 // pred_fallthru
          _
      $region60: #{_lambda_.1} parent=5 // pred_fallthru
        _
      %p364 = scmp.le.s32.totalorder 1, %s21
      %p365 = scmp.lt.s32.totalorder %s21, 3
      %p366 = pnand %p364, %p365
      %p367 = pneg %p366
      // Predicated region
      $region65: #{_lambda_.1} parent=5 // pred_check
        _
      $region66: #{_lambda_.1} parent=5 // pred_check_branch
        %369 = sbr.rel (%p366) target = $region68
      $region67: #{_lambda_.1} parent=5 // pred_region
        %s370 = ssub.s32 %s21, 1
        %p371 = scmp.lt.s32.totalorder %s26, 1
        %s372 = scalar_select %p371, %s26, 1
        %s373 = smul.addr %s372, 54
        %s374 = smul.addr %s373, 8
        %s375 = scalar_lea.vmem %s0, %s374
        %p376 = pneg %p47
        %p377 = pneg %p44
        %p378 = pneg %p68
        %p379 = pneg %p65
        %p380 = pneg %p89
        %p381 = pneg %p86
        %p382 = pneg %p110
        %p383 = pneg %p107
        %p384 = pneg %p131
        %p385 = pneg %p128
        %p386 = pneg %p152
        %p387 = pneg %p149
        %p388 = pneg %p173
        %p389 = pneg %p170
        %p390 = pneg %p194
        %p391 = pneg %p191
        %p392 = pneg %p215
        %p393 = pneg %p212
        %p394 = pneg %p236
        %p395 = pneg %p233
        %p396 = pneg %p257
        %p397 = pneg %p254
        %p398 = pneg %p278
        %p399 = pneg %p275
        %p400 = pneg %p304
        %p401 = pneg %p301
        %s402 = sand.u32 %s291, 1
        %s403 = scalar_lea.sflag [#allocation11], %s402
        %s404 = sand.u32 %s291, 1
        %s405 = scalar_lea.vmem [#allocation10], %s404
        %p406 = scmp.lt.s32.totalorder %s26, 1
        %s407 = scalar_select %p406, %s26, 1
        %s408 = smul.addr %s407, 54
        %s409 = smul.addr %s408, 8
        %s410 = scalar_lea.vmem %s0, %s409
        %v411 = vld [vmem:[%s410] sm:$0xff]
        %v412 = vld [vmem:[%s410 + $0x8] sm:$0xff]
        %v413 = vld [vmem:[%s410 + $0x18] sm:$0xff]
        %v414 = vld [vmem:[%s410 + $0x20] sm:$0xff]
        %v415 = vld [vmem:[%s410 + $0x30] sm:$0xff]
        %v416 = vld [vmem:[%s410 + $0x38] sm:$0xff]
        %v417 = vld [vmem:[%s410 + $0x48] sm:$0xff]
        %v418 = vld [vmem:[%s410 + $0x50] sm:$0xff]
        %v419 = vld [vmem:[%s410 + $0x60] sm:$0xff]
        %v420 = vld [vmem:[%s410 + $0x68] sm:$0xff]
        %v421 = vld [vmem:[%s410 + $0x78] sm:$0xff]
        %v422 = vld [vmem:[%s410 + $0x80] sm:$0xff]
        %v423 = vld [vmem:[%s410 + $0x90] sm:$0xff]
        %v424 = vld [vmem:[%s410 + $0x98] sm:$0xff]
        %v425 = vld [vmem:[%s410 + $0xa8] sm:$0xff]
        %v426 = vld [vmem:[%s410 + $0xb0] sm:$0xff]
        %v427 = vld [vmem:[%s410 + $0xc0] sm:$0xff]
        %v428 = vld [vmem:[%s410 + $0xc8] sm:$0xff]
        %v429 = vld [vmem:[%s410 + $0xd8] sm:$0xff]
        %v430 = vld [vmem:[%s410 + $0xe0] sm:$0xff]
        %v431 = vld [vmem:[%s410 + $0xf0] sm:$0xff]
        %v432 = vld [vmem:[%s410 + $0xf8] sm:$0xff]
        %v433 = vld [vmem:[%s410 + $0x108] sm:$0xff]
        %v434 = vld [vmem:[%s410 + $0x110] sm:$0xff]
        %v435 = vld [vmem:[%s410 + $0x120] sm:$0xff]
        %v436 = vld [vmem:[%s410 + $0x128] sm:$0xff]
        %v437 = vld [vmem:[%s410 + $0x138] sm:$0xff]
        %v438 = vld [vmem:[%s410 + $0x140] sm:$0xff]
        %v439 = vld [vmem:[%s410 + $0x150] sm:$0xff]
        %v440 = vld [vmem:[%s410 + $0x158] sm:$0xff]
        %v441 = vld [vmem:[%s410 + $0x168] sm:$0xff]
        %v442 = vld [vmem:[%s410 + $0x170] sm:$0xff]
        %v443 = vld [vmem:[%s410 + $0x1] sm:$0xff]
        %v444 = vld [vmem:[%s410 + $0x9] sm:$0xff]
        %v445 = vld [vmem:[%s410 + $0x19] sm:$0xff]
        %v446 = vld [vmem:[%s410 + $0x21] sm:$0xff]
        %v447 = vld [vmem:[%s410 + $0x31] sm:$0xff]
        %v448 = vld [vmem:[%s410 + $0x39] sm:$0xff]
        %v449 = vld [vmem:[%s410 + $0x49] sm:$0xff]
        %v450 = vld [vmem:[%s410 + $0x51] sm:$0xff]
        %v451 = vld [vmem:[%s410 + $0x61] sm:$0xff]
        %v452 = vld [vmem:[%s410 + $0x69] sm:$0xff]
        %v453 = vld [vmem:[%s410 + $0x79] sm:$0xff]
        %v454 = vld [vmem:[%s410 + $0x81] sm:$0xff]
        %v455 = vld [vmem:[%s410 + $0x91] sm:$0xff]
        %v456 = vld [vmem:[%s410 + $0x99] sm:$0xff]
        %v457 = vld [vmem:[%s410 + $0xa9] sm:$0xff]
        %v458 = vld [vmem:[%s410 + $0xb1] sm:$0xff]
        %v459 = vld [vmem:[%s410 + $0xc1] sm:$0xff]
        %v460 = vld [vmem:[%s410 + $0xc9] sm:$0xff]
        %v461 = vld [vmem:[%s410 + $0xd9] sm:$0xff]
        %v462 = vld [vmem:[%s410 + $0xe1] sm:$0xff]
        %v463 = vld [vmem:[%s410 + $0xf1] sm:$0xff]
        %v464 = vld [vmem:[%s410 + $0xf9] sm:$0xff]
        %v465 = vld [vmem:[%s410 + $0x109] sm:$0xff]
        %v466 = vld [vmem:[%s410 + $0x111] sm:$0xff]
        %v467 = vld [vmem:[%s410 + $0x121] sm:$0xff]
        %v468 = vld [vmem:[%s410 + $0x129] sm:$0xff]
        %v469 = vld [vmem:[%s410 + $0x139] sm:$0xff]
        %v470 = vld [vmem:[%s410 + $0x141] sm:$0xff]
        %v471 = vld [vmem:[%s410 + $0x151] sm:$0xff]
        %v472 = vld [vmem:[%s410 + $0x159] sm:$0xff]
        %v473 = vld [vmem:[%s410 + $0x169] sm:$0xff]
        %v474 = vld [vmem:[%s410 + $0x171] sm:$0xff]
        %v475 = vld [vmem:[%s410 + $0x2] sm:$0xff]
        %v476 = vld [vmem:[%s410 + $0xa] sm:$0xff]
        %v477 = vld [vmem:[%s410 + $0x1a] sm:$0xff]
        %v478 = vld [vmem:[%s410 + $0x22] sm:$0xff]
        %v479 = vld [vmem:[%s410 + $0x32] sm:$0xff]
        %v480 = vld [vmem:[%s410 + $0x3a] sm:$0xff]
        %v481 = vld [vmem:[%s410 + $0x4a] sm:$0xff]
        %v482 = vld [vmem:[%s410 + $0x52] sm:$0xff]
        %v483 = vld [vmem:[%s410 + $0x62] sm:$0xff]
        %v484 = vld [vmem:[%s410 + $0x6a] sm:$0xff]
        %v485 = vld [vmem:[%s410 + $0x7a] sm:$0xff]
        %v486 = vld [vmem:[%s410 + $0x82] sm:$0xff]
        %v487 = vld [vmem:[%s410 + $0x92] sm:$0xff]
        %v488 = vld [vmem:[%s410 + $0x9a] sm:$0xff]
        %v489 = vld [vmem:[%s410 + $0xaa] sm:$0xff]
        %v490 = vld [vmem:[%s410 + $0xb2] sm:$0xff]
        %v491 = vld [vmem:[%s410 + $0xc2] sm:$0xff]
        %v492 = vld [vmem:[%s410 + $0xca] sm:$0xff]
        %v493 = vld [vmem:[%s410 + $0xda] sm:$0xff]
        %v494 = vld [vmem:[%s410 + $0xe2] sm:$0xff]
        %v495 = vld [vmem:[%s410 + $0xf2] sm:$0xff]
        %v496 = vld [vmem:[%s410 + $0xfa] sm:$0xff]
        %v497 = vld [vmem:[%s410 + $0x10a] sm:$0xff]
        %v498 = vld [vmem:[%s410 + $0x112] sm:$0xff]
        %v499 = vld [vmem:[%s410 + $0x122] sm:$0xff]
        %v500 = vld [vmem:[%s410 + $0x12a] sm:$0xff]
        %v501 = vld [vmem:[%s410 + $0x13a] sm:$0xff]
        %v502 = vld [vmem:[%s410 + $0x142] sm:$0xff]
        %v503 = vld [vmem:[%s410 + $0x152] sm:$0xff]
        %v504 = vld [vmem:[%s410 + $0x15a] sm:$0xff]
        %v505 = vld [vmem:[%s410 + $0x16a] sm:$0xff]
        %v506 = vld [vmem:[%s410 + $0x172] sm:$0xff]
        %s507 = scalar_lea.vmem %s410, 24
        %v508 = vld [vmem:[%s507] sm:$0xff]
        %v509 = vld [vmem:[%s507 + $0x8] sm:$0xff]
        %v510 = vld [vmem:[%s507 + $0x18] sm:$0xff]
        %v511 = vld [vmem:[%s507 + $0x20] sm:$0xff]
        %v512 = vld [vmem:[%s507 + $0x30] sm:$0xff]
        %v513 = vld [vmem:[%s507 + $0x38] sm:$0xff]
        %v514 = vld [vmem:[%s507 + $0x48] sm:$0xff]
        %v515 = vld [vmem:[%s507 + $0x50] sm:$0xff]
        %v516 = vld [vmem:[%s507 + $0x60] sm:$0xff]
        %v517 = vld [vmem:[%s507 + $0x68] sm:$0xff]
        %v518 = vld [vmem:[%s507 + $0x78] sm:$0xff]
        %v519 = vld [vmem:[%s507 + $0x80] sm:$0xff]
        %v520 = vld [vmem:[%s507 + $0x90] sm:$0xff]
        %v521 = vld [vmem:[%s507 + $0x98] sm:$0xff]
        %v522 = vld [vmem:[%s507 + $0xa8] sm:$0xff]
        %v523 = vld [vmem:[%s507 + $0xb0] sm:$0xff]
        %v524 = vld [vmem:[%s507 + $0xc0] sm:$0xff]
        %v525 = vld [vmem:[%s507 + $0xc8] sm:$0xff]
        %v526 = vld [vmem:[%s507 + $0xd8] sm:$0xff]
        %v527 = vld [vmem:[%s507 + $0xe0] sm:$0xff]
        %v528 = vld [vmem:[%s507 + $0xf0] sm:$0xff]
        %v529 = vld [vmem:[%s507 + $0xf8] sm:$0xff]
        %v530 = vld [vmem:[%s507 + $0x108] sm:$0xff]
        %v531 = vld [vmem:[%s507 + $0x110] sm:$0xff]
        %v532 = vld [vmem:[%s507 + $0x120] sm:$0xff]
        %v533 = vld [vmem:[%s507 + $0x128] sm:$0xff]
        %v534 = vld [vmem:[%s507 + $0x138] sm:$0xff]
        %v535 = vld [vmem:[%s507 + $0x140] sm:$0xff]
        %v536 = vld [vmem:[%s507 + $0x150] sm:$0xff]
        %v537 = vld [vmem:[%s507 + $0x158] sm:$0xff]
        %v538 = vld [vmem:[%s507 + $0x168] sm:$0xff]
        %v539 = vld [vmem:[%s507 + $0x170] sm:$0xff]
        %v540 = vld [vmem:[%s507 + $0x1] sm:$0xff]
        %v541 = vld [vmem:[%s507 + $0x9] sm:$0xff]
        %v542 = vld [vmem:[%s507 + $0x19] sm:$0xff]
        %v543 = vld [vmem:[%s507 + $0x21] sm:$0xff]
        %v544 = vld [vmem:[%s507 + $0x31] sm:$0xff]
        %v545 = vld [vmem:[%s507 + $0x39] sm:$0xff]
        %v546 = vld [vmem:[%s507 + $0x49] sm:$0xff]
        %v547 = vld [vmem:[%s507 + $0x51] sm:$0xff]
        %v548 = vld [vmem:[%s507 + $0x61] sm:$0xff]
        %v549 = vld [vmem:[%s507 + $0x69] sm:$0xff]
        %v550 = vld [vmem:[%s507 + $0x79] sm:$0xff]
        %v551 = vld [vmem:[%s507 + $0x81] sm:$0xff]
        %v552 = vld [vmem:[%s507 + $0x91] sm:$0xff]
        %v553 = vld [vmem:[%s507 + $0x99] sm:$0xff]
        %v554 = vld [vmem:[%s507 + $0xa9] sm:$0xff]
        %v555 = vld [vmem:[%s507 + $0xb1] sm:$0xff]
        %v556 = vld [vmem:[%s507 + $0xc1] sm:$0xff]
        %v557 = vld [vmem:[%s507 + $0xc9] sm:$0xff]
        %v558 = vld [vmem:[%s507 + $0xd9] sm:$0xff]
        %v559 = vld [vmem:[%s507 + $0xe1] sm:$0xff]
        %v560 = vld [vmem:[%s507 + $0xf1] sm:$0xff]
        %v561 = vld [vmem:[%s507 + $0xf9] sm:$0xff]
        %v562 = vld [vmem:[%s507 + $0x109] sm:$0xff]
        %v563 = vld [vmem:[%s507 + $0x111] sm:$0xff]
        %v564 = vld [vmem:[%s507 + $0x121] sm:$0xff]
        %v565 = vld [vmem:[%s507 + $0x129] sm:$0xff]
        %v566 = vld [vmem:[%s507 + $0x139] sm:$0xff]
        %v567 = vld [vmem:[%s507 + $0x141] sm:$0xff]
        %v568 = vld [vmem:[%s507 + $0x151] sm:$0xff]
        %v569 = vld [vmem:[%s507 + $0x159] sm:$0xff]
        %v570 = vld [vmem:[%s507 + $0x169] sm:$0xff]
        %v571 = vld [vmem:[%s507 + $0x171] sm:$0xff]
        %v572 = vld [vmem:[%s507 + $0x2] sm:$0xff]
        %v573 = vld [vmem:[%s507 + $0xa] sm:$0xff]
        %v574 = vld [vmem:[%s507 + $0x1a] sm:$0xff]
        %v575 = vld [vmem:[%s507 + $0x22] sm:$0xff]
        %v576 = vld [vmem:[%s507 + $0x32] sm:$0xff]
        %v577 = vld [vmem:[%s507 + $0x3a] sm:$0xff]
        %v578 = vld [vmem:[%s507 + $0x4a] sm:$0xff]
        %v579 = vld [vmem:[%s507 + $0x52] sm:$0xff]
        %v580 = vld [vmem:[%s507 + $0x62] sm:$0xff]
        %v581 = vld [vmem:[%s507 + $0x6a] sm:$0xff]
        %v582 = vld [vmem:[%s507 + $0x7a] sm:$0xff]
        %v583 = vld [vmem:[%s507 + $0x82] sm:$0xff]
        %v584 = vld [vmem:[%s507 + $0x92] sm:$0xff]
        %v585 = vld [vmem:[%s507 + $0x9a] sm:$0xff]
        %v586 = vld [vmem:[%s507 + $0xaa] sm:$0xff]
        %v587 = vld [vmem:[%s507 + $0xb2] sm:$0xff]
        %v588 = vld [vmem:[%s507 + $0xc2] sm:$0xff]
        %v589 = vld [vmem:[%s507 + $0xca] sm:$0xff]
        %v590 = vld [vmem:[%s507 + $0xda] sm:$0xff]
        %v591 = vld [vmem:[%s507 + $0xe2] sm:$0xff]
        %v592 = vld [vmem:[%s507 + $0xf2] sm:$0xff]
        %v593 = vld [vmem:[%s507 + $0xfa] sm:$0xff]
        %v594 = vld [vmem:[%s507 + $0x10a] sm:$0xff]
        %v595 = vld [vmem:[%s507 + $0x112] sm:$0xff]
        %v596 = vld [vmem:[%s507 + $0x122] sm:$0xff]
        %v597 = vld [vmem:[%s507 + $0x12a] sm:$0xff]
        %v598 = vld [vmem:[%s507 + $0x13a] sm:$0xff]
        %v599 = vld [vmem:[%s507 + $0x142] sm:$0xff]
        %v600 = vld [vmem:[%s507 + $0x152] sm:$0xff]
        %v601 = vld [vmem:[%s507 + $0x15a] sm:$0xff]
        %v602 = vld [vmem:[%s507 + $0x16a] sm:$0xff]
        %v603 = vld [vmem:[%s507 + $0x172] sm:$0xff]
        %s604 = scalar_lea.vmem %s410, 48
        %v605 = vld [vmem:[%s604] sm:$0xff]
        %v606 = vld [vmem:[%s604 + $0x8] sm:$0xff]
        %v607 = vld [vmem:[%s604 + $0x18] sm:$0xff]
        %v608 = vld [vmem:[%s604 + $0x20] sm:$0xff]
        %v609 = vld [vmem:[%s604 + $0x30] sm:$0xff]
        %v610 = vld [vmem:[%s604 + $0x38] sm:$0xff]
        %v611 = vld [vmem:[%s604 + $0x48] sm:$0xff]
        %v612 = vld [vmem:[%s604 + $0x50] sm:$0xff]
        %v613 = vld [vmem:[%s604 + $0x60] sm:$0xff]
        %v614 = vld [vmem:[%s604 + $0x68] sm:$0xff]
        %v615 = vld [vmem:[%s604 + $0x78] sm:$0xff]
        %v616 = vld [vmem:[%s604 + $0x80] sm:$0xff]
        %v617 = vld [vmem:[%s604 + $0x90] sm:$0xff]
        %v618 = vld [vmem:[%s604 + $0x98] sm:$0xff]
        %v619 = vld [vmem:[%s604 + $0xa8] sm:$0xff]
        %v620 = vld [vmem:[%s604 + $0xb0] sm:$0xff]
        %v621 = vld [vmem:[%s604 + $0xc0] sm:$0xff]
        %v622 = vld [vmem:[%s604 + $0xc8] sm:$0xff]
        %v623 = vld [vmem:[%s604 + $0xd8] sm:$0xff]
        %v624 = vld [vmem:[%s604 + $0xe0] sm:$0xff]
        %v625 = vld [vmem:[%s604 + $0xf0] sm:$0xff]
        %v626 = vld [vmem:[%s604 + $0xf8] sm:$0xff]
        %v627 = vld [vmem:[%s604 + $0x108] sm:$0xff]
        %v628 = vld [vmem:[%s604 + $0x110] sm:$0xff]
        %v629 = vld [vmem:[%s604 + $0x120] sm:$0xff]
        %v630 = vld [vmem:[%s604 + $0x128] sm:$0xff]
        %v631 = vld [vmem:[%s604 + $0x138] sm:$0xff]
        %v632 = vld [vmem:[%s604 + $0x140] sm:$0xff]
        %v633 = vld [vmem:[%s604 + $0x150] sm:$0xff]
        %v634 = vld [vmem:[%s604 + $0x158] sm:$0xff]
        %v635 = vld [vmem:[%s604 + $0x168] sm:$0xff]
        %v636 = vld [vmem:[%s604 + $0x170] sm:$0xff]
        %v637 = vld [vmem:[%s604 + $0x1] sm:$0xff]
        %v638 = vld [vmem:[%s604 + $0x9] sm:$0xff]
        %v639 = vld [vmem:[%s604 + $0x19] sm:$0xff]
        %v640 = vld [vmem:[%s604 + $0x21] sm:$0xff]
        %v641 = vld [vmem:[%s604 + $0x31] sm:$0xff]
        %v642 = vld [vmem:[%s604 + $0x39] sm:$0xff]
        %v643 = vld [vmem:[%s604 + $0x49] sm:$0xff]
        %v644 = vld [vmem:[%s604 + $0x51] sm:$0xff]
        %v645 = vld [vmem:[%s604 + $0x61] sm:$0xff]
        %v646 = vld [vmem:[%s604 + $0x69] sm:$0xff]
        %v647 = vld [vmem:[%s604 + $0x79] sm:$0xff]
        %v648 = vld [vmem:[%s604 + $0x81] sm:$0xff]
        %v649 = vld [vmem:[%s604 + $0x91] sm:$0xff]
        %v650 = vld [vmem:[%s604 + $0x99] sm:$0xff]
        %v651 = vld [vmem:[%s604 + $0xa9] sm:$0xff]
        %v652 = vld [vmem:[%s604 + $0xb1] sm:$0xff]
        %v653 = vld [vmem:[%s604 + $0xc1] sm:$0xff]
        %v654 = vld [vmem:[%s604 + $0xc9] sm:$0xff]
        %v655 = vld [vmem:[%s604 + $0xd9] sm:$0xff]
        %v656 = vld [vmem:[%s604 + $0xe1] sm:$0xff]
        %v657 = vld [vmem:[%s604 + $0xf1] sm:$0xff]
        %v658 = vld [vmem:[%s604 + $0xf9] sm:$0xff]
        %v659 = vld [vmem:[%s604 + $0x109] sm:$0xff]
        %v660 = vld [vmem:[%s604 + $0x111] sm:$0xff]
        %v661 = vld [vmem:[%s604 + $0x121] sm:$0xff]
        %v662 = vld [vmem:[%s604 + $0x129] sm:$0xff]
        %v663 = vld [vmem:[%s604 + $0x139] sm:$0xff]
        %v664 = vld [vmem:[%s604 + $0x141] sm:$0xff]
        %v665 = vld [vmem:[%s604 + $0x151] sm:$0xff]
        %v666 = vld [vmem:[%s604 + $0x159] sm:$0xff]
        %v667 = vld [vmem:[%s604 + $0x169] sm:$0xff]
        %v668 = vld [vmem:[%s604 + $0x171] sm:$0xff]
        %v669 = vld [vmem:[%s604 + $0x2] sm:$0xff]
        %v670 = vld [vmem:[%s604 + $0xa] sm:$0xff]
        %v671 = vld [vmem:[%s604 + $0x1a] sm:$0xff]
        %v672 = vld [vmem:[%s604 + $0x22] sm:$0xff]
        %v673 = vld [vmem:[%s604 + $0x32] sm:$0xff]
        %v674 = vld [vmem:[%s604 + $0x3a] sm:$0xff]
        %v675 = vld [vmem:[%s604 + $0x4a] sm:$0xff]
        %v676 = vld [vmem:[%s604 + $0x52] sm:$0xff]
        %v677 = vld [vmem:[%s604 + $0x62] sm:$0xff]
        %v678 = vld [vmem:[%s604 + $0x6a] sm:$0xff]
        %v679 = vld [vmem:[%s604 + $0x7a] sm:$0xff]
        %v680 = vld [vmem:[%s604 + $0x82] sm:$0xff]
        %v681 = vld [vmem:[%s604 + $0x92] sm:$0xff]
        %v682 = vld [vmem:[%s604 + $0x9a] sm:$0xff]
        %v683 = vld [vmem:[%s604 + $0xaa] sm:$0xff]
        %v684 = vld [vmem:[%s604 + $0xb2] sm:$0xff]
        %v685 = vld [vmem:[%s604 + $0xc2] sm:$0xff]
        %v686 = vld [vmem:[%s604 + $0xca] sm:$0xff]
        %v687 = vld [vmem:[%s604 + $0xda] sm:$0xff]
        %v688 = vld [vmem:[%s604 + $0xe2] sm:$0xff]
        %v689 = vld [vmem:[%s604 + $0xf2] sm:$0xff]
        %v690 = vld [vmem:[%s604 + $0xfa] sm:$0xff]
        %v691 = vld [vmem:[%s604 + $0x10a] sm:$0xff]
        %v692 = vld [vmem:[%s604 + $0x112] sm:$0xff]
        %v693 = vld [vmem:[%s604 + $0x122] sm:$0xff]
        %v694 = vld [vmem:[%s604 + $0x12a] sm:$0xff]
        %v695 = vld [vmem:[%s604 + $0x13a] sm:$0xff]
        %v696 = vld [vmem:[%s604 + $0x142] sm:$0xff]
        %v697 = vld [vmem:[%s604 + $0x152] sm:$0xff]
        %v698 = vld [vmem:[%s604 + $0x15a] sm:$0xff]
        %v699 = vld [vmem:[%s604 + $0x16a] sm:$0xff]
        %v700 = vld [vmem:[%s604 + $0x172] sm:$0xff]
        %733 = vrot.lane.b32.xlu0 %v443, 3
        %v734 = vpop.permute.xlu0 %733
        %735 = vrot.lane.b32.xlu0 %v444, 3
        %v736 = vpop.permute.xlu0 %735
        %737 = vrot.lane.b32.xlu0 %v445, 3
        %v738 = vpop.permute.xlu0 %737
        %739 = vrot.lane.b32.xlu0 %v446, 3
        %v740 = vpop.permute.xlu0 %739
        %741 = vrot.lane.b32.xlu0 %v447, 3
        %v742 = vpop.permute.xlu0 %741
        %743 = vrot.lane.b32.xlu0 %v448, 3
        %v744 = vpop.permute.xlu0 %743
        %745 = vrot.lane.b32.xlu0 %v449, 3
        %v746 = vpop.permute.xlu0 %745
        %747 = vrot.lane.b32.xlu0 %v450, 3
        %v748 = vpop.permute.xlu0 %747
        %749 = vrot.lane.b32.xlu0 %v451, 3
        %v750 = vpop.permute.xlu0 %749
        %751 = vrot.lane.b32.xlu0 %v452, 3
        %v752 = vpop.permute.xlu0 %751
        %753 = vrot.lane.b32.xlu0 %v453, 3
        %v754 = vpop.permute.xlu0 %753
        %755 = vrot.lane.b32.xlu0 %v454, 3
        %v756 = vpop.permute.xlu0 %755
        %757 = vrot.lane.b32.xlu0 %v455, 3
        %v758 = vpop.permute.xlu0 %757
        %759 = vrot.lane.b32.xlu0 %v456, 3
        %v760 = vpop.permute.xlu0 %759
        %761 = vrot.lane.b32.xlu0 %v457, 3
        %v762 = vpop.permute.xlu0 %761
        %763 = vrot.lane.b32.xlu0 %v458, 3
        %v764 = vpop.permute.xlu0 %763
        %765 = vrot.lane.b32.xlu0 %v459, 3
        %v766 = vpop.permute.xlu0 %765
        %767 = vrot.lane.b32.xlu0 %v460, 3
        %v768 = vpop.permute.xlu0 %767
        %769 = vrot.lane.b32.xlu0 %v461, 3
        %v770 = vpop.permute.xlu0 %769
        %771 = vrot.lane.b32.xlu0 %v462, 3
        %v772 = vpop.permute.xlu0 %771
        %773 = vrot.lane.b32.xlu0 %v463, 3
        %v774 = vpop.permute.xlu0 %773
        %775 = vrot.lane.b32.xlu0 %v464, 3
        %v776 = vpop.permute.xlu0 %775
        %777 = vrot.lane.b32.xlu0 %v465, 3
        %v778 = vpop.permute.xlu0 %777
        %779 = vrot.lane.b32.xlu0 %v466, 3
        %v780 = vpop.permute.xlu0 %779
        %781 = vrot.lane.b32.xlu0 %v467, 3
        %v782 = vpop.permute.xlu0 %781
        %783 = vrot.lane.b32.xlu0 %v468, 3
        %v784 = vpop.permute.xlu0 %783
        %785 = vrot.lane.b32.xlu0 %v469, 3
        %v786 = vpop.permute.xlu0 %785
        %787 = vrot.lane.b32.xlu0 %v470, 3
        %v788 = vpop.permute.xlu0 %787
        %789 = vrot.lane.b32.xlu0 %v471, 3
        %v790 = vpop.permute.xlu0 %789
        %791 = vrot.lane.b32.xlu0 %v472, 3
        %v792 = vpop.permute.xlu0 %791
        %793 = vrot.lane.b32.xlu0 %v473, 3
        %v794 = vpop.permute.xlu0 %793
        %795 = vrot.lane.b32.xlu0 %v474, 3
        %v796 = vpop.permute.xlu0 %795
        %861 = vrot.lane.b32.xlu0 %v475, 6
        %v862 = vpop.permute.xlu0 %861
        %863 = vrot.lane.b32.xlu0 %v476, 6
        %v864 = vpop.permute.xlu0 %863
        %865 = vrot.lane.b32.xlu0 %v477, 6
        %v866 = vpop.permute.xlu0 %865
        %867 = vrot.lane.b32.xlu0 %v478, 6
        %v868 = vpop.permute.xlu0 %867
        %869 = vrot.lane.b32.xlu0 %v479, 6
        %v870 = vpop.permute.xlu0 %869
        %871 = vrot.lane.b32.xlu0 %v480, 6
        %v872 = vpop.permute.xlu0 %871
        %873 = vrot.lane.b32.xlu0 %v481, 6
        %v874 = vpop.permute.xlu0 %873
        %875 = vrot.lane.b32.xlu0 %v482, 6
        %v876 = vpop.permute.xlu0 %875
        %877 = vrot.lane.b32.xlu0 %v483, 6
        %v878 = vpop.permute.xlu0 %877
        %879 = vrot.lane.b32.xlu0 %v484, 6
        %v880 = vpop.permute.xlu0 %879
        %881 = vrot.lane.b32.xlu0 %v485, 6
        %v882 = vpop.permute.xlu0 %881
        %883 = vrot.lane.b32.xlu0 %v486, 6
        %v884 = vpop.permute.xlu0 %883
        %885 = vrot.lane.b32.xlu0 %v487, 6
        %v886 = vpop.permute.xlu0 %885
        %887 = vrot.lane.b32.xlu0 %v488, 6
        %v888 = vpop.permute.xlu0 %887
        %889 = vrot.lane.b32.xlu0 %v489, 6
        %v890 = vpop.permute.xlu0 %889
        %891 = vrot.lane.b32.xlu0 %v490, 6
        %v892 = vpop.permute.xlu0 %891
        %893 = vrot.lane.b32.xlu0 %v491, 6
        %v894 = vpop.permute.xlu0 %893
        %895 = vrot.lane.b32.xlu0 %v492, 6
        %v896 = vpop.permute.xlu0 %895
        %897 = vrot.lane.b32.xlu0 %v493, 6
        %v898 = vpop.permute.xlu0 %897
        %899 = vrot.lane.b32.xlu0 %v494, 6
        %v900 = vpop.permute.xlu0 %899
        %901 = vrot.lane.b32.xlu0 %v495, 6
        %v902 = vpop.permute.xlu0 %901
        %903 = vrot.lane.b32.xlu0 %v496, 6
        %v904 = vpop.permute.xlu0 %903
        %905 = vrot.lane.b32.xlu0 %v497, 6
        %v906 = vpop.permute.xlu0 %905
        %907 = vrot.lane.b32.xlu0 %v498, 6
        %v908 = vpop.permute.xlu0 %907
        %909 = vrot.lane.b32.xlu0 %v499, 6
        %v910 = vpop.permute.xlu0 %909
        %911 = vrot.lane.b32.xlu0 %v500, 6
        %v912 = vpop.permute.xlu0 %911
        %913 = vrot.lane.b32.xlu0 %v501, 6
        %v914 = vpop.permute.xlu0 %913
        %915 = vrot.lane.b32.xlu0 %v502, 6
        %v916 = vpop.permute.xlu0 %915
        %917 = vrot.lane.b32.xlu0 %v503, 6
        %v918 = vpop.permute.xlu0 %917
        %919 = vrot.lane.b32.xlu0 %v504, 6
        %v920 = vpop.permute.xlu0 %919
        %921 = vrot.lane.b32.xlu0 %v505, 6
        %v922 = vpop.permute.xlu0 %921
        %923 = vrot.lane.b32.xlu0 %v506, 6
        %v924 = vpop.permute.xlu0 %923
        %989 = vrot.lane.b32.xlu0 %v508, 9
        %v990 = vpop.permute.xlu0 %989
        %991 = vrot.lane.b32.xlu0 %v509, 9
        %v992 = vpop.permute.xlu0 %991
        %993 = vrot.lane.b32.xlu0 %v510, 9
        %v994 = vpop.permute.xlu0 %993
        %995 = vrot.lane.b32.xlu0 %v511, 9
        %v996 = vpop.permute.xlu0 %995
        %997 = vrot.lane.b32.xlu0 %v512, 9
        %v998 = vpop.permute.xlu0 %997
        %999 = vrot.lane.b32.xlu0 %v513, 9
        %v1000 = vpop.permute.xlu0 %999
        %1001 = vrot.lane.b32.xlu0 %v514, 9
        %v1002 = vpop.permute.xlu0 %1001
        %1003 = vrot.lane.b32.xlu0 %v515, 9
        %v1004 = vpop.permute.xlu0 %1003
        %1005 = vrot.lane.b32.xlu0 %v516, 9
        %v1006 = vpop.permute.xlu0 %1005
        %1007 = vrot.lane.b32.xlu0 %v517, 9
        %v1008 = vpop.permute.xlu0 %1007
        %1009 = vrot.lane.b32.xlu0 %v518, 9
        %v1010 = vpop.permute.xlu0 %1009
        %1011 = vrot.lane.b32.xlu0 %v519, 9
        %v1012 = vpop.permute.xlu0 %1011
        %1013 = vrot.lane.b32.xlu0 %v520, 9
        %v1014 = vpop.permute.xlu0 %1013
        %1015 = vrot.lane.b32.xlu0 %v521, 9
        %v1016 = vpop.permute.xlu0 %1015
        %1017 = vrot.lane.b32.xlu0 %v522, 9
        %v1018 = vpop.permute.xlu0 %1017
        %1019 = vrot.lane.b32.xlu0 %v523, 9
        %v1020 = vpop.permute.xlu0 %1019
        %1021 = vrot.lane.b32.xlu0 %v524, 9
        %v1022 = vpop.permute.xlu0 %1021
        %1023 = vrot.lane.b32.xlu0 %v525, 9
        %v1024 = vpop.permute.xlu0 %1023
        %1025 = vrot.lane.b32.xlu0 %v526, 9
        %v1026 = vpop.permute.xlu0 %1025
        %1027 = vrot.lane.b32.xlu0 %v527, 9
        %v1028 = vpop.permute.xlu0 %1027
        %1029 = vrot.lane.b32.xlu0 %v528, 9
        %v1030 = vpop.permute.xlu0 %1029
        %1031 = vrot.lane.b32.xlu0 %v529, 9
        %v1032 = vpop.permute.xlu0 %1031
        %1033 = vrot.lane.b32.xlu0 %v530, 9
        %v1034 = vpop.permute.xlu0 %1033
        %1035 = vrot.lane.b32.xlu0 %v531, 9
        %v1036 = vpop.permute.xlu0 %1035
        %1037 = vrot.lane.b32.xlu0 %v532, 9
        %v1038 = vpop.permute.xlu0 %1037
        %1039 = vrot.lane.b32.xlu0 %v533, 9
        %v1040 = vpop.permute.xlu0 %1039
        %1041 = vrot.lane.b32.xlu0 %v534, 9
        %v1042 = vpop.permute.xlu0 %1041
        %1043 = vrot.lane.b32.xlu0 %v535, 9
        %v1044 = vpop.permute.xlu0 %1043
        %1045 = vrot.lane.b32.xlu0 %v536, 9
        %v1046 = vpop.permute.xlu0 %1045
        %1047 = vrot.lane.b32.xlu0 %v537, 9
        %v1048 = vpop.permute.xlu0 %1047
        %1049 = vrot.lane.b32.xlu0 %v538, 9
        %v1050 = vpop.permute.xlu0 %1049
        %1051 = vrot.lane.b32.xlu0 %v539, 9
        %v1052 = vpop.permute.xlu0 %1051
        %1117 = vrot.lane.b32.xlu0 %v540, 12
        %v1118 = vpop.permute.xlu0 %1117
        %1119 = vrot.lane.b32.xlu0 %v541, 12
        %v1120 = vpop.permute.xlu0 %1119
        %1121 = vrot.lane.b32.xlu0 %v542, 12
        %v1122 = vpop.permute.xlu0 %1121
        %1123 = vrot.lane.b32.xlu0 %v543, 12
        %v1124 = vpop.permute.xlu0 %1123
        %1125 = vrot.lane.b32.xlu0 %v544, 12
        %v1126 = vpop.permute.xlu0 %1125
        %1127 = vrot.lane.b32.xlu0 %v545, 12
        %v1128 = vpop.permute.xlu0 %1127
        %1129 = vrot.lane.b32.xlu0 %v546, 12
        %v1130 = vpop.permute.xlu0 %1129
        %1131 = vrot.lane.b32.xlu0 %v547, 12
        %v1132 = vpop.permute.xlu0 %1131
        %1133 = vrot.lane.b32.xlu0 %v548, 12
        %v1134 = vpop.permute.xlu0 %1133
        %1135 = vrot.lane.b32.xlu0 %v549, 12
        %v1136 = vpop.permute.xlu0 %1135
        %1137 = vrot.lane.b32.xlu0 %v550, 12
        %v1138 = vpop.permute.xlu0 %1137
        %1139 = vrot.lane.b32.xlu0 %v551, 12
        %v1140 = vpop.permute.xlu0 %1139
        %1141 = vrot.lane.b32.xlu0 %v552, 12
        %v1142 = vpop.permute.xlu0 %1141
        %1143 = vrot.lane.b32.xlu0 %v553, 12
        %v1144 = vpop.permute.xlu0 %1143
        %1145 = vrot.lane.b32.xlu0 %v554, 12
        %v1146 = vpop.permute.xlu0 %1145
        %1147 = vrot.lane.b32.xlu0 %v555, 12
        %v1148 = vpop.permute.xlu0 %1147
        %1149 = vrot.lane.b32.xlu0 %v556, 12
        %v1150 = vpop.permute.xlu0 %1149
        %1151 = vrot.lane.b32.xlu0 %v557, 12
        %v1152 = vpop.permute.xlu0 %1151
        %1153 = vrot.lane.b32.xlu0 %v558, 12
        %v1154 = vpop.permute.xlu0 %1153
        %1155 = vrot.lane.b32.xlu0 %v559, 12
        %v1156 = vpop.permute.xlu0 %1155
        %1157 = vrot.lane.b32.xlu0 %v560, 12
        %v1158 = vpop.permute.xlu0 %1157
        %1159 = vrot.lane.b32.xlu0 %v561, 12
        %v1160 = vpop.permute.xlu0 %1159
        %1161 = vrot.lane.b32.xlu0 %v562, 12
        %v1162 = vpop.permute.xlu0 %1161
        %1163 = vrot.lane.b32.xlu0 %v563, 12
        %v1164 = vpop.permute.xlu0 %1163
        %1165 = vrot.lane.b32.xlu0 %v564, 12
        %v1166 = vpop.permute.xlu0 %1165
        %1167 = vrot.lane.b32.xlu0 %v565, 12
        %v1168 = vpop.permute.xlu0 %1167
        %1169 = vrot.lane.b32.xlu0 %v566, 12
        %v1170 = vpop.permute.xlu0 %1169
        %1171 = vrot.lane.b32.xlu0 %v567, 12
        %v1172 = vpop.permute.xlu0 %1171
        %1173 = vrot.lane.b32.xlu0 %v568, 12
        %v1174 = vpop.permute.xlu0 %1173
        %1175 = vrot.lane.b32.xlu0 %v569, 12
        %v1176 = vpop.permute.xlu0 %1175
        %1177 = vrot.lane.b32.xlu0 %v570, 12
        %v1178 = vpop.permute.xlu0 %1177
        %1179 = vrot.lane.b32.xlu0 %v571, 12
        %v1180 = vpop.permute.xlu0 %1179
        %1245 = vrot.lane.b32.xlu0 %v572, 15
        %v1246 = vpop.permute.xlu0 %1245
        %1247 = vrot.lane.b32.xlu0 %v573, 15
        %v1248 = vpop.permute.xlu0 %1247
        %1249 = vrot.lane.b32.xlu0 %v574, 15
        %v1250 = vpop.permute.xlu0 %1249
        %1251 = vrot.lane.b32.xlu0 %v575, 15
        %v1252 = vpop.permute.xlu0 %1251
        %1253 = vrot.lane.b32.xlu0 %v576, 15
        %v1254 = vpop.permute.xlu0 %1253
        %1255 = vrot.lane.b32.xlu0 %v577, 15
        %v1256 = vpop.permute.xlu0 %1255
        %1257 = vrot.lane.b32.xlu0 %v578, 15
        %v1258 = vpop.permute.xlu0 %1257
        %1259 = vrot.lane.b32.xlu0 %v579, 15
        %v1260 = vpop.permute.xlu0 %1259
        %1261 = vrot.lane.b32.xlu0 %v580, 15
        %v1262 = vpop.permute.xlu0 %1261
        %1263 = vrot.lane.b32.xlu0 %v581, 15
        %v1264 = vpop.permute.xlu0 %1263
        %1265 = vrot.lane.b32.xlu0 %v582, 15
        %v1266 = vpop.permute.xlu0 %1265
        %1267 = vrot.lane.b32.xlu0 %v583, 15
        %v1268 = vpop.permute.xlu0 %1267
        %1269 = vrot.lane.b32.xlu0 %v584, 15
        %v1270 = vpop.permute.xlu0 %1269
        %1271 = vrot.lane.b32.xlu0 %v585, 15
        %v1272 = vpop.permute.xlu0 %1271
        %1273 = vrot.lane.b32.xlu0 %v586, 15
        %v1274 = vpop.permute.xlu0 %1273
        %1275 = vrot.lane.b32.xlu0 %v587, 15
        %v1276 = vpop.permute.xlu0 %1275
        %1277 = vrot.lane.b32.xlu0 %v588, 15
        %v1278 = vpop.permute.xlu0 %1277
        %1279 = vrot.lane.b32.xlu0 %v589, 15
        %v1280 = vpop.permute.xlu0 %1279
        %1281 = vrot.lane.b32.xlu0 %v590, 15
        %v1282 = vpop.permute.xlu0 %1281
        %1283 = vrot.lane.b32.xlu0 %v591, 15
        %v1284 = vpop.permute.xlu0 %1283
        %1285 = vrot.lane.b32.xlu0 %v592, 15
        %v1286 = vpop.permute.xlu0 %1285
        %1287 = vrot.lane.b32.xlu0 %v593, 15
        %v1288 = vpop.permute.xlu0 %1287
        %1289 = vrot.lane.b32.xlu0 %v594, 15
        %v1290 = vpop.permute.xlu0 %1289
        %1291 = vrot.lane.b32.xlu0 %v595, 15
        %v1292 = vpop.permute.xlu0 %1291
        %1293 = vrot.lane.b32.xlu0 %v596, 15
        %v1294 = vpop.permute.xlu0 %1293
        %1295 = vrot.lane.b32.xlu0 %v597, 15
        %v1296 = vpop.permute.xlu0 %1295
        %1297 = vrot.lane.b32.xlu0 %v598, 15
        %v1298 = vpop.permute.xlu0 %1297
        %1299 = vrot.lane.b32.xlu0 %v599, 15
        %v1300 = vpop.permute.xlu0 %1299
        %1301 = vrot.lane.b32.xlu0 %v600, 15
        %v1302 = vpop.permute.xlu0 %1301
        %1303 = vrot.lane.b32.xlu0 %v601, 15
        %v1304 = vpop.permute.xlu0 %1303
        %1305 = vrot.lane.b32.xlu0 %v602, 15
        %v1306 = vpop.permute.xlu0 %1305
        %1307 = vrot.lane.b32.xlu0 %v603, 15
        %v1308 = vpop.permute.xlu0 %1307
        %1373 = vrot.lane.b32.xlu0 %v605, 18
        %v1374 = vpop.permute.xlu0 %1373
        %1375 = vrot.lane.b32.xlu0 %v606, 18
        %v1376 = vpop.permute.xlu0 %1375
        %1377 = vrot.lane.b32.xlu0 %v607, 18
        %v1378 = vpop.permute.xlu0 %1377
        %1379 = vrot.lane.b32.xlu0 %v608, 18
        %v1380 = vpop.permute.xlu0 %1379
        %1381 = vrot.lane.b32.xlu0 %v609, 18
        %v1382 = vpop.permute.xlu0 %1381
        %1383 = vrot.lane.b32.xlu0 %v610, 18
        %v1384 = vpop.permute.xlu0 %1383
        %1385 = vrot.lane.b32.xlu0 %v611, 18
        %v1386 = vpop.permute.xlu0 %1385
        %1387 = vrot.lane.b32.xlu0 %v612, 18
        %v1388 = vpop.permute.xlu0 %1387
        %1389 = vrot.lane.b32.xlu0 %v613, 18
        %v1390 = vpop.permute.xlu0 %1389
        %1391 = vrot.lane.b32.xlu0 %v614, 18
        %v1392 = vpop.permute.xlu0 %1391
        %1393 = vrot.lane.b32.xlu0 %v615, 18
        %v1394 = vpop.permute.xlu0 %1393
        %1395 = vrot.lane.b32.xlu0 %v616, 18
        %v1396 = vpop.permute.xlu0 %1395
        %1397 = vrot.lane.b32.xlu0 %v617, 18
        %v1398 = vpop.permute.xlu0 %1397
        %1399 = vrot.lane.b32.xlu0 %v618, 18
        %v1400 = vpop.permute.xlu0 %1399
        %1401 = vrot.lane.b32.xlu0 %v619, 18
        %v1402 = vpop.permute.xlu0 %1401
        %1403 = vrot.lane.b32.xlu0 %v620, 18
        %v1404 = vpop.permute.xlu0 %1403
        %1405 = vrot.lane.b32.xlu0 %v621, 18
        %v1406 = vpop.permute.xlu0 %1405
        %1407 = vrot.lane.b32.xlu0 %v622, 18
        %v1408 = vpop.permute.xlu0 %1407
        %1409 = vrot.lane.b32.xlu0 %v623, 18
        %v1410 = vpop.permute.xlu0 %1409
        %1411 = vrot.lane.b32.xlu0 %v624, 18
        %v1412 = vpop.permute.xlu0 %1411
        %1413 = vrot.lane.b32.xlu0 %v625, 18
        %v1414 = vpop.permute.xlu0 %1413
        %1415 = vrot.lane.b32.xlu0 %v626, 18
        %v1416 = vpop.permute.xlu0 %1415
        %1417 = vrot.lane.b32.xlu0 %v627, 18
        %v1418 = vpop.permute.xlu0 %1417
        %1419 = vrot.lane.b32.xlu0 %v628, 18
        %v1420 = vpop.permute.xlu0 %1419
        %1421 = vrot.lane.b32.xlu0 %v629, 18
        %v1422 = vpop.permute.xlu0 %1421
        %1423 = vrot.lane.b32.xlu0 %v630, 18
        %v1424 = vpop.permute.xlu0 %1423
        %1425 = vrot.lane.b32.xlu0 %v631, 18
        %v1426 = vpop.permute.xlu0 %1425
        %1427 = vrot.lane.b32.xlu0 %v632, 18
        %v1428 = vpop.permute.xlu0 %1427
        %1429 = vrot.lane.b32.xlu0 %v633, 18
        %v1430 = vpop.permute.xlu0 %1429
        %1431 = vrot.lane.b32.xlu0 %v634, 18
        %v1432 = vpop.permute.xlu0 %1431
        %1433 = vrot.lane.b32.xlu0 %v635, 18
        %v1434 = vpop.permute.xlu0 %1433
        %1435 = vrot.lane.b32.xlu0 %v636, 18
        %v1436 = vpop.permute.xlu0 %1435
        %1501 = vrot.lane.b32.xlu0 %v637, 21
        %v1502 = vpop.permute.xlu0 %1501
        %1503 = vrot.lane.b32.xlu0 %v638, 21
        %v1504 = vpop.permute.xlu0 %1503
        %1505 = vrot.lane.b32.xlu0 %v639, 21
        %v1506 = vpop.permute.xlu0 %1505
        %1507 = vrot.lane.b32.xlu0 %v640, 21
        %v1508 = vpop.permute.xlu0 %1507
        %1509 = vrot.lane.b32.xlu0 %v641, 21
        %v1510 = vpop.permute.xlu0 %1509
        %1511 = vrot.lane.b32.xlu0 %v642, 21
        %v1512 = vpop.permute.xlu0 %1511
        %1513 = vrot.lane.b32.xlu0 %v643, 21
        %v1514 = vpop.permute.xlu0 %1513
        %1515 = vrot.lane.b32.xlu0 %v644, 21
        %v1516 = vpop.permute.xlu0 %1515
        %1517 = vrot.lane.b32.xlu0 %v645, 21
        %v1518 = vpop.permute.xlu0 %1517
        %1519 = vrot.lane.b32.xlu0 %v646, 21
        %v1520 = vpop.permute.xlu0 %1519
        %1521 = vrot.lane.b32.xlu0 %v647, 21
        %v1522 = vpop.permute.xlu0 %1521
        %1523 = vrot.lane.b32.xlu0 %v648, 21
        %v1524 = vpop.permute.xlu0 %1523
        %1525 = vrot.lane.b32.xlu0 %v649, 21
        %v1526 = vpop.permute.xlu0 %1525
        %1527 = vrot.lane.b32.xlu0 %v650, 21
        %v1528 = vpop.permute.xlu0 %1527
        %1529 = vrot.lane.b32.xlu0 %v651, 21
        %v1530 = vpop.permute.xlu0 %1529
        %1531 = vrot.lane.b32.xlu0 %v652, 21
        %v1532 = vpop.permute.xlu0 %1531
        %1533 = vrot.lane.b32.xlu0 %v653, 21
        %v1534 = vpop.permute.xlu0 %1533
        %1535 = vrot.lane.b32.xlu0 %v654, 21
        %v1536 = vpop.permute.xlu0 %1535
        %1537 = vrot.lane.b32.xlu0 %v655, 21
        %v1538 = vpop.permute.xlu0 %1537
        %1539 = vrot.lane.b32.xlu0 %v656, 21
        %v1540 = vpop.permute.xlu0 %1539
        %1541 = vrot.lane.b32.xlu0 %v657, 21
        %v1542 = vpop.permute.xlu0 %1541
        %1543 = vrot.lane.b32.xlu0 %v658, 21
        %v1544 = vpop.permute.xlu0 %1543
        %1545 = vrot.lane.b32.xlu0 %v659, 21
        %v1546 = vpop.permute.xlu0 %1545
        %1547 = vrot.lane.b32.xlu0 %v660, 21
        %v1548 = vpop.permute.xlu0 %1547
        %1549 = vrot.lane.b32.xlu0 %v661, 21
        %v1550 = vpop.permute.xlu0 %1549
        %1551 = vrot.lane.b32.xlu0 %v662, 21
        %v1552 = vpop.permute.xlu0 %1551
        %1553 = vrot.lane.b32.xlu0 %v663, 21
        %v1554 = vpop.permute.xlu0 %1553
        %1555 = vrot.lane.b32.xlu0 %v664, 21
        %v1556 = vpop.permute.xlu0 %1555
        %1557 = vrot.lane.b32.xlu0 %v665, 21
        %v1558 = vpop.permute.xlu0 %1557
        %1559 = vrot.lane.b32.xlu0 %v666, 21
        %v1560 = vpop.permute.xlu0 %1559
        %1561 = vrot.lane.b32.xlu0 %v667, 21
        %v1562 = vpop.permute.xlu0 %1561
        %1563 = vrot.lane.b32.xlu0 %v668, 21
        %v1564 = vpop.permute.xlu0 %1563
        %1629 = vrot.lane.b32.xlu0 %v669, 24
        %v1630 = vpop.permute.xlu0 %1629
        %1631 = vrot.lane.b32.xlu0 %v670, 24
        %v1632 = vpop.permute.xlu0 %1631
        %1633 = vrot.lane.b32.xlu0 %v671, 24
        %v1634 = vpop.permute.xlu0 %1633
        %1635 = vrot.lane.b32.xlu0 %v672, 24
        %v1636 = vpop.permute.xlu0 %1635
        %1637 = vrot.lane.b32.xlu0 %v673, 24
        %v1638 = vpop.permute.xlu0 %1637
        %1639 = vrot.lane.b32.xlu0 %v674, 24
        %v1640 = vpop.permute.xlu0 %1639
        %1641 = vrot.lane.b32.xlu0 %v675, 24
        %v1642 = vpop.permute.xlu0 %1641
        %1643 = vrot.lane.b32.xlu0 %v676, 24
        %v1644 = vpop.permute.xlu0 %1643
        %1645 = vrot.lane.b32.xlu0 %v677, 24
        %v1646 = vpop.permute.xlu0 %1645
        %1647 = vrot.lane.b32.xlu0 %v678, 24
        %v1648 = vpop.permute.xlu0 %1647
        %1649 = vrot.lane.b32.xlu0 %v679, 24
        %v1650 = vpop.permute.xlu0 %1649
        %1651 = vrot.lane.b32.xlu0 %v680, 24
        %v1652 = vpop.permute.xlu0 %1651
        %1653 = vrot.lane.b32.xlu0 %v681, 24
        %v1654 = vpop.permute.xlu0 %1653
        %1655 = vrot.lane.b32.xlu0 %v682, 24
        %v1656 = vpop.permute.xlu0 %1655
        %1657 = vrot.lane.b32.xlu0 %v683, 24
        %v1658 = vpop.permute.xlu0 %1657
        %1659 = vrot.lane.b32.xlu0 %v684, 24
        %v1660 = vpop.permute.xlu0 %1659
        %1661 = vrot.lane.b32.xlu0 %v685, 24
        %v1662 = vpop.permute.xlu0 %1661
        %1663 = vrot.lane.b32.xlu0 %v686, 24
        %v1664 = vpop.permute.xlu0 %1663
        %1665 = vrot.lane.b32.xlu0 %v687, 24
        %v1666 = vpop.permute.xlu0 %1665
        %1667 = vrot.lane.b32.xlu0 %v688, 24
        %v1668 = vpop.permute.xlu0 %1667
        %1669 = vrot.lane.b32.xlu0 %v689, 24
        %v1670 = vpop.permute.xlu0 %1669
        %1671 = vrot.lane.b32.xlu0 %v690, 24
        %v1672 = vpop.permute.xlu0 %1671
        %1673 = vrot.lane.b32.xlu0 %v691, 24
        %v1674 = vpop.permute.xlu0 %1673
        %1675 = vrot.lane.b32.xlu0 %v692, 24
        %v1676 = vpop.permute.xlu0 %1675
        %1677 = vrot.lane.b32.xlu0 %v693, 24
        %v1678 = vpop.permute.xlu0 %1677
        %1679 = vrot.lane.b32.xlu0 %v694, 24
        %v1680 = vpop.permute.xlu0 %1679
        %1681 = vrot.lane.b32.xlu0 %v695, 24
        %v1682 = vpop.permute.xlu0 %1681
        %1683 = vrot.lane.b32.xlu0 %v696, 24
        %v1684 = vpop.permute.xlu0 %1683
        %1685 = vrot.lane.b32.xlu0 %v697, 24
        %v1686 = vpop.permute.xlu0 %1685
        %1687 = vrot.lane.b32.xlu0 %v698, 24
        %v1688 = vpop.permute.xlu0 %1687
        %1689 = vrot.lane.b32.xlu0 %v699, 24
        %v1690 = vpop.permute.xlu0 %1689
        %1691 = vrot.lane.b32.xlu0 %v700, 24
        %v1692 = vpop.permute.xlu0 %1691
        %vm1725 = vcmask 23552
        %v1726 = vsel %vm1725, %v411, %v734
        %v1727 = vsel %vm1725, %v412, %v736
        %v1728 = vsel %vm1725, %v413, %v738
        %v1729 = vsel %vm1725, %v414, %v740
        %v1730 = vsel %vm1725, %v415, %v742
        %v1731 = vsel %vm1725, %v416, %v744
        %v1732 = vsel %vm1725, %v417, %v746
        %v1733 = vsel %vm1725, %v418, %v748
        %v1734 = vsel %vm1725, %v419, %v750
        %v1735 = vsel %vm1725, %v420, %v752
        %v1736 = vsel %vm1725, %v421, %v754
        %v1737 = vsel %vm1725, %v422, %v756
        %v1738 = vsel %vm1725, %v423, %v758
        %v1739 = vsel %vm1725, %v424, %v760
        %v1740 = vsel %vm1725, %v425, %v762
        %v1741 = vsel %vm1725, %v426, %v764
        %v1742 = vsel %vm1725, %v427, %v766
        %v1743 = vsel %vm1725, %v428, %v768
        %v1744 = vsel %vm1725, %v429, %v770
        %v1745 = vsel %vm1725, %v430, %v772
        %v1746 = vsel %vm1725, %v431, %v774
        %v1747 = vsel %vm1725, %v432, %v776
        %v1748 = vsel %vm1725, %v433, %v778
        %v1749 = vsel %vm1725, %v434, %v780
        %v1750 = vsel %vm1725, %v435, %v782
        %v1751 = vsel %vm1725, %v436, %v784
        %v1752 = vsel %vm1725, %v437, %v786
        %v1753 = vsel %vm1725, %v438, %v788
        %v1754 = vsel %vm1725, %v439, %v790
        %v1755 = vsel %vm1725, %v440, %v792
        %v1756 = vsel %vm1725, %v441, %v794
        %v1757 = vsel %vm1725, %v442, %v796
        %vm1758 = vcmask 48128
        %v1759 = vsel %vm1758, %v1726, %v862
        %v1760 = vsel %vm1758, %v1727, %v864
        %v1761 = vsel %vm1758, %v1728, %v866
        %v1762 = vsel %vm1758, %v1729, %v868
        %v1763 = vsel %vm1758, %v1730, %v870
        %v1764 = vsel %vm1758, %v1731, %v872
        %v1765 = vsel %vm1758, %v1732, %v874
        %v1766 = vsel %vm1758, %v1733, %v876
        %v1767 = vsel %vm1758, %v1734, %v878
        %v1768 = vsel %vm1758, %v1735, %v880
        %v1769 = vsel %vm1758, %v1736, %v882
        %v1770 = vsel %vm1758, %v1737, %v884
        %v1771 = vsel %vm1758, %v1738, %v886
        %v1772 = vsel %vm1758, %v1739, %v888
        %v1773 = vsel %vm1758, %v1740, %v890
        %v1774 = vsel %vm1758, %v1741, %v892
        %v1775 = vsel %vm1758, %v1742, %v894
        %v1776 = vsel %vm1758, %v1743, %v896
        %v1777 = vsel %vm1758, %v1744, %v898
        %v1778 = vsel %vm1758, %v1745, %v900
        %v1779 = vsel %vm1758, %v1746, %v902
        %v1780 = vsel %vm1758, %v1747, %v904
        %v1781 = vsel %vm1758, %v1748, %v906
        %v1782 = vsel %vm1758, %v1749, %v908
        %v1783 = vsel %vm1758, %v1750, %v910
        %v1784 = vsel %vm1758, %v1751, %v912
        %v1785 = vsel %vm1758, %v1752, %v914
        %v1786 = vsel %vm1758, %v1753, %v916
        %v1787 = vsel %vm1758, %v1754, %v918
        %v1788 = vsel %vm1758, %v1755, %v920
        %v1789 = vsel %vm1758, %v1756, %v922
        %v1790 = vsel %vm1758, %v1757, %v924
        %vm1791 = vcmask 72704
        %v1792 = vsel %vm1791, %v1759, %v990
        %v1793 = vsel %vm1791, %v1760, %v992
        %v1794 = vsel %vm1791, %v1761, %v994
        %v1795 = vsel %vm1791, %v1762, %v996
        %v1796 = vsel %vm1791, %v1763, %v998
        %v1797 = vsel %vm1791, %v1764, %v1000
        %v1798 = vsel %vm1791, %v1765, %v1002
        %v1799 = vsel %vm1791, %v1766, %v1004
        %v1800 = vsel %vm1791, %v1767, %v1006
        %v1801 = vsel %vm1791, %v1768, %v1008
        %v1802 = vsel %vm1791, %v1769, %v1010
        %v1803 = vsel %vm1791, %v1770, %v1012
        %v1804 = vsel %vm1791, %v1771, %v1014
        %v1805 = vsel %vm1791, %v1772, %v1016
        %v1806 = vsel %vm1791, %v1773, %v1018
        %v1807 = vsel %vm1791, %v1774, %v1020
        %v1808 = vsel %vm1791, %v1775, %v1022
        %v1809 = vsel %vm1791, %v1776, %v1024
        %v1810 = vsel %vm1791, %v1777, %v1026
        %v1811 = vsel %vm1791, %v1778, %v1028
        %v1812 = vsel %vm1791, %v1779, %v1030
        %v1813 = vsel %vm1791, %v1780, %v1032
        %v1814 = vsel %vm1791, %v1781, %v1034
        %v1815 = vsel %vm1791, %v1782, %v1036
        %v1816 = vsel %vm1791, %v1783, %v1038
        %v1817 = vsel %vm1791, %v1784, %v1040
        %v1818 = vsel %vm1791, %v1785, %v1042
        %v1819 = vsel %vm1791, %v1786, %v1044
        %v1820 = vsel %vm1791, %v1787, %v1046
        %v1821 = vsel %vm1791, %v1788, %v1048
        %v1822 = vsel %vm1791, %v1789, %v1050
        %v1823 = vsel %vm1791, %v1790, %v1052
        %vm1824 = vcmask 97280
        %v1825 = vsel %vm1824, %v1792, %v1118
        %v1826 = vsel %vm1824, %v1793, %v1120
        %v1827 = vsel %vm1824, %v1794, %v1122
        %v1828 = vsel %vm1824, %v1795, %v1124
        %v1829 = vsel %vm1824, %v1796, %v1126
        %v1830 = vsel %vm1824, %v1797, %v1128
        %v1831 = vsel %vm1824, %v1798, %v1130
        %v1832 = vsel %vm1824, %v1799, %v1132
        %v1833 = vsel %vm1824, %v1800, %v1134
        %v1834 = vsel %vm1824, %v1801, %v1136
        %v1835 = vsel %vm1824, %v1802, %v1138
        %v1836 = vsel %vm1824, %v1803, %v1140
        %v1837 = vsel %vm1824, %v1804, %v1142
        %v1838 = vsel %vm1824, %v1805, %v1144
        %v1839 = vsel %vm1824, %v1806, %v1146
        %v1840 = vsel %vm1824, %v1807, %v1148
        %v1841 = vsel %vm1824, %v1808, %v1150
        %v1842 = vsel %vm1824, %v1809, %v1152
        %v1843 = vsel %vm1824, %v1810, %v1154
        %v1844 = vsel %vm1824, %v1811, %v1156
        %v1845 = vsel %vm1824, %v1812, %v1158
        %v1846 = vsel %vm1824, %v1813, %v1160
        %v1847 = vsel %vm1824, %v1814, %v1162
        %v1848 = vsel %vm1824, %v1815, %v1164
        %v1849 = vsel %vm1824, %v1816, %v1166
        %v1850 = vsel %vm1824, %v1817, %v1168
        %v1851 = vsel %vm1824, %v1818, %v1170
        %v1852 = vsel %vm1824, %v1819, %v1172
        %v1853 = vsel %vm1824, %v1820, %v1174
        %v1854 = vsel %vm1824, %v1821, %v1176
        %v1855 = vsel %vm1824, %v1822, %v1178
        %v1856 = vsel %vm1824, %v1823, %v1180
        %vm1857 = vcmask 121856
        %v1858 = vsel %vm1857, %v1825, %v1246
        %v1859 = vsel %vm1857, %v1826, %v1248
        %v1860 = vsel %vm1857, %v1827, %v1250
        %v1861 = vsel %vm1857, %v1828, %v1252
        %v1862 = vsel %vm1857, %v1829, %v1254
        %v1863 = vsel %vm1857, %v1830, %v1256
        %v1864 = vsel %vm1857, %v1831, %v1258
        %v1865 = vsel %vm1857, %v1832, %v1260
        %v1866 = vsel %vm1857, %v1833, %v1262
        %v1867 = vsel %vm1857, %v1834, %v1264
        %v1868 = vsel %vm1857, %v1835, %v1266
        %v1869 = vsel %vm1857, %v1836, %v1268
        %v1870 = vsel %vm1857, %v1837, %v1270
        %v1871 = vsel %vm1857, %v1838, %v1272
        %v1872 = vsel %vm1857, %v1839, %v1274
        %v1873 = vsel %vm1857, %v1840, %v1276
        %v1874 = vsel %vm1857, %v1841, %v1278
        %v1875 = vsel %vm1857, %v1842, %v1280
        %v1876 = vsel %vm1857, %v1843, %v1282
        %v1877 = vsel %vm1857, %v1844, %v1284
        %v1878 = vsel %vm1857, %v1845, %v1286
        %v1879 = vsel %vm1857, %v1846, %v1288
        %v1880 = vsel %vm1857, %v1847, %v1290
        %v1881 = vsel %vm1857, %v1848, %v1292
        %v1882 = vsel %vm1857, %v1849, %v1294
        %v1883 = vsel %vm1857, %v1850, %v1296
        %v1884 = vsel %vm1857, %v1851, %v1298
        %v1885 = vsel %vm1857, %v1852, %v1300
        %v1886 = vsel %vm1857, %v1853, %v1302
        %v1887 = vsel %vm1857, %v1854, %v1304
        %v1888 = vsel %vm1857, %v1855, %v1306
        %v1889 = vsel %vm1857, %v1856, %v1308
        %vm1890 = vcmask 146432
        %v1891 = vsel %vm1890, %v1858, %v1374
        %v1892 = vsel %vm1890, %v1859, %v1376
        %v1893 = vsel %vm1890, %v1860, %v1378
        %v1894 = vsel %vm1890, %v1861, %v1380
        %v1895 = vsel %vm1890, %v1862, %v1382
        %v1896 = vsel %vm1890, %v1863, %v1384
        %v1897 = vsel %vm1890, %v1864, %v1386
        %v1898 = vsel %vm1890, %v1865, %v1388
        %v1899 = vsel %vm1890, %v1866, %v1390
        %v1900 = vsel %vm1890, %v1867, %v1392
        %v1901 = vsel %vm1890, %v1868, %v1394
        %v1902 = vsel %vm1890, %v1869, %v1396
        %v1903 = vsel %vm1890, %v1870, %v1398
        %v1904 = vsel %vm1890, %v1871, %v1400
        %v1905 = vsel %vm1890, %v1872, %v1402
        %v1906 = vsel %vm1890, %v1873, %v1404
        %v1907 = vsel %vm1890, %v1874, %v1406
        %v1908 = vsel %vm1890, %v1875, %v1408
        %v1909 = vsel %vm1890, %v1876, %v1410
        %v1910 = vsel %vm1890, %v1877, %v1412
        %v1911 = vsel %vm1890, %v1878, %v1414
        %v1912 = vsel %vm1890, %v1879, %v1416
        %v1913 = vsel %vm1890, %v1880, %v1418
        %v1914 = vsel %vm1890, %v1881, %v1420
        %v1915 = vsel %vm1890, %v1882, %v1422
        %v1916 = vsel %vm1890, %v1883, %v1424
        %v1917 = vsel %vm1890, %v1884, %v1426
        %v1918 = vsel %vm1890, %v1885, %v1428
        %v1919 = vsel %vm1890, %v1886, %v1430
        %v1920 = vsel %vm1890, %v1887, %v1432
        %v1921 = vsel %vm1890, %v1888, %v1434
        %v1922 = vsel %vm1890, %v1889, %v1436
        %vm1923 = vcmask 171008
        %v1924 = vsel %vm1923, %v1891, %v1502
        %v1925 = vsel %vm1923, %v1892, %v1504
        %v1926 = vsel %vm1923, %v1893, %v1506
        %v1927 = vsel %vm1923, %v1894, %v1508
        %v1928 = vsel %vm1923, %v1895, %v1510
        %v1929 = vsel %vm1923, %v1896, %v1512
        %v1930 = vsel %vm1923, %v1897, %v1514
        %v1931 = vsel %vm1923, %v1898, %v1516
        %v1932 = vsel %vm1923, %v1899, %v1518
        %v1933 = vsel %vm1923, %v1900, %v1520
        %v1934 = vsel %vm1923, %v1901, %v1522
        %v1935 = vsel %vm1923, %v1902, %v1524
        %v1936 = vsel %vm1923, %v1903, %v1526
        %v1937 = vsel %vm1923, %v1904, %v1528
        %v1938 = vsel %vm1923, %v1905, %v1530
        %v1939 = vsel %vm1923, %v1906, %v1532
        %v1940 = vsel %vm1923, %v1907, %v1534
        %v1941 = vsel %vm1923, %v1908, %v1536
        %v1942 = vsel %vm1923, %v1909, %v1538
        %v1943 = vsel %vm1923, %v1910, %v1540
        %v1944 = vsel %vm1923, %v1911, %v1542
        %v1945 = vsel %vm1923, %v1912, %v1544
        %v1946 = vsel %vm1923, %v1913, %v1546
        %v1947 = vsel %vm1923, %v1914, %v1548
        %v1948 = vsel %vm1923, %v1915, %v1550
        %v1949 = vsel %vm1923, %v1916, %v1552
        %v1950 = vsel %vm1923, %v1917, %v1554
        %v1951 = vsel %vm1923, %v1918, %v1556
        %v1952 = vsel %vm1923, %v1919, %v1558
        %v1953 = vsel %vm1923, %v1920, %v1560
        %v1954 = vsel %vm1923, %v1921, %v1562
        %v1955 = vsel %vm1923, %v1922, %v1564
        %vm1956 = vcmask 195584
        %v1957 = vsel %vm1956, %v1924, %v1630
        %v1958 = vsel %vm1956, %v1925, %v1632
        %v1959 = vsel %vm1956, %v1926, %v1634
        %v1960 = vsel %vm1956, %v1927, %v1636
        %v1961 = vsel %vm1956, %v1928, %v1638
        %v1962 = vsel %vm1956, %v1929, %v1640
        %v1963 = vsel %vm1956, %v1930, %v1642
        %v1964 = vsel %vm1956, %v1931, %v1644
        %v1965 = vsel %vm1956, %v1932, %v1646
        %v1966 = vsel %vm1956, %v1933, %v1648
        %v1967 = vsel %vm1956, %v1934, %v1650
        %v1968 = vsel %vm1956, %v1935, %v1652
        %v1969 = vsel %vm1956, %v1936, %v1654
        %v1970 = vsel %vm1956, %v1937, %v1656
        %v1971 = vsel %vm1956, %v1938, %v1658
        %v1972 = vsel %vm1956, %v1939, %v1660
        %v1973 = vsel %vm1956, %v1940, %v1662
        %v1974 = vsel %vm1956, %v1941, %v1664
        %v1975 = vsel %vm1956, %v1942, %v1666
        %v1976 = vsel %vm1956, %v1943, %v1668
        %v1977 = vsel %vm1956, %v1944, %v1670
        %v1978 = vsel %vm1956, %v1945, %v1672
        %v1979 = vsel %vm1956, %v1946, %v1674
        %v1980 = vsel %vm1956, %v1947, %v1676
        %v1981 = vsel %vm1956, %v1948, %v1678
        %v1982 = vsel %vm1956, %v1949, %v1680
        %v1983 = vsel %vm1956, %v1950, %v1682
        %v1984 = vsel %vm1956, %v1951, %v1684
        %v1985 = vsel %vm1956, %v1952, %v1686
        %v1986 = vsel %vm1956, %v1953, %v1688
        %v1987 = vsel %vm1956, %v1954, %v1690
        %v1988 = vsel %vm1956, %v1955, %v1692
        %v1989 = vld [vmem:[%s1] sm:$0xff]
        %v1990 = vld [vmem:[%s1 + $0x8] sm:$0xff]
        %v1991 = vld [vmem:[%s1 + $0x10] sm:$0xff]
        %v1992 = vld [vmem:[%s1 + $0x18] sm:$0x7]
        %v1993 = vld [vmem:[%s2] sm:$0x1]
        %v1995 = vlaneseq
        %v1996 = vshrl.u32 %v1995, 7
        %v1997 = vsub.s32 0, %v1996
        %v1998 = vrot.slane %v1993, %v1997
        %vm2000 = vcmask 220160
        %v2002 = vsel %vm2000, %v1957, 0
        %v2005 = vsel %vm2000, %v1958, 0
        %v2008 = vsel %vm2000, %v1959, 0
        %v2011 = vsel %vm2000, %v1960, 0
        %v2014 = vsel %vm2000, %v1961, 0
        %v2017 = vsel %vm2000, %v1962, 0
        %v2020 = vsel %vm2000, %v1963, 0
        %v2023 = vsel %vm2000, %v1964, 0
        %v2026 = vsel %vm2000, %v1965, 0
        %v2029 = vsel %vm2000, %v1966, 0
        %v2032 = vsel %vm2000, %v1967, 0
        %v2035 = vsel %vm2000, %v1968, 0
        %v2038 = vsel %vm2000, %v1969, 0
        %v2041 = vsel %vm2000, %v1970, 0
        %v2044 = vsel %vm2000, %v1971, 0
        %v2047 = vsel %vm2000, %v1972, 0
        %v2050 = vsel %vm2000, %v1973, 0
        %v2053 = vsel %vm2000, %v1974, 0
        %v2056 = vsel %vm2000, %v1975, 0
        %v2059 = vsel %vm2000, %v1976, 0
        %v2062 = vsel %vm2000, %v1977, 0
        %v2065 = vsel %vm2000, %v1978, 0
        %v2068 = vsel %vm2000, %v1979, 0
        %v2071 = vsel %vm2000, %v1980, 0
        %v2074 = vsel %vm2000, %v1981, 0
        %v2077 = vsel %vm2000, %v1982, 0
        %v2080 = vsel %vm2000, %v1983, 0
        %v2083 = vsel %vm2000, %v1984, 0
        %v2086 = vsel %vm2000, %v1985, 0
        %v2089 = vsel %vm2000, %v1986, 0
        %v2092 = vsel %vm2000, %v1987, 0
        %v2095 = vsel %vm2000, %v1988, 0
        %vm2097 = vcmask 1042432
        %v2099 = vsel %vm2097, %v1992, 0
        %2101 = vmatprep.subr.mxu0 0.0
        %2102 = vmatpush1.msra.mxu0 %v1989
        %2103 = vmatprep.subr.mxu0 0.0
        %2104 = vmatpush1.msra.mxu0 %v1990
        %2105 = vmatprep.subr.mxu0 0.0
        %2106 = vmatpush1.msra.mxu0 %v1991
        %2107 = vmatprep.subr.mxu0 0.0
        %2108 = vmatpush1.msra.mxu0 %v2099
        %2109 = vmatprep.subr.mxu0 0.0
        %2110 = vmatpush1.msra.mxu0 0.0
        %2111 = vmatprep.subr.mxu0 0.0
        %2112 = vmatpush1.msra.mxu0 0.0
        %2113 = vmatprep.subr.mxu0 0.0
        %2114 = vmatpush1.msra.mxu0 0.0
        %2115 = vmatprep.subr.mxu0 0.0
        %2116 = vmatpush1.msra.mxu0 0.0
        %2117 = vmatprep.subr.mxu0 0.0
        %2118 = vmatpush1.msra.mxu0 0.0
        %2119 = vmatprep.subr.mxu0 0.0
        %2120 = vmatpush1.msra.mxu0 0.0
        %2121 = vmatprep.subr.mxu0 0.0
        %2122 = vmatpush1.msra.mxu0 0.0
        %2123 = vmatprep.subr.mxu0 0.0
        %2124 = vmatpush1.msra.mxu0 0.0
        %2125 = vmatprep.subr.mxu0 0.0
        %2126 = vmatpush1.msra.mxu0 0.0
        %2127 = vmatprep.subr.mxu0 0.0
        %2128 = vmatpush1.msra.mxu0 0.0
        %2129 = vmatprep.subr.mxu0 0.0
        %2130 = vmatpush1.msra.mxu0 0.0
        %2131 = vmatprep.subr.mxu0 0.0
        %2132 = vmatpush1.msra.mxu0 0.0
        %2133 = vmatprep.subr.mxu0 0.0
        %2134 = vmatpush1.msra.mxu0 0.0
        %2135 = vmatprep.subr.mxu0 0.0
        %2136 = vmatpush1.msra.mxu0 0.0
        %2137 = vmatprep.subr.mxu0 0.0
        %2138 = vmatpush1.msra.mxu0 0.0
        %2139 = vmatprep.subr.mxu0 0.0
        %2140 = vmatpush1.msra.mxu0 0.0
        %2141 = vmatprep.subr.mxu0 0.0
        %2142 = vmatpush1.msra.mxu0 0.0
        %2143 = vmatprep.subr.mxu0 0.0
        %2144 = vmatpush1.msra.mxu0 0.0
        %2145 = vmatprep.subr.mxu0 0.0
        %2146 = vmatpush1.msra.mxu0 0.0
        %2147 = vmatprep.subr.mxu0 0.0
        %2148 = vmatpush1.msra.mxu0 0.0
        %2149 = vmatprep.subr.mxu0 0.0
        %2150 = vmatpush1.msra.mxu0 0.0
        %2151 = vmatprep.subr.mxu0 0.0
        %2152 = vmatpush1.msra.mxu0 0.0
        %2153 = vmatprep.subr.mxu0 0.0
        %2154 = vmatpush1.msra.mxu0 0.0
        %2155 = vmatprep.subr.mxu0 0.0
        %2156 = vmatpush1.msra.mxu0 0.0
        %2157 = vmatprep.subr.mxu0 0.0
        %2158 = vmatpush1.msra.mxu0 0.0
        %2159 = vmatprep.subr.mxu0 0.0
        %2160 = vmatpush1.msra.mxu0 0.0
        %2161 = vmatprep.subr.mxu0 0.0
        %2162 = vmatpush1.msra.mxu0 0.0
        %2163 = vmatprep.subr.mxu0 0.0
        %2164 = vmatpush1.msra.mxu0 0.0
        %2165 = vmatprep.mubr.f32.mxu0 0.0
        %2166 = vmatmul.mubr.f32.gmra.mrb[0].mxu0 %v2002
        %v2167 = vpop.f32.mrb[0].mxu0
        %v2168 = vadd.f32 %v1998, %v2167
        %v2169 = vpop.f32.mrb[0].mxu0
        %2170 = vmatprep.mubr.f32.mxu0 0.0
        %2171 = vmatmul.mubr.f32.gmra.mrb[0].mxu0 %v2005
        %v2172 = vpop.f32.mrb[0].mxu0
        %v2173 = vadd.f32 %v1998, %v2172
        %v2174 = vpop.f32.mrb[0].mxu0
        %2175 = vmatprep.mubr.f32.mxu0 0.0
        %2176 = vmatmul.mubr.f32.gmra.mrb[0].mxu0 %v2008
        %v2177 = vpop.f32.mrb[0].mxu0
        %v2178 = vadd.f32 %v1998, %v2177
        %v2179 = vpop.f32.mrb[0].mxu0
        %2180 = vmatprep.mubr.f32.mxu0 0.0
        %2181 = vmatmul.mubr.f32.gmra.mrb[0].mxu0 %v2011
        %v2182 = vpop.f32.mrb[0].mxu0
        %v2183 = vadd.f32 %v1998, %v2182
        %v2184 = vpop.f32.mrb[0].mxu0
        %2185 = vmatprep.mubr.f32.mxu0 0.0
        %2186 = vmatmul.mubr.f32.gmra.mrb[0].mxu0 %v2014
        %v2187 = vpop.f32.mrb[0].mxu0
        %v2188 = vadd.f32 %v1998, %v2187
        %v2189 = vpop.f32.mrb[0].mxu0
        %2190 = vmatprep.mubr.f32.mxu0 0.0
        %2191 = vmatmul.mubr.f32.gmra.mrb[0].mxu0 %v2017
        %v2192 = vpop.f32.mrb[0].mxu0
        %v2193 = vadd.f32 %v1998, %v2192
        %v2194 = vpop.f32.mrb[0].mxu0
        %2195 = vmatprep.mubr.f32.mxu0 0.0
        %2196 = vmatmul.mubr.f32.gmra.mrb[0].mxu0 %v2020
        %v2197 = vpop.f32.mrb[0].mxu0
        %v2198 = vadd.f32 %v1998, %v2197
        %v2199 = vpop.f32.mrb[0].mxu0
        %2200 = vmatprep.mubr.f32.mxu0 0.0
        %2201 = vmatmul.mubr.f32.gmra.mrb[0].mxu0 %v2023
        %v2202 = vpop.f32.mrb[0].mxu0
        %v2203 = vadd.f32 %v1998, %v2202
        %v2204 = vpop.f32.mrb[0].mxu0
        %2205 = vmatprep.mubr.f32.mxu0 0.0
        %2206 = vmatmul.mubr.f32.gmra.mrb[0].mxu0 %v2026
        %v2207 = vpop.f32.mrb[0].mxu0
        %v2208 = vadd.f32 %v1998, %v2207
        %v2209 = vpop.f32.mrb[0].mxu0
        %2210 = vmatprep.mubr.f32.mxu0 0.0
        %2211 = vmatmul.mubr.f32.gmra.mrb[0].mxu0 %v2029
        %v2212 = vpop.f32.mrb[0].mxu0
        %v2213 = vadd.f32 %v1998, %v2212
        %v2214 = vpop.f32.mrb[0].mxu0
        %2215 = vmatprep.mubr.f32.mxu0 0.0
        %2216 = vmatmul.mubr.f32.gmra.mrb[0].mxu0 %v2032
        %v2217 = vpop.f32.mrb[0].mxu0
        %v2218 = vadd.f32 %v1998, %v2217
        %v2219 = vpop.f32.mrb[0].mxu0
        %2220 = vmatprep.mubr.f32.mxu0 0.0
        %2221 = vmatmul.mubr.f32.gmra.mrb[0].mxu0 %v2035
        %v2222 = vpop.f32.mrb[0].mxu0
        %v2223 = vadd.f32 %v1998, %v2222
        %v2224 = vpop.f32.mrb[0].mxu0
        %2225 = vmatprep.mubr.f32.mxu0 0.0
        %2226 = vmatmul.mubr.f32.gmra.mrb[0].mxu0 %v2038
        %v2227 = vpop.f32.mrb[0].mxu0
        %v2228 = vadd.f32 %v1998, %v2227
        %v2229 = vpop.f32.mrb[0].mxu0
        %2230 = vmatprep.mubr.f32.mxu0 0.0
        %2231 = vmatmul.mubr.f32.gmra.mrb[0].mxu0 %v2041
        %v2232 = vpop.f32.mrb[0].mxu0
        %v2233 = vadd.f32 %v1998, %v2232
        %v2234 = vpop.f32.mrb[0].mxu0
        %2235 = vmatprep.mubr.f32.mxu0 0.0
        %2236 = vmatmul.mubr.f32.gmra.mrb[0].mxu0 %v2044
        %v2237 = vpop.f32.mrb[0].mxu0
        %v2238 = vadd.f32 %v1998, %v2237
        %v2239 = vpop.f32.mrb[0].mxu0
        %2240 = vmatprep.mubr.f32.mxu0 0.0
        %2241 = vmatmul.mubr.f32.gmra.mrb[0].mxu0 %v2047
        %v2242 = vpop.f32.mrb[0].mxu0
        %v2243 = vadd.f32 %v1998, %v2242
        %v2244 = vpop.f32.mrb[0].mxu0
        %2245 = vmatprep.mubr.f32.mxu0 0.0
        %2246 = vmatmul.mubr.f32.gmra.mrb[0].mxu0 %v2050
        %v2247 = vpop.f32.mrb[0].mxu0
        %v2248 = vadd.f32 %v1998, %v2247
        %v2249 = vpop.f32.mrb[0].mxu0
        %2250 = vmatprep.mubr.f32.mxu0 0.0
        %2251 = vmatmul.mubr.f32.gmra.mrb[0].mxu0 %v2053
        %v2252 = vpop.f32.mrb[0].mxu0
        %v2253 = vadd.f32 %v1998, %v2252
        %v2254 = vpop.f32.mrb[0].mxu0
        %2255 = vmatprep.mubr.f32.mxu0 0.0
        %2256 = vmatmul.mubr.f32.gmra.mrb[0].mxu0 %v2056
        %v2257 = vpop.f32.mrb[0].mxu0
        %v2258 = vadd.f32 %v1998, %v2257
        %v2259 = vpop.f32.mrb[0].mxu0
        %2260 = vmatprep.mubr.f32.mxu0 0.0
        %2261 = vmatmul.mubr.f32.gmra.mrb[0].mxu0 %v2059
        %v2262 = vpop.f32.mrb[0].mxu0
        %v2263 = vadd.f32 %v1998, %v2262
        %v2264 = vpop.f32.mrb[0].mxu0
        %2265 = vmatprep.mubr.f32.mxu0 0.0
        %2266 = vmatmul.mubr.f32.gmra.mrb[0].mxu0 %v2062
        %v2267 = vpop.f32.mrb[0].mxu0
        %v2268 = vadd.f32 %v1998, %v2267
        %v2269 = vpop.f32.mrb[0].mxu0
        %2270 = vmatprep.mubr.f32.mxu0 0.0
        %2271 = vmatmul.mubr.f32.gmra.mrb[0].mxu0 %v2065
        %v2272 = vpop.f32.mrb[0].mxu0
        %v2273 = vadd.f32 %v1998, %v2272
        %v2274 = vpop.f32.mrb[0].mxu0
        %2275 = vmatprep.mubr.f32.mxu0 0.0
        %2276 = vmatmul.mubr.f32.gmra.mrb[0].mxu0 %v2068
        %v2277 = vpop.f32.mrb[0].mxu0
        %v2278 = vadd.f32 %v1998, %v2277
        %v2279 = vpop.f32.mrb[0].mxu0
        %2280 = vmatprep.mubr.f32.mxu0 0.0
        %2281 = vmatmul.mubr.f32.gmra.mrb[0].mxu0 %v2071
        %v2282 = vpop.f32.mrb[0].mxu0
        %v2283 = vadd.f32 %v1998, %v2282
        %v2284 = vpop.f32.mrb[0].mxu0
        %2285 = vmatprep.mubr.f32.mxu0 0.0
        %2286 = vmatmul.mubr.f32.gmra.mrb[0].mxu0 %v2074
        %v2287 = vpop.f32.mrb[0].mxu0
        %v2288 = vadd.f32 %v1998, %v2287
        %v2289 = vpop.f32.mrb[0].mxu0
        %2290 = vmatprep.mubr.f32.mxu0 0.0
        %2291 = vmatmul.mubr.f32.gmra.mrb[0].mxu0 %v2077
        %v2292 = vpop.f32.mrb[0].mxu0
        %v2293 = vadd.f32 %v1998, %v2292
        %v2294 = vpop.f32.mrb[0].mxu0
        %2295 = vmatprep.mubr.f32.mxu0 0.0
        %2296 = vmatmul.mubr.f32.gmra.mrb[0].mxu0 %v2080
        %v2297 = vpop.f32.mrb[0].mxu0
        %v2298 = vadd.f32 %v1998, %v2297
        %v2299 = vpop.f32.mrb[0].mxu0
        %2300 = vmatprep.mubr.f32.mxu0 0.0
        %2301 = vmatmul.mubr.f32.gmra.mrb[0].mxu0 %v2083
        %v2302 = vpop.f32.mrb[0].mxu0
        %v2303 = vadd.f32 %v1998, %v2302
        %v2304 = vpop.f32.mrb[0].mxu0
        %2305 = vmatprep.mubr.f32.mxu0 0.0
        %2306 = vmatmul.mubr.f32.gmra.mrb[0].mxu0 %v2086
        %v2307 = vpop.f32.mrb[0].mxu0
        %v2308 = vadd.f32 %v1998, %v2307
        %v2309 = vpop.f32.mrb[0].mxu0
        %2310 = vmatprep.mubr.f32.mxu0 0.0
        %2311 = vmatmul.mubr.f32.gmra.mrb[0].mxu0 %v2089
        %v2312 = vpop.f32.mrb[0].mxu0
        %v2313 = vadd.f32 %v1998, %v2312
        %v2314 = vpop.f32.mrb[0].mxu0
        %2315 = vmatprep.mubr.f32.mxu0 0.0
        %2316 = vmatmul.mubr.f32.gmra.mrb[0].mxu0 %v2092
        %v2317 = vpop.f32.mrb[0].mxu0
        %v2318 = vadd.f32 %v1998, %v2317
        %v2319 = vpop.f32.mrb[0].mxu0
        %2320 = vmatprep.mubr.f32.mxu0 0.0
        %2321 = vmatmul.mubr.f32.gmra.mrb[0].mxu0 %v2095
        %v2322 = vpop.f32.mrb[0].mxu0
        %v2323 = vadd.f32 %v1998, %v2322
        %v2324 = vpop.f32.mrb[0].mxu0
        %2325 = vdwg.mxu0
        %v2326 = vmax.f32 %v2168, 0.0
        %v2327 = vmax.f32 %v2173, 0.0
        %v2328 = vmax.f32 %v2178, 0.0
        %v2329 = vmax.f32 %v2183, 0.0
        %v2330 = vmax.f32 %v2188, 0.0
        %v2331 = vmax.f32 %v2193, 0.0
        %v2332 = vmax.f32 %v2198, 0.0
        %v2333 = vmax.f32 %v2203, 0.0
        %v2334 = vmax.f32 %v2208, 0.0
        %v2335 = vmax.f32 %v2213, 0.0
        %v2336 = vmax.f32 %v2218, 0.0
        %v2337 = vmax.f32 %v2223, 0.0
        %v2338 = vmax.f32 %v2228, 0.0
        %v2339 = vmax.f32 %v2233, 0.0
        %v2340 = vmax.f32 %v2238, 0.0
        %v2341 = vmax.f32 %v2243, 0.0
        %v2342 = vmax.f32 %v2248, 0.0
        %v2343 = vmax.f32 %v2253, 0.0
        %v2344 = vmax.f32 %v2258, 0.0
        %v2345 = vmax.f32 %v2263, 0.0
        %v2346 = vmax.f32 %v2268, 0.0
        %v2347 = vmax.f32 %v2273, 0.0
        %v2348 = vmax.f32 %v2278, 0.0
        %v2349 = vmax.f32 %v2283, 0.0
        %v2350 = vmax.f32 %v2288, 0.0
        %v2351 = vmax.f32 %v2293, 0.0
        %v2352 = vmax.f32 %v2298, 0.0
        %v2353 = vmax.f32 %v2303, 0.0
        %v2354 = vmax.f32 %v2308, 0.0
        %v2355 = vmax.f32 %v2313, 0.0
        %v2356 = vmax.f32 %v2318, 0.0
        %v2357 = vmax.f32 %v2323, 0.0
        %2358 = vst.msk [vmem:[#allocation2] sm:$0xff] %vm1725, 0.0
        %2359 = vst.msk [vmem:[#allocation2 + $0x8] sm:$0xff] %vm1725, 0.0
        %vm2360 = vcmask 17408
        %2361 = vst.msk [vmem:[#allocation2 + $0x10] sm:$0x3] %vm2360, 0.0
        %2362 = vst.msk [vmem:[#allocation2 + $0x18] sm:$0xff] %vm1725, 0.0
        %2363 = vst.msk [vmem:[#allocation2 + $0x20] sm:$0xff] %vm1725, 0.0
        %2364 = vst.msk [vmem:[#allocation2 + $0x28] sm:$0x3] %vm2360, 0.0
        %2365 = vst.msk [vmem:[#allocation2 + $0x30] sm:$0xff] %vm1725, 0.0
        %2366 = vst.msk [vmem:[#allocation2 + $0x38] sm:$0xff] %vm1725, 0.0
        %2367 = vst.msk [vmem:[#allocation2 + $0x40] sm:$0x3] %vm2360, 0.0
        %2368 = vst.msk [vmem:[#allocation2 + $0x48] sm:$0xff] %vm1725, 0.0
        %2369 = vst.msk [vmem:[#allocation2 + $0x50] sm:$0xff] %vm1725, 0.0
        %2370 = vst.msk [vmem:[#allocation2 + $0x58] sm:$0x3] %vm2360, 0.0
        %2371 = vst.msk [vmem:[#allocation2 + $0x60] sm:$0xff] %vm1725, 0.0
        %2372 = vst.msk [vmem:[#allocation2 + $0x68] sm:$0xff] %vm1725, 0.0
        %2373 = vst.msk [vmem:[#allocation2 + $0x70] sm:$0x3] %vm2360, 0.0
        %2374 = vst.msk [vmem:[#allocation2 + $0x78] sm:$0xff] %vm1725, 0.0
        %2375 = vst.msk [vmem:[#allocation2 + $0x80] sm:$0xff] %vm1725, 0.0
        %2376 = vst.msk [vmem:[#allocation2 + $0x88] sm:$0x3] %vm2360, 0.0
        %2377 = vst.msk [vmem:[#allocation2 + $0x90] sm:$0xff] %vm1725, 0.0
        %2378 = vst.msk [vmem:[#allocation2 + $0x98] sm:$0xff] %vm1725, 0.0
        %2379 = vst.msk [vmem:[#allocation2 + $0xa0] sm:$0x3] %vm2360, 0.0
        %2380 = vst.msk [vmem:[#allocation2 + $0xa8] sm:$0xff] %vm1725, 0.0
        %2381 = vst.msk [vmem:[#allocation2 + $0xb0] sm:$0xff] %vm1725, 0.0
        %2382 = vst.msk [vmem:[#allocation2 + $0xb8] sm:$0x3] %vm2360, 0.0
        %2383 = vst.msk [vmem:[#allocation2 + $0xc0] sm:$0xff] %vm1725, 0.0
        %2384 = vst.msk [vmem:[#allocation2 + $0xc8] sm:$0xff] %vm1725, 0.0
        %2385 = vst.msk [vmem:[#allocation2 + $0xd0] sm:$0x3] %vm2360, 0.0
        %2386 = vst.msk [vmem:[#allocation2 + $0xd8] sm:$0xff] %vm1725, 0.0
        %2387 = vst.msk [vmem:[#allocation2 + $0xe0] sm:$0xff] %vm1725, 0.0
        %2388 = vst.msk [vmem:[#allocation2 + $0xe8] sm:$0x3] %vm2360, 0.0
        %2389 = vst.msk [vmem:[#allocation2 + $0xf0] sm:$0xff] %vm1725, 0.0
        %2390 = vst.msk [vmem:[#allocation2 + $0xf8] sm:$0xff] %vm1725, 0.0
        %2391 = vst.msk [vmem:[#allocation2 + $0x100] sm:$0x3] %vm2360, 0.0
        %2392 = vst.msk [vmem:[#allocation2 + $0x108] sm:$0xff] %vm1725, 0.0
        %2393 = vst.msk [vmem:[#allocation2 + $0x110] sm:$0xff] %vm1725, 0.0
        %2394 = vst.msk [vmem:[#allocation2 + $0x118] sm:$0x3] %vm2360, 0.0
        %2395 = vst.msk [vmem:[#allocation2 + $0x120] sm:$0xff] %vm1725, 0.0
        %2396 = vst.msk [vmem:[#allocation2 + $0x128] sm:$0xff] %vm1725, 0.0
        %2397 = vst.msk [vmem:[#allocation2 + $0x130] sm:$0x3] %vm2360, 0.0
        %2398 = vst.msk [vmem:[#allocation2 + $0x138] sm:$0xff] %vm1725, 0.0
        %2399 = vst.msk [vmem:[#allocation2 + $0x140] sm:$0xff] %vm1725, 0.0
        %2400 = vst.msk [vmem:[#allocation2 + $0x148] sm:$0x3] %vm2360, 0.0
        %2401 = vst.msk [vmem:[#allocation2 + $0x150] sm:$0xff] %vm1725, 0.0
        %2402 = vst.msk [vmem:[#allocation2 + $0x158] sm:$0xff] %vm1725, 0.0
        %2403 = vst.msk [vmem:[#allocation2 + $0x160] sm:$0x3] %vm2360, 0.0
        %2404 = vst.msk [vmem:[#allocation2 + $0x168] sm:$0xff] %vm1725, 0.0
        %2405 = vst.msk [vmem:[#allocation2 + $0x170] sm:$0xff] %vm1725, 0.0
        %2406 = vst.msk [vmem:[#allocation2 + $0x178] sm:$0x3] %vm2360, 0.0
        %2407 = vst.msk [vmem:[#allocation2 + $0x180] sm:$0xff] %vm1725, 0.0
        %2408 = vst.msk [vmem:[#allocation2 + $0x188] sm:$0xff] %vm1725, 0.0
        %2409 = vst.msk [vmem:[#allocation2 + $0x190] sm:$0x3] %vm2360, 0.0
        %2410 = vst.msk [vmem:[#allocation2 + $0x198] sm:$0xff] %vm1725, 0.0
        %2411 = vst.msk [vmem:[#allocation2 + $0x1a0] sm:$0xff] %vm1725, 0.0
        %2412 = vst.msk [vmem:[#allocation2 + $0x1a8] sm:$0x3] %vm2360, 0.0
        %s2413 = scalar_lea.vmem [#allocation2], 24
        %2414 = vst.msk [vmem:[%s2413 + $0x1] sm:$0xff] %vm1725, %v2326
        %2415 = vst.msk [vmem:[%s2413 + $0x9] sm:$0xff] %vm1725, %v2327
        %2416 = vst.msk [vmem:[%s2413 + $0x19] sm:$0xff] %vm1725, %v2328
        %2417 = vst.msk [vmem:[%s2413 + $0x21] sm:$0xff] %vm1725, %v2329
        %2418 = vst.msk [vmem:[%s2413 + $0x31] sm:$0xff] %vm1725, %v2330
        %2419 = vst.msk [vmem:[%s2413 + $0x39] sm:$0xff] %vm1725, %v2331
        %2420 = vst.msk [vmem:[%s2413 + $0x49] sm:$0xff] %vm1725, %v2332
        %2421 = vst.msk [vmem:[%s2413 + $0x51] sm:$0xff] %vm1725, %v2333
        %2422 = vst.msk [vmem:[%s2413 + $0x61] sm:$0xff] %vm1725, %v2334
        %2423 = vst.msk [vmem:[%s2413 + $0x69] sm:$0xff] %vm1725, %v2335
        %2424 = vst.msk [vmem:[%s2413 + $0x79] sm:$0xff] %vm1725, %v2336
        %2425 = vst.msk [vmem:[%s2413 + $0x81] sm:$0xff] %vm1725, %v2337
        %2426 = vst.msk [vmem:[%s2413 + $0x91] sm:$0xff] %vm1725, %v2338
        %2427 = vst.msk [vmem:[%s2413 + $0x99] sm:$0xff] %vm1725, %v2339
        %2428 = vst.msk [vmem:[%s2413 + $0xa9] sm:$0xff] %vm1725, %v2340
        %2429 = vst.msk [vmem:[%s2413 + $0xb1] sm:$0xff] %vm1725, %v2341
        %2430 = vst.msk [vmem:[%s2413 + $0xc1] sm:$0xff] %vm1725, %v2342
        %2431 = vst.msk [vmem:[%s2413 + $0xc9] sm:$0xff] %vm1725, %v2343
        %2432 = vst.msk [vmem:[%s2413 + $0xd9] sm:$0xff] %vm1725, %v2344
        %2433 = vst.msk [vmem:[%s2413 + $0xe1] sm:$0xff] %vm1725, %v2345
        %2434 = vst.msk [vmem:[%s2413 + $0xf1] sm:$0xff] %vm1725, %v2346
        %2435 = vst.msk [vmem:[%s2413 + $0xf9] sm:$0xff] %vm1725, %v2347
        %2436 = vst.msk [vmem:[%s2413 + $0x109] sm:$0xff] %vm1725, %v2348
        %2437 = vst.msk [vmem:[%s2413 + $0x111] sm:$0xff] %vm1725, %v2349
        %2438 = vst.msk [vmem:[%s2413 + $0x121] sm:$0xff] %vm1725, %v2350
        %2439 = vst.msk [vmem:[%s2413 + $0x129] sm:$0xff] %vm1725, %v2351
        %2440 = vst.msk [vmem:[%s2413 + $0x139] sm:$0xff] %vm1725, %v2352
        %2441 = vst.msk [vmem:[%s2413 + $0x141] sm:$0xff] %vm1725, %v2353
        %2442 = vst.msk [vmem:[%s2413 + $0x151] sm:$0xff] %vm1725, %v2354
        %2443 = vst.msk [vmem:[%s2413 + $0x159] sm:$0xff] %vm1725, %v2355
        %2444 = vst.msk [vmem:[%s2413 + $0x169] sm:$0xff] %vm1725, %v2356
        %2445 = vst.msk [vmem:[%s2413 + $0x171] sm:$0xff] %vm1725, %v2357
        %v2446 = vld [vmem:[#allocation2] sm:$0xff]
        %v2447 = vld [vmem:[#allocation2 + $0x8] sm:$0xff]
        %v2448 = vld [vmem:[#allocation2 + $0x18] sm:$0xff]
        %v2449 = vld [vmem:[#allocation2 + $0x20] sm:$0xff]
        %v2450 = vld [vmem:[#allocation2 + $0x30] sm:$0xff]
        %v2451 = vld [vmem:[#allocation2 + $0x38] sm:$0xff]
        %v2452 = vld [vmem:[#allocation2 + $0x48] sm:$0xff]
        %v2453 = vld [vmem:[#allocation2 + $0x50] sm:$0xff]
        %v2454 = vld [vmem:[#allocation2 + $0x60] sm:$0xff]
        %v2455 = vld [vmem:[#allocation2 + $0x68] sm:$0xff]
        %v2456 = vld [vmem:[#allocation2 + $0x78] sm:$0xff]
        %v2457 = vld [vmem:[#allocation2 + $0x80] sm:$0xff]
        %v2458 = vld [vmem:[#allocation2 + $0x90] sm:$0xff]
        %v2459 = vld [vmem:[#allocation2 + $0x98] sm:$0xff]
        %v2460 = vld [vmem:[#allocation2 + $0xa8] sm:$0xff]
        %v2461 = vld [vmem:[#allocation2 + $0xb0] sm:$0xff]
        %v2462 = vld [vmem:[#allocation2 + $0xc0] sm:$0xff]
        %v2463 = vld [vmem:[#allocation2 + $0xc8] sm:$0xff]
        %v2464 = vld [vmem:[#allocation2 + $0xd8] sm:$0xff]
        %v2465 = vld [vmem:[#allocation2 + $0xe0] sm:$0xff]
        %v2466 = vld [vmem:[#allocation2 + $0xf0] sm:$0xff]
        %v2467 = vld [vmem:[#allocation2 + $0xf8] sm:$0xff]
        %v2468 = vld [vmem:[#allocation2 + $0x108] sm:$0xff]
        %v2469 = vld [vmem:[#allocation2 + $0x110] sm:$0xff]
        %v2470 = vld [vmem:[#allocation2 + $0x120] sm:$0xff]
        %v2471 = vld [vmem:[#allocation2 + $0x128] sm:$0xff]
        %v2472 = vld [vmem:[#allocation2 + $0x138] sm:$0xff]
        %v2473 = vld [vmem:[#allocation2 + $0x140] sm:$0xff]
        %v2474 = vld [vmem:[#allocation2 + $0x150] sm:$0xff]
        %v2475 = vld [vmem:[#allocation2 + $0x158] sm:$0xff]
        %v2476 = vld [vmem:[#allocation2 + $0x168] sm:$0xff]
        %v2477 = vld [vmem:[#allocation2 + $0x170] sm:$0xff]
        %v2478 = vld [vmem:[#allocation2 + $0x1] sm:$0xff]
        %v2479 = vld [vmem:[#allocation2 + $0x9] sm:$0xff]
        %v2480 = vld [vmem:[#allocation2 + $0x19] sm:$0xff]
        %v2481 = vld [vmem:[#allocation2 + $0x21] sm:$0xff]
        %v2482 = vld [vmem:[#allocation2 + $0x31] sm:$0xff]
        %v2483 = vld [vmem:[#allocation2 + $0x39] sm:$0xff]
        %v2484 = vld [vmem:[#allocation2 + $0x49] sm:$0xff]
        %v2485 = vld [vmem:[#allocation2 + $0x51] sm:$0xff]
        %v2486 = vld [vmem:[#allocation2 + $0x61] sm:$0xff]
        %v2487 = vld [vmem:[#allocation2 + $0x69] sm:$0xff]
        %v2488 = vld [vmem:[#allocation2 + $0x79] sm:$0xff]
        %v2489 = vld [vmem:[#allocation2 + $0x81] sm:$0xff]
        %v2490 = vld [vmem:[#allocation2 + $0x91] sm:$0xff]
        %v2491 = vld [vmem:[#allocation2 + $0x99] sm:$0xff]
        %v2492 = vld [vmem:[#allocation2 + $0xa9] sm:$0xff]
        %v2493 = vld [vmem:[#allocation2 + $0xb1] sm:$0xff]
        %v2494 = vld [vmem:[#allocation2 + $0xc1] sm:$0xff]
        %v2495 = vld [vmem:[#allocation2 + $0xc9] sm:$0xff]
        %v2496 = vld [vmem:[#allocation2 + $0xd9] sm:$0xff]
        %v2497 = vld [vmem:[#allocation2 + $0xe1] sm:$0xff]
        %v2498 = vld [vmem:[#allocation2 + $0xf1] sm:$0xff]
        %v2499 = vld [vmem:[#allocation2 + $0xf9] sm:$0xff]
        %v2500 = vld [vmem:[#allocation2 + $0x109] sm:$0xff]
        %v2501 = vld [vmem:[#allocation2 + $0x111] sm:$0xff]
        %v2502 = vld [vmem:[#allocation2 + $0x121] sm:$0xff]
        %v2503 = vld [vmem:[#allocation2 + $0x129] sm:$0xff]
        %v2504 = vld [vmem:[#allocation2 + $0x139] sm:$0xff]
        %v2505 = vld [vmem:[#allocation2 + $0x141] sm:$0xff]
        %v2506 = vld [vmem:[#allocation2 + $0x151] sm:$0xff]
        %v2507 = vld [vmem:[#allocation2 + $0x159] sm:$0xff]
        %v2508 = vld [vmem:[#allocation2 + $0x169] sm:$0xff]
        %v2509 = vld [vmem:[#allocation2 + $0x171] sm:$0xff]
        %v2510 = vld [vmem:[#allocation2 + $0x2] sm:$0xff]
        %v2511 = vld [vmem:[#allocation2 + $0xa] sm:$0xff]
        %v2512 = vld [vmem:[#allocation2 + $0x1a] sm:$0xff]
        %v2513 = vld [vmem:[#allocation2 + $0x22] sm:$0xff]
        %v2514 = vld [vmem:[#allocation2 + $0x32] sm:$0xff]
        %v2515 = vld [vmem:[#allocation2 + $0x3a] sm:$0xff]
        %v2516 = vld [vmem:[#allocation2 + $0x4a] sm:$0xff]
        %v2517 = vld [vmem:[#allocation2 + $0x52] sm:$0xff]
        %v2518 = vld [vmem:[#allocation2 + $0x62] sm:$0xff]
        %v2519 = vld [vmem:[#allocation2 + $0x6a] sm:$0xff]
        %v2520 = vld [vmem:[#allocation2 + $0x7a] sm:$0xff]
        %v2521 = vld [vmem:[#allocation2 + $0x82] sm:$0xff]
        %v2522 = vld [vmem:[#allocation2 + $0x92] sm:$0xff]
        %v2523 = vld [vmem:[#allocation2 + $0x9a] sm:$0xff]
        %v2524 = vld [vmem:[#allocation2 + $0xaa] sm:$0xff]
        %v2525 = vld [vmem:[#allocation2 + $0xb2] sm:$0xff]
        %v2526 = vld [vmem:[#allocation2 + $0xc2] sm:$0xff]
        %v2527 = vld [vmem:[#allocation2 + $0xca] sm:$0xff]
        %v2528 = vld [vmem:[#allocation2 + $0xda] sm:$0xff]
        %v2529 = vld [vmem:[#allocation2 + $0xe2] sm:$0xff]
        %v2530 = vld [vmem:[#allocation2 + $0xf2] sm:$0xff]
        %v2531 = vld [vmem:[#allocation2 + $0xfa] sm:$0xff]
        %v2532 = vld [vmem:[#allocation2 + $0x10a] sm:$0xff]
        %v2533 = vld [vmem:[#allocation2 + $0x112] sm:$0xff]
        %v2534 = vld [vmem:[#allocation2 + $0x122] sm:$0xff]
        %v2535 = vld [vmem:[#allocation2 + $0x12a] sm:$0xff]
        %v2536 = vld [vmem:[#allocation2 + $0x13a] sm:$0xff]
        %v2537 = vld [vmem:[#allocation2 + $0x142] sm:$0xff]
        %v2538 = vld [vmem:[#allocation2 + $0x152] sm:$0xff]
        %v2539 = vld [vmem:[#allocation2 + $0x15a] sm:$0xff]
        %v2540 = vld [vmem:[#allocation2 + $0x16a] sm:$0xff]
        %v2541 = vld [vmem:[#allocation2 + $0x172] sm:$0xff]
        %v2542 = vld [vmem:[%s2413] sm:$0xff]
        %v2543 = vld [vmem:[%s2413 + $0x8] sm:$0xff]
        %v2544 = vld [vmem:[%s2413 + $0x18] sm:$0xff]
        %v2545 = vld [vmem:[%s2413 + $0x20] sm:$0xff]
        %v2546 = vld [vmem:[%s2413 + $0x30] sm:$0xff]
        %v2547 = vld [vmem:[%s2413 + $0x38] sm:$0xff]
        %v2548 = vld [vmem:[%s2413 + $0x48] sm:$0xff]
        %v2549 = vld [vmem:[%s2413 + $0x50] sm:$0xff]
        %v2550 = vld [vmem:[%s2413 + $0x60] sm:$0xff]
        %v2551 = vld [vmem:[%s2413 + $0x68] sm:$0xff]
        %v2552 = vld [vmem:[%s2413 + $0x78] sm:$0xff]
        %v2553 = vld [vmem:[%s2413 + $0x80] sm:$0xff]
        %v2554 = vld [vmem:[%s2413 + $0x90] sm:$0xff]
        %v2555 = vld [vmem:[%s2413 + $0x98] sm:$0xff]
        %v2556 = vld [vmem:[%s2413 + $0xa8] sm:$0xff]
        %v2557 = vld [vmem:[%s2413 + $0xb0] sm:$0xff]
        %v2558 = vld [vmem:[%s2413 + $0xc0] sm:$0xff]
        %v2559 = vld [vmem:[%s2413 + $0xc8] sm:$0xff]
        %v2560 = vld [vmem:[%s2413 + $0xd8] sm:$0xff]
        %v2561 = vld [vmem:[%s2413 + $0xe0] sm:$0xff]
        %v2562 = vld [vmem:[%s2413 + $0xf0] sm:$0xff]
        %v2563 = vld [vmem:[%s2413 + $0xf8] sm:$0xff]
        %v2564 = vld [vmem:[%s2413 + $0x108] sm:$0xff]
        %v2565 = vld [vmem:[%s2413 + $0x110] sm:$0xff]
        %v2566 = vld [vmem:[%s2413 + $0x120] sm:$0xff]
        %v2567 = vld [vmem:[%s2413 + $0x128] sm:$0xff]
        %v2568 = vld [vmem:[%s2413 + $0x138] sm:$0xff]
        %v2569 = vld [vmem:[%s2413 + $0x140] sm:$0xff]
        %v2570 = vld [vmem:[%s2413 + $0x150] sm:$0xff]
        %v2571 = vld [vmem:[%s2413 + $0x158] sm:$0xff]
        %v2572 = vld [vmem:[%s2413 + $0x168] sm:$0xff]
        %v2573 = vld [vmem:[%s2413 + $0x170] sm:$0xff]
        %v2574 = vld [vmem:[%s2413 + $0x1] sm:$0xff]
        %v2575 = vld [vmem:[%s2413 + $0x9] sm:$0xff]
        %v2576 = vld [vmem:[%s2413 + $0x19] sm:$0xff]
        %v2577 = vld [vmem:[%s2413 + $0x21] sm:$0xff]
        %v2578 = vld [vmem:[%s2413 + $0x31] sm:$0xff]
        %v2579 = vld [vmem:[%s2413 + $0x39] sm:$0xff]
        %v2580 = vld [vmem:[%s2413 + $0x49] sm:$0xff]
        %v2581 = vld [vmem:[%s2413 + $0x51] sm:$0xff]
        %v2582 = vld [vmem:[%s2413 + $0x61] sm:$0xff]
        %v2583 = vld [vmem:[%s2413 + $0x69] sm:$0xff]
        %v2584 = vld [vmem:[%s2413 + $0x79] sm:$0xff]
        %v2585 = vld [vmem:[%s2413 + $0x81] sm:$0xff]
        %v2586 = vld [vmem:[%s2413 + $0x91] sm:$0xff]
        %v2587 = vld [vmem:[%s2413 + $0x99] sm:$0xff]
        %v2588 = vld [vmem:[%s2413 + $0xa9] sm:$0xff]
        %v2589 = vld [vmem:[%s2413 + $0xb1] sm:$0xff]
        %v2590 = vld [vmem:[%s2413 + $0xc1] sm:$0xff]
        %v2591 = vld [vmem:[%s2413 + $0xc9] sm:$0xff]
        %v2592 = vld [vmem:[%s2413 + $0xd9] sm:$0xff]
        %v2593 = vld [vmem:[%s2413 + $0xe1] sm:$0xff]
        %v2594 = vld [vmem:[%s2413 + $0xf1] sm:$0xff]
        %v2595 = vld [vmem:[%s2413 + $0xf9] sm:$0xff]
        %v2596 = vld [vmem:[%s2413 + $0x109] sm:$0xff]
        %v2597 = vld [vmem:[%s2413 + $0x111] sm:$0xff]
        %v2598 = vld [vmem:[%s2413 + $0x121] sm:$0xff]
        %v2599 = vld [vmem:[%s2413 + $0x129] sm:$0xff]
        %v2600 = vld [vmem:[%s2413 + $0x139] sm:$0xff]
        %v2601 = vld [vmem:[%s2413 + $0x141] sm:$0xff]
        %v2602 = vld [vmem:[%s2413 + $0x151] sm:$0xff]
        %v2603 = vld [vmem:[%s2413 + $0x159] sm:$0xff]
        %v2604 = vld [vmem:[%s2413 + $0x169] sm:$0xff]
        %v2605 = vld [vmem:[%s2413 + $0x171] sm:$0xff]
        %v2606 = vld [vmem:[%s2413 + $0x2] sm:$0xff]
        %v2607 = vld [vmem:[%s2413 + $0xa] sm:$0xff]
        %v2608 = vld [vmem:[%s2413 + $0x1a] sm:$0xff]
        %v2609 = vld [vmem:[%s2413 + $0x22] sm:$0xff]
        %v2610 = vld [vmem:[%s2413 + $0x32] sm:$0xff]
        %v2611 = vld [vmem:[%s2413 + $0x3a] sm:$0xff]
        %v2612 = vld [vmem:[%s2413 + $0x4a] sm:$0xff]
        %v2613 = vld [vmem:[%s2413 + $0x52] sm:$0xff]
        %v2614 = vld [vmem:[%s2413 + $0x62] sm:$0xff]
        %v2615 = vld [vmem:[%s2413 + $0x6a] sm:$0xff]
        %v2616 = vld [vmem:[%s2413 + $0x7a] sm:$0xff]
        %v2617 = vld [vmem:[%s2413 + $0x82] sm:$0xff]
        %v2618 = vld [vmem:[%s2413 + $0x92] sm:$0xff]
        %v2619 = vld [vmem:[%s2413 + $0x9a] sm:$0xff]
        %v2620 = vld [vmem:[%s2413 + $0xaa] sm:$0xff]
        %v2621 = vld [vmem:[%s2413 + $0xb2] sm:$0xff]
        %v2622 = vld [vmem:[%s2413 + $0xc2] sm:$0xff]
        %v2623 = vld [vmem:[%s2413 + $0xca] sm:$0xff]
        %v2624 = vld [vmem:[%s2413 + $0xda] sm:$0xff]
        %v2625 = vld [vmem:[%s2413 + $0xe2] sm:$0xff]
        %v2626 = vld [vmem:[%s2413 + $0xf2] sm:$0xff]
        %v2627 = vld [vmem:[%s2413 + $0xfa] sm:$0xff]
        %v2628 = vld [vmem:[%s2413 + $0x10a] sm:$0xff]
        %v2629 = vld [vmem:[%s2413 + $0x112] sm:$0xff]
        %v2630 = vld [vmem:[%s2413 + $0x122] sm:$0xff]
        %v2631 = vld [vmem:[%s2413 + $0x12a] sm:$0xff]
        %v2632 = vld [vmem:[%s2413 + $0x13a] sm:$0xff]
        %v2633 = vld [vmem:[%s2413 + $0x142] sm:$0xff]
        %v2634 = vld [vmem:[%s2413 + $0x152] sm:$0xff]
        %v2635 = vld [vmem:[%s2413 + $0x15a] sm:$0xff]
        %v2636 = vld [vmem:[%s2413 + $0x16a] sm:$0xff]
        %v2637 = vld [vmem:[%s2413 + $0x172] sm:$0xff]
        %s2638 = scalar_lea.vmem [#allocation2], 48
        %v2639 = vld [vmem:[%s2638] sm:$0xff]
        %v2640 = vld [vmem:[%s2638 + $0x8] sm:$0xff]
        %v2641 = vld [vmem:[%s2638 + $0x18] sm:$0xff]
        %v2642 = vld [vmem:[%s2638 + $0x20] sm:$0xff]
        %v2643 = vld [vmem:[%s2638 + $0x30] sm:$0xff]
        %v2644 = vld [vmem:[%s2638 + $0x38] sm:$0xff]
        %v2645 = vld [vmem:[%s2638 + $0x48] sm:$0xff]
        %v2646 = vld [vmem:[%s2638 + $0x50] sm:$0xff]
        %v2647 = vld [vmem:[%s2638 + $0x60] sm:$0xff]
        %v2648 = vld [vmem:[%s2638 + $0x68] sm:$0xff]
        %v2649 = vld [vmem:[%s2638 + $0x78] sm:$0xff]
        %v2650 = vld [vmem:[%s2638 + $0x80] sm:$0xff]
        %v2651 = vld [vmem:[%s2638 + $0x90] sm:$0xff]
        %v2652 = vld [vmem:[%s2638 + $0x98] sm:$0xff]
        %v2653 = vld [vmem:[%s2638 + $0xa8] sm:$0xff]
        %v2654 = vld [vmem:[%s2638 + $0xb0] sm:$0xff]
        %v2655 = vld [vmem:[%s2638 + $0xc0] sm:$0xff]
        %v2656 = vld [vmem:[%s2638 + $0xc8] sm:$0xff]
        %v2657 = vld [vmem:[%s2638 + $0xd8] sm:$0xff]
        %v2658 = vld [vmem:[%s2638 + $0xe0] sm:$0xff]
        %v2659 = vld [vmem:[%s2638 + $0xf0] sm:$0xff]
        %v2660 = vld [vmem:[%s2638 + $0xf8] sm:$0xff]
        %v2661 = vld [vmem:[%s2638 + $0x108] sm:$0xff]
        %v2662 = vld [vmem:[%s2638 + $0x110] sm:$0xff]
        %v2663 = vld [vmem:[%s2638 + $0x120] sm:$0xff]
        %v2664 = vld [vmem:[%s2638 + $0x128] sm:$0xff]
        %v2665 = vld [vmem:[%s2638 + $0x138] sm:$0xff]
        %v2666 = vld [vmem:[%s2638 + $0x140] sm:$0xff]
        %v2667 = vld [vmem:[%s2638 + $0x150] sm:$0xff]
        %v2668 = vld [vmem:[%s2638 + $0x158] sm:$0xff]
        %v2669 = vld [vmem:[%s2638 + $0x168] sm:$0xff]
        %v2670 = vld [vmem:[%s2638 + $0x170] sm:$0xff]
        %v2671 = vld [vmem:[%s2638 + $0x1] sm:$0xff]
        %v2672 = vld [vmem:[%s2638 + $0x9] sm:$0xff]
        %v2673 = vld [vmem:[%s2638 + $0x19] sm:$0xff]
        %v2674 = vld [vmem:[%s2638 + $0x21] sm:$0xff]
        %v2675 = vld [vmem:[%s2638 + $0x31] sm:$0xff]
        %v2676 = vld [vmem:[%s2638 + $0x39] sm:$0xff]
        %v2677 = vld [vmem:[%s2638 + $0x49] sm:$0xff]
        %v2678 = vld [vmem:[%s2638 + $0x51] sm:$0xff]
        %v2679 = vld [vmem:[%s2638 + $0x61] sm:$0xff]
        %v2680 = vld [vmem:[%s2638 + $0x69] sm:$0xff]
        %v2681 = vld [vmem:[%s2638 + $0x79] sm:$0xff]
        %v2682 = vld [vmem:[%s2638 + $0x81] sm:$0xff]
        %v2683 = vld [vmem:[%s2638 + $0x91] sm:$0xff]
        %v2684 = vld [vmem:[%s2638 + $0x99] sm:$0xff]
        %v2685 = vld [vmem:[%s2638 + $0xa9] sm:$0xff]
        %v2686 = vld [vmem:[%s2638 + $0xb1] sm:$0xff]
        %v2687 = vld [vmem:[%s2638 + $0xc1] sm:$0xff]
        %v2688 = vld [vmem:[%s2638 + $0xc9] sm:$0xff]
        %v2689 = vld [vmem:[%s2638 + $0xd9] sm:$0xff]
        %v2690 = vld [vmem:[%s2638 + $0xe1] sm:$0xff]
        %v2691 = vld [vmem:[%s2638 + $0xf1] sm:$0xff]
        %v2692 = vld [vmem:[%s2638 + $0xf9] sm:$0xff]
        %v2693 = vld [vmem:[%s2638 + $0x109] sm:$0xff]
        %v2694 = vld [vmem:[%s2638 + $0x111] sm:$0xff]
        %v2695 = vld [vmem:[%s2638 + $0x121] sm:$0xff]
        %v2696 = vld [vmem:[%s2638 + $0x129] sm:$0xff]
        %v2697 = vld [vmem:[%s2638 + $0x139] sm:$0xff]
        %v2698 = vld [vmem:[%s2638 + $0x141] sm:$0xff]
        %v2699 = vld [vmem:[%s2638 + $0x151] sm:$0xff]
        %v2700 = vld [vmem:[%s2638 + $0x159] sm:$0xff]
        %v2701 = vld [vmem:[%s2638 + $0x169] sm:$0xff]
        %v2702 = vld [vmem:[%s2638 + $0x171] sm:$0xff]
        %v2703 = vld [vmem:[%s2638 + $0x2] sm:$0xff]
        %v2704 = vld [vmem:[%s2638 + $0xa] sm:$0xff]
        %v2705 = vld [vmem:[%s2638 + $0x1a] sm:$0xff]
        %v2706 = vld [vmem:[%s2638 + $0x22] sm:$0xff]
        %v2707 = vld [vmem:[%s2638 + $0x32] sm:$0xff]
        %v2708 = vld [vmem:[%s2638 + $0x3a] sm:$0xff]
        %v2709 = vld [vmem:[%s2638 + $0x4a] sm:$0xff]
        %v2710 = vld [vmem:[%s2638 + $0x52] sm:$0xff]
        %v2711 = vld [vmem:[%s2638 + $0x62] sm:$0xff]
        %v2712 = vld [vmem:[%s2638 + $0x6a] sm:$0xff]
        %v2713 = vld [vmem:[%s2638 + $0x7a] sm:$0xff]
        %v2714 = vld [vmem:[%s2638 + $0x82] sm:$0xff]
        %v2715 = vld [vmem:[%s2638 + $0x92] sm:$0xff]
        %v2716 = vld [vmem:[%s2638 + $0x9a] sm:$0xff]
        %v2717 = vld [vmem:[%s2638 + $0xaa] sm:$0xff]
        %v2718 = vld [vmem:[%s2638 + $0xb2] sm:$0xff]
        %v2719 = vld [vmem:[%s2638 + $0xc2] sm:$0xff]
        %v2720 = vld [vmem:[%s2638 + $0xca] sm:$0xff]
        %v2721 = vld [vmem:[%s2638 + $0xda] sm:$0xff]
        %v2722 = vld [vmem:[%s2638 + $0xe2] sm:$0xff]
        %v2723 = vld [vmem:[%s2638 + $0xf2] sm:$0xff]
        %v2724 = vld [vmem:[%s2638 + $0xfa] sm:$0xff]
        %v2725 = vld [vmem:[%s2638 + $0x10a] sm:$0xff]
        %v2726 = vld [vmem:[%s2638 + $0x112] sm:$0xff]
        %v2727 = vld [vmem:[%s2638 + $0x122] sm:$0xff]
        %v2728 = vld [vmem:[%s2638 + $0x12a] sm:$0xff]
        %v2729 = vld [vmem:[%s2638 + $0x13a] sm:$0xff]
        %v2730 = vld [vmem:[%s2638 + $0x142] sm:$0xff]
        %v2731 = vld [vmem:[%s2638 + $0x152] sm:$0xff]
        %v2732 = vld [vmem:[%s2638 + $0x15a] sm:$0xff]
        %v2733 = vld [vmem:[%s2638 + $0x16a] sm:$0xff]
        %v2734 = vld [vmem:[%s2638 + $0x172] sm:$0xff]
        %2767 = vrot.lane.b32.xlu0 %v2478, 3
        %v2768 = vpop.permute.xlu0 %2767
        %2769 = vrot.lane.b32.xlu0 %v2479, 3
        %v2770 = vpop.permute.xlu0 %2769
        %2771 = vrot.lane.b32.xlu0 %v2480, 3
        %v2772 = vpop.permute.xlu0 %2771
        %2773 = vrot.lane.b32.xlu0 %v2481, 3
        %v2774 = vpop.permute.xlu0 %2773
        %2775 = vrot.lane.b32.xlu0 %v2482, 3
        %v2776 = vpop.permute.xlu0 %2775
        %2777 = vrot.lane.b32.xlu0 %v2483, 3
        %v2778 = vpop.permute.xlu0 %2777
        %2779 = vrot.lane.b32.xlu0 %v2484, 3
        %v2780 = vpop.permute.xlu0 %2779
        %2781 = vrot.lane.b32.xlu0 %v2485, 3
        %v2782 = vpop.permute.xlu0 %2781
        %2783 = vrot.lane.b32.xlu0 %v2486, 3
        %v2784 = vpop.permute.xlu0 %2783
        %2785 = vrot.lane.b32.xlu0 %v2487, 3
        %v2786 = vpop.permute.xlu0 %2785
        %2787 = vrot.lane.b32.xlu0 %v2488, 3
        %v2788 = vpop.permute.xlu0 %2787
        %2789 = vrot.lane.b32.xlu0 %v2489, 3
        %v2790 = vpop.permute.xlu0 %2789
        %2791 = vrot.lane.b32.xlu0 %v2490, 3
        %v2792 = vpop.permute.xlu0 %2791
        %2793 = vrot.lane.b32.xlu0 %v2491, 3
        %v2794 = vpop.permute.xlu0 %2793
        %2795 = vrot.lane.b32.xlu0 %v2492, 3
        %v2796 = vpop.permute.xlu0 %2795
        %2797 = vrot.lane.b32.xlu0 %v2493, 3
        %v2798 = vpop.permute.xlu0 %2797
        %2799 = vrot.lane.b32.xlu0 %v2494, 3
        %v2800 = vpop.permute.xlu0 %2799
        %2801 = vrot.lane.b32.xlu0 %v2495, 3
        %v2802 = vpop.permute.xlu0 %2801
        %2803 = vrot.lane.b32.xlu0 %v2496, 3
        %v2804 = vpop.permute.xlu0 %2803
        %2805 = vrot.lane.b32.xlu0 %v2497, 3
        %v2806 = vpop.permute.xlu0 %2805
        %2807 = vrot.lane.b32.xlu0 %v2498, 3
        %v2808 = vpop.permute.xlu0 %2807
        %2809 = vrot.lane.b32.xlu0 %v2499, 3
        %v2810 = vpop.permute.xlu0 %2809
        %2811 = vrot.lane.b32.xlu0 %v2500, 3
        %v2812 = vpop.permute.xlu0 %2811
        %2813 = vrot.lane.b32.xlu0 %v2501, 3
        %v2814 = vpop.permute.xlu0 %2813
        %2815 = vrot.lane.b32.xlu0 %v2502, 3
        %v2816 = vpop.permute.xlu0 %2815
        %2817 = vrot.lane.b32.xlu0 %v2503, 3
        %v2818 = vpop.permute.xlu0 %2817
        %2819 = vrot.lane.b32.xlu0 %v2504, 3
        %v2820 = vpop.permute.xlu0 %2819
        %2821 = vrot.lane.b32.xlu0 %v2505, 3
        %v2822 = vpop.permute.xlu0 %2821
        %2823 = vrot.lane.b32.xlu0 %v2506, 3
        %v2824 = vpop.permute.xlu0 %2823
        %2825 = vrot.lane.b32.xlu0 %v2507, 3
        %v2826 = vpop.permute.xlu0 %2825
        %2827 = vrot.lane.b32.xlu0 %v2508, 3
        %v2828 = vpop.permute.xlu0 %2827
        %2829 = vrot.lane.b32.xlu0 %v2509, 3
        %v2830 = vpop.permute.xlu0 %2829
        %2895 = vrot.lane.b32.xlu0 %v2510, 6
        %v2896 = vpop.permute.xlu0 %2895
        %2897 = vrot.lane.b32.xlu0 %v2511, 6
        %v2898 = vpop.permute.xlu0 %2897
        %2899 = vrot.lane.b32.xlu0 %v2512, 6
        %v2900 = vpop.permute.xlu0 %2899
        %2901 = vrot.lane.b32.xlu0 %v2513, 6
        %v2902 = vpop.permute.xlu0 %2901
        %2903 = vrot.lane.b32.xlu0 %v2514, 6
        %v2904 = vpop.permute.xlu0 %2903
        %2905 = vrot.lane.b32.xlu0 %v2515, 6
        %v2906 = vpop.permute.xlu0 %2905
        %2907 = vrot.lane.b32.xlu0 %v2516, 6
        %v2908 = vpop.permute.xlu0 %2907
        %2909 = vrot.lane.b32.xlu0 %v2517, 6
        %v2910 = vpop.permute.xlu0 %2909
        %2911 = vrot.lane.b32.xlu0 %v2518, 6
        %v2912 = vpop.permute.xlu0 %2911
        %2913 = vrot.lane.b32.xlu0 %v2519, 6
        %v2914 = vpop.permute.xlu0 %2913
        %2915 = vrot.lane.b32.xlu0 %v2520, 6
        %v2916 = vpop.permute.xlu0 %2915
        %2917 = vrot.lane.b32.xlu0 %v2521, 6
        %v2918 = vpop.permute.xlu0 %2917
        %2919 = vrot.lane.b32.xlu0 %v2522, 6
        %v2920 = vpop.permute.xlu0 %2919
        %2921 = vrot.lane.b32.xlu0 %v2523, 6
        %v2922 = vpop.permute.xlu0 %2921
        %2923 = vrot.lane.b32.xlu0 %v2524, 6
        %v2924 = vpop.permute.xlu0 %2923
        %2925 = vrot.lane.b32.xlu0 %v2525, 6
        %v2926 = vpop.permute.xlu0 %2925
        %2927 = vrot.lane.b32.xlu0 %v2526, 6
        %v2928 = vpop.permute.xlu0 %2927
        %2929 = vrot.lane.b32.xlu0 %v2527, 6
        %v2930 = vpop.permute.xlu0 %2929
        %2931 = vrot.lane.b32.xlu0 %v2528, 6
        %v2932 = vpop.permute.xlu0 %2931
        %2933 = vrot.lane.b32.xlu0 %v2529, 6
        %v2934 = vpop.permute.xlu0 %2933
        %2935 = vrot.lane.b32.xlu0 %v2530, 6
        %v2936 = vpop.permute.xlu0 %2935
        %2937 = vrot.lane.b32.xlu0 %v2531, 6
        %v2938 = vpop.permute.xlu0 %2937
        %2939 = vrot.lane.b32.xlu0 %v2532, 6
        %v2940 = vpop.permute.xlu0 %2939
        %2941 = vrot.lane.b32.xlu0 %v2533, 6
        %v2942 = vpop.permute.xlu0 %2941
        %2943 = vrot.lane.b32.xlu0 %v2534, 6
        %v2944 = vpop.permute.xlu0 %2943
        %2945 = vrot.lane.b32.xlu0 %v2535, 6
        %v2946 = vpop.permute.xlu0 %2945
        %2947 = vrot.lane.b32.xlu0 %v2536, 6
        %v2948 = vpop.permute.xlu0 %2947
        %2949 = vrot.lane.b32.xlu0 %v2537, 6
        %v2950 = vpop.permute.xlu0 %2949
        %2951 = vrot.lane.b32.xlu0 %v2538, 6
        %v2952 = vpop.permute.xlu0 %2951
        %2953 = vrot.lane.b32.xlu0 %v2539, 6
        %v2954 = vpop.permute.xlu0 %2953
        %2955 = vrot.lane.b32.xlu0 %v2540, 6
        %v2956 = vpop.permute.xlu0 %2955
        %2957 = vrot.lane.b32.xlu0 %v2541, 6
        %v2958 = vpop.permute.xlu0 %2957
        %3023 = vrot.lane.b32.xlu0 %v2542, 9
        %v3024 = vpop.permute.xlu0 %3023
        %3025 = vrot.lane.b32.xlu0 %v2543, 9
        %v3026 = vpop.permute.xlu0 %3025
        %3027 = vrot.lane.b32.xlu0 %v2544, 9
        %v3028 = vpop.permute.xlu0 %3027
        %3029 = vrot.lane.b32.xlu0 %v2545, 9
        %v3030 = vpop.permute.xlu0 %3029
        %3031 = vrot.lane.b32.xlu0 %v2546, 9
        %v3032 = vpop.permute.xlu0 %3031
        %3033 = vrot.lane.b32.xlu0 %v2547, 9
        %v3034 = vpop.permute.xlu0 %3033
        %3035 = vrot.lane.b32.xlu0 %v2548, 9
        %v3036 = vpop.permute.xlu0 %3035
        %3037 = vrot.lane.b32.xlu0 %v2549, 9
        %v3038 = vpop.permute.xlu0 %3037
        %3039 = vrot.lane.b32.xlu0 %v2550, 9
        %v3040 = vpop.permute.xlu0 %3039
        %3041 = vrot.lane.b32.xlu0 %v2551, 9
        %v3042 = vpop.permute.xlu0 %3041
        %3043 = vrot.lane.b32.xlu0 %v2552, 9
        %v3044 = vpop.permute.xlu0 %3043
        %3045 = vrot.lane.b32.xlu0 %v2553, 9
        %v3046 = vpop.permute.xlu0 %3045
        %3047 = vrot.lane.b32.xlu0 %v2554, 9
        %v3048 = vpop.permute.xlu0 %3047
        %3049 = vrot.lane.b32.xlu0 %v2555, 9
        %v3050 = vpop.permute.xlu0 %3049
        %3051 = vrot.lane.b32.xlu0 %v2556, 9
        %v3052 = vpop.permute.xlu0 %3051
        %3053 = vrot.lane.b32.xlu0 %v2557, 9
        %v3054 = vpop.permute.xlu0 %3053
        %3055 = vrot.lane.b32.xlu0 %v2558, 9
        %v3056 = vpop.permute.xlu0 %3055
        %3057 = vrot.lane.b32.xlu0 %v2559, 9
        %v3058 = vpop.permute.xlu0 %3057
        %3059 = vrot.lane.b32.xlu0 %v2560, 9
        %v3060 = vpop.permute.xlu0 %3059
        %3061 = vrot.lane.b32.xlu0 %v2561, 9
        %v3062 = vpop.permute.xlu0 %3061
        %3063 = vrot.lane.b32.xlu0 %v2562, 9
        %v3064 = vpop.permute.xlu0 %3063
        %3065 = vrot.lane.b32.xlu0 %v2563, 9
        %v3066 = vpop.permute.xlu0 %3065
        %3067 = vrot.lane.b32.xlu0 %v2564, 9
        %v3068 = vpop.permute.xlu0 %3067
        %3069 = vrot.lane.b32.xlu0 %v2565, 9
        %v3070 = vpop.permute.xlu0 %3069
        %3071 = vrot.lane.b32.xlu0 %v2566, 9
        %v3072 = vpop.permute.xlu0 %3071
        %3073 = vrot.lane.b32.xlu0 %v2567, 9
        %v3074 = vpop.permute.xlu0 %3073
        %3075 = vrot.lane.b32.xlu0 %v2568, 9
        %v3076 = vpop.permute.xlu0 %3075
        %3077 = vrot.lane.b32.xlu0 %v2569, 9
        %v3078 = vpop.permute.xlu0 %3077
        %3079 = vrot.lane.b32.xlu0 %v2570, 9
        %v3080 = vpop.permute.xlu0 %3079
        %3081 = vrot.lane.b32.xlu0 %v2571, 9
        %v3082 = vpop.permute.xlu0 %3081
        %3083 = vrot.lane.b32.xlu0 %v2572, 9
        %v3084 = vpop.permute.xlu0 %3083
        %3085 = vrot.lane.b32.xlu0 %v2573, 9
        %v3086 = vpop.permute.xlu0 %3085
        %3151 = vrot.lane.b32.xlu0 %v2574, 12
        %v3152 = vpop.permute.xlu0 %3151
        %3153 = vrot.lane.b32.xlu0 %v2575, 12
        %v3154 = vpop.permute.xlu0 %3153
        %3155 = vrot.lane.b32.xlu0 %v2576, 12
        %v3156 = vpop.permute.xlu0 %3155
        %3157 = vrot.lane.b32.xlu0 %v2577, 12
        %v3158 = vpop.permute.xlu0 %3157
        %3159 = vrot.lane.b32.xlu0 %v2578, 12
        %v3160 = vpop.permute.xlu0 %3159
        %3161 = vrot.lane.b32.xlu0 %v2579, 12
        %v3162 = vpop.permute.xlu0 %3161
        %3163 = vrot.lane.b32.xlu0 %v2580, 12
        %v3164 = vpop.permute.xlu0 %3163
        %3165 = vrot.lane.b32.xlu0 %v2581, 12
        %v3166 = vpop.permute.xlu0 %3165
        %3167 = vrot.lane.b32.xlu0 %v2582, 12
        %v3168 = vpop.permute.xlu0 %3167
        %3169 = vrot.lane.b32.xlu0 %v2583, 12
        %v3170 = vpop.permute.xlu0 %3169
        %3171 = vrot.lane.b32.xlu0 %v2584, 12
        %v3172 = vpop.permute.xlu0 %3171
        %3173 = vrot.lane.b32.xlu0 %v2585, 12
        %v3174 = vpop.permute.xlu0 %3173
        %3175 = vrot.lane.b32.xlu0 %v2586, 12
        %v3176 = vpop.permute.xlu0 %3175
        %3177 = vrot.lane.b32.xlu0 %v2587, 12
        %v3178 = vpop.permute.xlu0 %3177
        %3179 = vrot.lane.b32.xlu0 %v2588, 12
        %v3180 = vpop.permute.xlu0 %3179
        %3181 = vrot.lane.b32.xlu0 %v2589, 12
        %v3182 = vpop.permute.xlu0 %3181
        %3183 = vrot.lane.b32.xlu0 %v2590, 12
        %v3184 = vpop.permute.xlu0 %3183
        %3185 = vrot.lane.b32.xlu0 %v2591, 12
        %v3186 = vpop.permute.xlu0 %3185
        %3187 = vrot.lane.b32.xlu0 %v2592, 12
        %v3188 = vpop.permute.xlu0 %3187
        %3189 = vrot.lane.b32.xlu0 %v2593, 12
        %v3190 = vpop.permute.xlu0 %3189
        %3191 = vrot.lane.b32.xlu0 %v2594, 12
        %v3192 = vpop.permute.xlu0 %3191
        %3193 = vrot.lane.b32.xlu0 %v2595, 12
        %v3194 = vpop.permute.xlu0 %3193
        %3195 = vrot.lane.b32.xlu0 %v2596, 12
        %v3196 = vpop.permute.xlu0 %3195
        %3197 = vrot.lane.b32.xlu0 %v2597, 12
        %v3198 = vpop.permute.xlu0 %3197
        %3199 = vrot.lane.b32.xlu0 %v2598, 12
        %v3200 = vpop.permute.xlu0 %3199
        %3201 = vrot.lane.b32.xlu0 %v2599, 12
        %v3202 = vpop.permute.xlu0 %3201
        %3203 = vrot.lane.b32.xlu0 %v2600, 12
        %v3204 = vpop.permute.xlu0 %3203
        %3205 = vrot.lane.b32.xlu0 %v2601, 12
        %v3206 = vpop.permute.xlu0 %3205
        %3207 = vrot.lane.b32.xlu0 %v2602, 12
        %v3208 = vpop.permute.xlu0 %3207
        %3209 = vrot.lane.b32.xlu0 %v2603, 12
        %v3210 = vpop.permute.xlu0 %3209
        %3211 = vrot.lane.b32.xlu0 %v2604, 12
        %v3212 = vpop.permute.xlu0 %3211
        %3213 = vrot.lane.b32.xlu0 %v2605, 12
        %v3214 = vpop.permute.xlu0 %3213
        %3279 = vrot.lane.b32.xlu0 %v2606, 15
        %v3280 = vpop.permute.xlu0 %3279
        %3281 = vrot.lane.b32.xlu0 %v2607, 15
        %v3282 = vpop.permute.xlu0 %3281
        %3283 = vrot.lane.b32.xlu0 %v2608, 15
        %v3284 = vpop.permute.xlu0 %3283
        %3285 = vrot.lane.b32.xlu0 %v2609, 15
        %v3286 = vpop.permute.xlu0 %3285
        %3287 = vrot.lane.b32.xlu0 %v2610, 15
        %v3288 = vpop.permute.xlu0 %3287
        %3289 = vrot.lane.b32.xlu0 %v2611, 15
        %v3290 = vpop.permute.xlu0 %3289
        %3291 = vrot.lane.b32.xlu0 %v2612, 15
        %v3292 = vpop.permute.xlu0 %3291
        %3293 = vrot.lane.b32.xlu0 %v2613, 15
        %v3294 = vpop.permute.xlu0 %3293
        %3295 = vrot.lane.b32.xlu0 %v2614, 15
        %v3296 = vpop.permute.xlu0 %3295
        %3297 = vrot.lane.b32.xlu0 %v2615, 15
        %v3298 = vpop.permute.xlu0 %3297
        %3299 = vrot.lane.b32.xlu0 %v2616, 15
        %v3300 = vpop.permute.xlu0 %3299
        %3301 = vrot.lane.b32.xlu0 %v2617, 15
        %v3302 = vpop.permute.xlu0 %3301
        %3303 = vrot.lane.b32.xlu0 %v2618, 15
        %v3304 = vpop.permute.xlu0 %3303
        %3305 = vrot.lane.b32.xlu0 %v2619, 15
        %v3306 = vpop.permute.xlu0 %3305
        %3307 = vrot.lane.b32.xlu0 %v2620, 15
        %v3308 = vpop.permute.xlu0 %3307
        %3309 = vrot.lane.b32.xlu0 %v2621, 15
        %v3310 = vpop.permute.xlu0 %3309
        %3311 = vrot.lane.b32.xlu0 %v2622, 15
        %v3312 = vpop.permute.xlu0 %3311
        %3313 = vrot.lane.b32.xlu0 %v2623, 15
        %v3314 = vpop.permute.xlu0 %3313
        %3315 = vrot.lane.b32.xlu0 %v2624, 15
        %v3316 = vpop.permute.xlu0 %3315
        %3317 = vrot.lane.b32.xlu0 %v2625, 15
        %v3318 = vpop.permute.xlu0 %3317
        %3319 = vrot.lane.b32.xlu0 %v2626, 15
        %v3320 = vpop.permute.xlu0 %3319
        %3321 = vrot.lane.b32.xlu0 %v2627, 15
        %v3322 = vpop.permute.xlu0 %3321
        %3323 = vrot.lane.b32.xlu0 %v2628, 15
        %v3324 = vpop.permute.xlu0 %3323
        %3325 = vrot.lane.b32.xlu0 %v2629, 15
        %v3326 = vpop.permute.xlu0 %3325
        %3327 = vrot.lane.b32.xlu0 %v2630, 15
        %v3328 = vpop.permute.xlu0 %3327
        %3329 = vrot.lane.b32.xlu0 %v2631, 15
        %v3330 = vpop.permute.xlu0 %3329
        %3331 = vrot.lane.b32.xlu0 %v2632, 15
        %v3332 = vpop.permute.xlu0 %3331
        %3333 = vrot.lane.b32.xlu0 %v2633, 15
        %v3334 = vpop.permute.xlu0 %3333
        %3335 = vrot.lane.b32.xlu0 %v2634, 15
        %v3336 = vpop.permute.xlu0 %3335
        %3337 = vrot.lane.b32.xlu0 %v2635, 15
        %v3338 = vpop.permute.xlu0 %3337
        %3339 = vrot.lane.b32.xlu0 %v2636, 15
        %v3340 = vpop.permute.xlu0 %3339
        %3341 = vrot.lane.b32.xlu0 %v2637, 15
        %v3342 = vpop.permute.xlu0 %3341
        %3407 = vrot.lane.b32.xlu0 %v2639, 18
        %v3408 = vpop.permute.xlu0 %3407
        %3409 = vrot.lane.b32.xlu0 %v2640, 18
        %v3410 = vpop.permute.xlu0 %3409
        %3411 = vrot.lane.b32.xlu0 %v2641, 18
        %v3412 = vpop.permute.xlu0 %3411
        %3413 = vrot.lane.b32.xlu0 %v2642, 18
        %v3414 = vpop.permute.xlu0 %3413
        %3415 = vrot.lane.b32.xlu0 %v2643, 18
        %v3416 = vpop.permute.xlu0 %3415
        %3417 = vrot.lane.b32.xlu0 %v2644, 18
        %v3418 = vpop.permute.xlu0 %3417
        %3419 = vrot.lane.b32.xlu0 %v2645, 18
        %v3420 = vpop.permute.xlu0 %3419
        %3421 = vrot.lane.b32.xlu0 %v2646, 18
        %v3422 = vpop.permute.xlu0 %3421
        %3423 = vrot.lane.b32.xlu0 %v2647, 18
        %v3424 = vpop.permute.xlu0 %3423
        %3425 = vrot.lane.b32.xlu0 %v2648, 18
        %v3426 = vpop.permute.xlu0 %3425
        %3427 = vrot.lane.b32.xlu0 %v2649, 18
        %v3428 = vpop.permute.xlu0 %3427
        %3429 = vrot.lane.b32.xlu0 %v2650, 18
        %v3430 = vpop.permute.xlu0 %3429
        %3431 = vrot.lane.b32.xlu0 %v2651, 18
        %v3432 = vpop.permute.xlu0 %3431
        %3433 = vrot.lane.b32.xlu0 %v2652, 18
        %v3434 = vpop.permute.xlu0 %3433
        %3435 = vrot.lane.b32.xlu0 %v2653, 18
        %v3436 = vpop.permute.xlu0 %3435
        %3437 = vrot.lane.b32.xlu0 %v2654, 18
        %v3438 = vpop.permute.xlu0 %3437
        %3439 = vrot.lane.b32.xlu0 %v2655, 18
        %v3440 = vpop.permute.xlu0 %3439
        %3441 = vrot.lane.b32.xlu0 %v2656, 18
        %v3442 = vpop.permute.xlu0 %3441
        %3443 = vrot.lane.b32.xlu0 %v2657, 18
        %v3444 = vpop.permute.xlu0 %3443
        %3445 = vrot.lane.b32.xlu0 %v2658, 18
        %v3446 = vpop.permute.xlu0 %3445
        %3447 = vrot.lane.b32.xlu0 %v2659, 18
        %v3448 = vpop.permute.xlu0 %3447
        %3449 = vrot.lane.b32.xlu0 %v2660, 18
        %v3450 = vpop.permute.xlu0 %3449
        %3451 = vrot.lane.b32.xlu0 %v2661, 18
        %v3452 = vpop.permute.xlu0 %3451
        %3453 = vrot.lane.b32.xlu0 %v2662, 18
        %v3454 = vpop.permute.xlu0 %3453
        %3455 = vrot.lane.b32.xlu0 %v2663, 18
        %v3456 = vpop.permute.xlu0 %3455
        %3457 = vrot.lane.b32.xlu0 %v2664, 18
        %v3458 = vpop.permute.xlu0 %3457
        %3459 = vrot.lane.b32.xlu0 %v2665, 18
        %v3460 = vpop.permute.xlu0 %3459
        %3461 = vrot.lane.b32.xlu0 %v2666, 18
        %v3462 = vpop.permute.xlu0 %3461
        %3463 = vrot.lane.b32.xlu0 %v2667, 18
        %v3464 = vpop.permute.xlu0 %3463
        %3465 = vrot.lane.b32.xlu0 %v2668, 18
        %v3466 = vpop.permute.xlu0 %3465
        %3467 = vrot.lane.b32.xlu0 %v2669, 18
        %v3468 = vpop.permute.xlu0 %3467
        %3469 = vrot.lane.b32.xlu0 %v2670, 18
        %v3470 = vpop.permute.xlu0 %3469
        %3535 = vrot.lane.b32.xlu0 %v2671, 21
        %v3536 = vpop.permute.xlu0 %3535
        %3537 = vrot.lane.b32.xlu0 %v2672, 21
        %v3538 = vpop.permute.xlu0 %3537
        %3539 = vrot.lane.b32.xlu0 %v2673, 21
        %v3540 = vpop.permute.xlu0 %3539
        %3541 = vrot.lane.b32.xlu0 %v2674, 21
        %v3542 = vpop.permute.xlu0 %3541
        %3543 = vrot.lane.b32.xlu0 %v2675, 21
        %v3544 = vpop.permute.xlu0 %3543
        %3545 = vrot.lane.b32.xlu0 %v2676, 21
        %v3546 = vpop.permute.xlu0 %3545
        %3547 = vrot.lane.b32.xlu0 %v2677, 21
        %v3548 = vpop.permute.xlu0 %3547
        %3549 = vrot.lane.b32.xlu0 %v2678, 21
        %v3550 = vpop.permute.xlu0 %3549
        %3551 = vrot.lane.b32.xlu0 %v2679, 21
        %v3552 = vpop.permute.xlu0 %3551
        %3553 = vrot.lane.b32.xlu0 %v2680, 21
        %v3554 = vpop.permute.xlu0 %3553
        %3555 = vrot.lane.b32.xlu0 %v2681, 21
        %v3556 = vpop.permute.xlu0 %3555
        %3557 = vrot.lane.b32.xlu0 %v2682, 21
        %v3558 = vpop.permute.xlu0 %3557
        %3559 = vrot.lane.b32.xlu0 %v2683, 21
        %v3560 = vpop.permute.xlu0 %3559
        %3561 = vrot.lane.b32.xlu0 %v2684, 21
        %v3562 = vpop.permute.xlu0 %3561
        %3563 = vrot.lane.b32.xlu0 %v2685, 21
        %v3564 = vpop.permute.xlu0 %3563
        %3565 = vrot.lane.b32.xlu0 %v2686, 21
        %v3566 = vpop.permute.xlu0 %3565
        %3567 = vrot.lane.b32.xlu0 %v2687, 21
        %v3568 = vpop.permute.xlu0 %3567
        %3569 = vrot.lane.b32.xlu0 %v2688, 21
        %v3570 = vpop.permute.xlu0 %3569
        %3571 = vrot.lane.b32.xlu0 %v2689, 21
        %v3572 = vpop.permute.xlu0 %3571
        %3573 = vrot.lane.b32.xlu0 %v2690, 21
        %v3574 = vpop.permute.xlu0 %3573
        %3575 = vrot.lane.b32.xlu0 %v2691, 21
        %v3576 = vpop.permute.xlu0 %3575
        %3577 = vrot.lane.b32.xlu0 %v2692, 21
        %v3578 = vpop.permute.xlu0 %3577
        %3579 = vrot.lane.b32.xlu0 %v2693, 21
        %v3580 = vpop.permute.xlu0 %3579
        %3581 = vrot.lane.b32.xlu0 %v2694, 21
        %v3582 = vpop.permute.xlu0 %3581
        %3583 = vrot.lane.b32.xlu0 %v2695, 21
        %v3584 = vpop.permute.xlu0 %3583
        %3585 = vrot.lane.b32.xlu0 %v2696, 21
        %v3586 = vpop.permute.xlu0 %3585
        %3587 = vrot.lane.b32.xlu0 %v2697, 21
        %v3588 = vpop.permute.xlu0 %3587
        %3589 = vrot.lane.b32.xlu0 %v2698, 21
        %v3590 = vpop.permute.xlu0 %3589
        %3591 = vrot.lane.b32.xlu0 %v2699, 21
        %v3592 = vpop.permute.xlu0 %3591
        %3593 = vrot.lane.b32.xlu0 %v2700, 21
        %v3594 = vpop.permute.xlu0 %3593
        %3595 = vrot.lane.b32.xlu0 %v2701, 21
        %v3596 = vpop.permute.xlu0 %3595
        %3597 = vrot.lane.b32.xlu0 %v2702, 21
        %v3598 = vpop.permute.xlu0 %3597
        %3663 = vrot.lane.b32.xlu0 %v2703, 24
        %v3664 = vpop.permute.xlu0 %3663
        %3665 = vrot.lane.b32.xlu0 %v2704, 24
        %v3666 = vpop.permute.xlu0 %3665
        %3667 = vrot.lane.b32.xlu0 %v2705, 24
        %v3668 = vpop.permute.xlu0 %3667
        %3669 = vrot.lane.b32.xlu0 %v2706, 24
        %v3670 = vpop.permute.xlu0 %3669
        %3671 = vrot.lane.b32.xlu0 %v2707, 24
        %v3672 = vpop.permute.xlu0 %3671
        %3673 = vrot.lane.b32.xlu0 %v2708, 24
        %v3674 = vpop.permute.xlu0 %3673
        %3675 = vrot.lane.b32.xlu0 %v2709, 24
        %v3676 = vpop.permute.xlu0 %3675
        %3677 = vrot.lane.b32.xlu0 %v2710, 24
        %v3678 = vpop.permute.xlu0 %3677
        %3679 = vrot.lane.b32.xlu0 %v2711, 24
        %v3680 = vpop.permute.xlu0 %3679
        %3681 = vrot.lane.b32.xlu0 %v2712, 24
        %v3682 = vpop.permute.xlu0 %3681
        %3683 = vrot.lane.b32.xlu0 %v2713, 24
        %v3684 = vpop.permute.xlu0 %3683
        %3685 = vrot.lane.b32.xlu0 %v2714, 24
        %v3686 = vpop.permute.xlu0 %3685
        %3687 = vrot.lane.b32.xlu0 %v2715, 24
        %v3688 = vpop.permute.xlu0 %3687
        %3689 = vrot.lane.b32.xlu0 %v2716, 24
        %v3690 = vpop.permute.xlu0 %3689
        %3691 = vrot.lane.b32.xlu0 %v2717, 24
        %v3692 = vpop.permute.xlu0 %3691
        %3693 = vrot.lane.b32.xlu0 %v2718, 24
        %v3694 = vpop.permute.xlu0 %3693
        %3695 = vrot.lane.b32.xlu0 %v2719, 24
        %v3696 = vpop.permute.xlu0 %3695
        %3697 = vrot.lane.b32.xlu0 %v2720, 24
        %v3698 = vpop.permute.xlu0 %3697
        %3699 = vrot.lane.b32.xlu0 %v2721, 24
        %v3700 = vpop.permute.xlu0 %3699
        %3701 = vrot.lane.b32.xlu0 %v2722, 24
        %v3702 = vpop.permute.xlu0 %3701
        %3703 = vrot.lane.b32.xlu0 %v2723, 24
        %v3704 = vpop.permute.xlu0 %3703
        %3705 = vrot.lane.b32.xlu0 %v2724, 24
        %v3706 = vpop.permute.xlu0 %3705
        %3707 = vrot.lane.b32.xlu0 %v2725, 24
        %v3708 = vpop.permute.xlu0 %3707
        %3709 = vrot.lane.b32.xlu0 %v2726, 24
        %v3710 = vpop.permute.xlu0 %3709
        %3711 = vrot.lane.b32.xlu0 %v2727, 24
        %v3712 = vpop.permute.xlu0 %3711
        %3713 = vrot.lane.b32.xlu0 %v2728, 24
        %v3714 = vpop.permute.xlu0 %3713
        %3715 = vrot.lane.b32.xlu0 %v2729, 24
        %v3716 = vpop.permute.xlu0 %3715
        %3717 = vrot.lane.b32.xlu0 %v2730, 24
        %v3718 = vpop.permute.xlu0 %3717
        %3719 = vrot.lane.b32.xlu0 %v2731, 24
        %v3720 = vpop.permute.xlu0 %3719
        %3721 = vrot.lane.b32.xlu0 %v2732, 24
        %v3722 = vpop.permute.xlu0 %3721
        %3723 = vrot.lane.b32.xlu0 %v2733, 24
        %v3724 = vpop.permute.xlu0 %3723
        %3725 = vrot.lane.b32.xlu0 %v2734, 24
        %v3726 = vpop.permute.xlu0 %3725
        %v3759 = vsel %vm1725, %v2446, %v2768
        %v3760 = vsel %vm1725, %v2447, %v2770
        %v3761 = vsel %vm1725, %v2448, %v2772
        %v3762 = vsel %vm1725, %v2449, %v2774
        %v3763 = vsel %vm1725, %v2450, %v2776
        %v3764 = vsel %vm1725, %v2451, %v2778
        %v3765 = vsel %vm1725, %v2452, %v2780
        %v3766 = vsel %vm1725, %v2453, %v2782
        %v3767 = vsel %vm1725, %v2454, %v2784
        %v3768 = vsel %vm1725, %v2455, %v2786
        %v3769 = vsel %vm1725, %v2456, %v2788
        %v3770 = vsel %vm1725, %v2457, %v2790
        %v3771 = vsel %vm1725, %v2458, %v2792
        %v3772 = vsel %vm1725, %v2459, %v2794
        %v3773 = vsel %vm1725, %v2460, %v2796
        %v3774 = vsel %vm1725, %v2461, %v2798
        %v3775 = vsel %vm1725, %v2462, %v2800
        %v3776 = vsel %vm1725, %v2463, %v2802
        %v3777 = vsel %vm1725, %v2464, %v2804
        %v3778 = vsel %vm1725, %v2465, %v2806
        %v3779 = vsel %vm1725, %v2466, %v2808
        %v3780 = vsel %vm1725, %v2467, %v2810
        %v3781 = vsel %vm1725, %v2468, %v2812
        %v3782 = vsel %vm1725, %v2469, %v2814
        %v3783 = vsel %vm1725, %v2470, %v2816
        %v3784 = vsel %vm1725, %v2471, %v2818
        %v3785 = vsel %vm1725, %v2472, %v2820
        %v3786 = vsel %vm1725, %v2473, %v2822
        %v3787 = vsel %vm1725, %v2474, %v2824
        %v3788 = vsel %vm1725, %v2475, %v2826
        %v3789 = vsel %vm1725, %v2476, %v2828
        %v3790 = vsel %vm1725, %v2477, %v2830
        %v3791 = vsel %vm1758, %v3759, %v2896
        %v3792 = vsel %vm1758, %v3760, %v2898
        %v3793 = vsel %vm1758, %v3761, %v2900
        %v3794 = vsel %vm1758, %v3762, %v2902
        %v3795 = vsel %vm1758, %v3763, %v2904
        %v3796 = vsel %vm1758, %v3764, %v2906
        %v3797 = vsel %vm1758, %v3765, %v2908
        %v3798 = vsel %vm1758, %v3766, %v2910
        %v3799 = vsel %vm1758, %v3767, %v2912
        %v3800 = vsel %vm1758, %v3768, %v2914
        %v3801 = vsel %vm1758, %v3769, %v2916
        %v3802 = vsel %vm1758, %v3770, %v2918
        %v3803 = vsel %vm1758, %v3771, %v2920
        %v3804 = vsel %vm1758, %v3772, %v2922
        %v3805 = vsel %vm1758, %v3773, %v2924
        %v3806 = vsel %vm1758, %v3774, %v2926
        %v3807 = vsel %vm1758, %v3775, %v2928
        %v3808 = vsel %vm1758, %v3776, %v2930
        %v3809 = vsel %vm1758, %v3777, %v2932
        %v3810 = vsel %vm1758, %v3778, %v2934
        %v3811 = vsel %vm1758, %v3779, %v2936
        %v3812 = vsel %vm1758, %v3780, %v2938
        %v3813 = vsel %vm1758, %v3781, %v2940
        %v3814 = vsel %vm1758, %v3782, %v2942
        %v3815 = vsel %vm1758, %v3783, %v2944
        %v3816 = vsel %vm1758, %v3784, %v2946
        %v3817 = vsel %vm1758, %v3785, %v2948
        %v3818 = vsel %vm1758, %v3786, %v2950
        %v3819 = vsel %vm1758, %v3787, %v2952
        %v3820 = vsel %vm1758, %v3788, %v2954
        %v3821 = vsel %vm1758, %v3789, %v2956
        %v3822 = vsel %vm1758, %v3790, %v2958
        %v3823 = vsel %vm1791, %v3791, %v3024
        %v3824 = vsel %vm1791, %v3792, %v3026
        %v3825 = vsel %vm1791, %v3793, %v3028
        %v3826 = vsel %vm1791, %v3794, %v3030
        %v3827 = vsel %vm1791, %v3795, %v3032
        %v3828 = vsel %vm1791, %v3796, %v3034
        %v3829 = vsel %vm1791, %v3797, %v3036
        %v3830 = vsel %vm1791, %v3798, %v3038
        %v3831 = vsel %vm1791, %v3799, %v3040
        %v3832 = vsel %vm1791, %v3800, %v3042
        %v3833 = vsel %vm1791, %v3801, %v3044
        %v3834 = vsel %vm1791, %v3802, %v3046
        %v3835 = vsel %vm1791, %v3803, %v3048
        %v3836 = vsel %vm1791, %v3804, %v3050
        %v3837 = vsel %vm1791, %v3805, %v3052
        %v3838 = vsel %vm1791, %v3806, %v3054
        %v3839 = vsel %vm1791, %v3807, %v3056
        %v3840 = vsel %vm1791, %v3808, %v3058
        %v3841 = vsel %vm1791, %v3809, %v3060
        %v3842 = vsel %vm1791, %v3810, %v3062
        %v3843 = vsel %vm1791, %v3811, %v3064
        %v3844 = vsel %vm1791, %v3812, %v3066
        %v3845 = vsel %vm1791, %v3813, %v3068
        %v3846 = vsel %vm1791, %v3814, %v3070
        %v3847 = vsel %vm1791, %v3815, %v3072
        %v3848 = vsel %vm1791, %v3816, %v3074
        %v3849 = vsel %vm1791, %v3817, %v3076
        %v3850 = vsel %vm1791, %v3818, %v3078
        %v3851 = vsel %vm1791, %v3819, %v3080
        %v3852 = vsel %vm1791, %v3820, %v3082
        %v3853 = vsel %vm1791, %v3821, %v3084
        %v3854 = vsel %vm1791, %v3822, %v3086
        %v3855 = vsel %vm1824, %v3823, %v3152
        %v3856 = vsel %vm1824, %v3824, %v3154
        %v3857 = vsel %vm1824, %v3825, %v3156
        %v3858 = vsel %vm1824, %v3826, %v3158
        %v3859 = vsel %vm1824, %v3827, %v3160
        %v3860 = vsel %vm1824, %v3828, %v3162
        %v3861 = vsel %vm1824, %v3829, %v3164
        %v3862 = vsel %vm1824, %v3830, %v3166
        %v3863 = vsel %vm1824, %v3831, %v3168
        %v3864 = vsel %vm1824, %v3832, %v3170
        %v3865 = vsel %vm1824, %v3833, %v3172
        %v3866 = vsel %vm1824, %v3834, %v3174
        %v3867 = vsel %vm1824, %v3835, %v3176
        %v3868 = vsel %vm1824, %v3836, %v3178
        %v3869 = vsel %vm1824, %v3837, %v3180
        %v3870 = vsel %vm1824, %v3838, %v3182
        %v3871 = vsel %vm1824, %v3839, %v3184
        %v3872 = vsel %vm1824, %v3840, %v3186
        %v3873 = vsel %vm1824, %v3841, %v3188
        %v3874 = vsel %vm1824, %v3842, %v3190
        %v3875 = vsel %vm1824, %v3843, %v3192
        %v3876 = vsel %vm1824, %v3844, %v3194
        %v3877 = vsel %vm1824, %v3845, %v3196
        %v3878 = vsel %vm1824, %v3846, %v3198
        %v3879 = vsel %vm1824, %v3847, %v3200
        %v3880 = vsel %vm1824, %v3848, %v3202
        %v3881 = vsel %vm1824, %v3849, %v3204
        %v3882 = vsel %vm1824, %v3850, %v3206
        %v3883 = vsel %vm1824, %v3851, %v3208
        %v3884 = vsel %vm1824, %v3852, %v3210
        %v3885 = vsel %vm1824, %v3853, %v3212
        %v3886 = vsel %vm1824, %v3854, %v3214
        %v3887 = vsel %vm1857, %v3855, %v3280
        %v3888 = vsel %vm1857, %v3856, %v3282
        %v3889 = vsel %vm1857, %v3857, %v3284
        %v3890 = vsel %vm1857, %v3858, %v3286
        %v3891 = vsel %vm1857, %v3859, %v3288
        %v3892 = vsel %vm1857, %v3860, %v3290
        %v3893 = vsel %vm1857, %v3861, %v3292
        %v3894 = vsel %vm1857, %v3862, %v3294
        %v3895 = vsel %vm1857, %v3863, %v3296
        %v3896 = vsel %vm1857, %v3864, %v3298
        %v3897 = vsel %vm1857, %v3865, %v3300
        %v3898 = vsel %vm1857, %v3866, %v3302
        %v3899 = vsel %vm1857, %v3867, %v3304
        %v3900 = vsel %vm1857, %v3868, %v3306
        %v3901 = vsel %vm1857, %v3869, %v3308
        %v3902 = vsel %vm1857, %v3870, %v3310
        %v3903 = vsel %vm1857, %v3871, %v3312
        %v3904 = vsel %vm1857, %v3872, %v3314
        %v3905 = vsel %vm1857, %v3873, %v3316
        %v3906 = vsel %vm1857, %v3874, %v3318
        %v3907 = vsel %vm1857, %v3875, %v3320
        %v3908 = vsel %vm1857, %v3876, %v3322
        %v3909 = vsel %vm1857, %v3877, %v3324
        %v3910 = vsel %vm1857, %v3878, %v3326
        %v3911 = vsel %vm1857, %v3879, %v3328
        %v3912 = vsel %vm1857, %v3880, %v3330
        %v3913 = vsel %vm1857, %v3881, %v3332
        %v3914 = vsel %vm1857, %v3882, %v3334
        %v3915 = vsel %vm1857, %v3883, %v3336
        %v3916 = vsel %vm1857, %v3884, %v3338
        %v3917 = vsel %vm1857, %v3885, %v3340
        %v3918 = vsel %vm1857, %v3886, %v3342
        %v3919 = vsel %vm1890, %v3887, %v3408
        %v3920 = vsel %vm1890, %v3888, %v3410
        %v3921 = vsel %vm1890, %v3889, %v3412
        %v3922 = vsel %vm1890, %v3890, %v3414
        %v3923 = vsel %vm1890, %v3891, %v3416
        %v3924 = vsel %vm1890, %v3892, %v3418
        %v3925 = vsel %vm1890, %v3893, %v3420
        %v3926 = vsel %vm1890, %v3894, %v3422
        %v3927 = vsel %vm1890, %v3895, %v3424
        %v3928 = vsel %vm1890, %v3896, %v3426
        %v3929 = vsel %vm1890, %v3897, %v3428
        %v3930 = vsel %vm1890, %v3898, %v3430
        %v3931 = vsel %vm1890, %v3899, %v3432
        %v3932 = vsel %vm1890, %v3900, %v3434
        %v3933 = vsel %vm1890, %v3901, %v3436
        %v3934 = vsel %vm1890, %v3902, %v3438
        %v3935 = vsel %vm1890, %v3903, %v3440
        %v3936 = vsel %vm1890, %v3904, %v3442
        %v3937 = vsel %vm1890, %v3905, %v3444
        %v3938 = vsel %vm1890, %v3906, %v3446
        %v3939 = vsel %vm1890, %v3907, %v3448
        %v3940 = vsel %vm1890, %v3908, %v3450
        %v3941 = vsel %vm1890, %v3909, %v3452
        %v3942 = vsel %vm1890, %v3910, %v3454
        %v3943 = vsel %vm1890, %v3911, %v3456
        %v3944 = vsel %vm1890, %v3912, %v3458
        %v3945 = vsel %vm1890, %v3913, %v3460
        %v3946 = vsel %vm1890, %v3914, %v3462
        %v3947 = vsel %vm1890, %v3915, %v3464
        %v3948 = vsel %vm1890, %v3916, %v3466
        %v3949 = vsel %vm1890, %v3917, %v3468
        %v3950 = vsel %vm1890, %v3918, %v3470
        %v3951 = vsel %vm1923, %v3919, %v3536
        %v3952 = vsel %vm1923, %v3920, %v3538
        %v3953 = vsel %vm1923, %v3921, %v3540
        %v3954 = vsel %vm1923, %v3922, %v3542
        %v3955 = vsel %vm1923, %v3923, %v3544
        %v3956 = vsel %vm1923, %v3924, %v3546
        %v3957 = vsel %vm1923, %v3925, %v3548
        %v3958 = vsel %vm1923, %v3926, %v3550
        %v3959 = vsel %vm1923, %v3927, %v3552
        %v3960 = vsel %vm1923, %v3928, %v3554
        %v3961 = vsel %vm1923, %v3929, %v3556
        %v3962 = vsel %vm1923, %v3930, %v3558
        %v3963 = vsel %vm1923, %v3931, %v3560
        %v3964 = vsel %vm1923, %v3932, %v3562
        %v3965 = vsel %vm1923, %v3933, %v3564
        %v3966 = vsel %vm1923, %v3934, %v3566
        %v3967 = vsel %vm1923, %v3935, %v3568
        %v3968 = vsel %vm1923, %v3936, %v3570
        %v3969 = vsel %vm1923, %v3937, %v3572
        %v3970 = vsel %vm1923, %v3938, %v3574
        %v3971 = vsel %vm1923, %v3939, %v3576
        %v3972 = vsel %vm1923, %v3940, %v3578
        %v3973 = vsel %vm1923, %v3941, %v3580
        %v3974 = vsel %vm1923, %v3942, %v3582
        %v3975 = vsel %vm1923, %v3943, %v3584
        %v3976 = vsel %vm1923, %v3944, %v3586
        %v3977 = vsel %vm1923, %v3945, %v3588
        %v3978 = vsel %vm1923, %v3946, %v3590
        %v3979 = vsel %vm1923, %v3947, %v3592
        %v3980 = vsel %vm1923, %v3948, %v3594
        %v3981 = vsel %vm1923, %v3949, %v3596
        %v3982 = vsel %vm1923, %v3950, %v3598
        %v3983 = vsel %vm1956, %v3951, %v3664
        %v3984 = vsel %vm1956, %v3952, %v3666
        %v3985 = vsel %vm1956, %v3953, %v3668
        %v3986 = vsel %vm1956, %v3954, %v3670
        %v3987 = vsel %vm1956, %v3955, %v3672
        %v3988 = vsel %vm1956, %v3956, %v3674
        %v3989 = vsel %vm1956, %v3957, %v3676
        %v3990 = vsel %vm1956, %v3958, %v3678
        %v3991 = vsel %vm1956, %v3959, %v3680
        %v3992 = vsel %vm1956, %v3960, %v3682
        %v3993 = vsel %vm1956, %v3961, %v3684
        %v3994 = vsel %vm1956, %v3962, %v3686
        %v3995 = vsel %vm1956, %v3963, %v3688
        %v3996 = vsel %vm1956, %v3964, %v3690
        %v3997 = vsel %vm1956, %v3965, %v3692
        %v3998 = vsel %vm1956, %v3966, %v3694
        %v3999 = vsel %vm1956, %v3967, %v3696
        %v4000 = vsel %vm1956, %v3968, %v3698
        %v4001 = vsel %vm1956, %v3969, %v3700
        %v4002 = vsel %vm1956, %v3970, %v3702
        %v4003 = vsel %vm1956, %v3971, %v3704
        %v4004 = vsel %vm1956, %v3972, %v3706
        %v4005 = vsel %vm1956, %v3973, %v3708
        %v4006 = vsel %vm1956, %v3974, %v3710
        %v4007 = vsel %vm1956, %v3975, %v3712
        %v4008 = vsel %vm1956, %v3976, %v3714
        %v4009 = vsel %vm1956, %v3977, %v3716
        %v4010 = vsel %vm1956, %v3978, %v3718
        %v4011 = vsel %vm1956, %v3979, %v3720
        %v4012 = vsel %vm1956, %v3980, %v3722
        %v4013 = vsel %vm1956, %v3981, %v3724
        %v4014 = vsel %vm1956, %v3982, %v3726
        %v4015 = vld [vmem:[%s3] sm:$0xff]
        %v4016 = vld [vmem:[%s3 + $0x8] sm:$0xff]
        %v4017 = vld [vmem:[%s3 + $0x10] sm:$0xff]
        %v4018 = vld [vmem:[%s3 + $0x18] sm:$0x7]
        %v4019 = vld [vmem:[%s4] sm:$0x1]
        %v4021 = vlaneseq
        %v4022 = vshrl.u32 %v4021, 7
        %v4023 = vsub.s32 0, %v4022
        %v4024 = vrot.slane %v4019, %v4023
        %v4027 = vsel %vm2000, %v3983, 0
        %v4030 = vsel %vm2000, %v3984, 0
        %v4033 = vsel %vm2000, %v3985, 0
        %v4036 = vsel %vm2000, %v3986, 0
        %v4039 = vsel %vm2000, %v3987, 0
        %v4042 = vsel %vm2000, %v3988, 0
        %v4045 = vsel %vm2000, %v3989, 0
        %v4048 = vsel %vm2000, %v3990, 0
        %v4051 = vsel %vm2000, %v3991, 0
        %v4054 = vsel %vm2000, %v3992, 0
        %v4057 = vsel %vm2000, %v3993, 0
        %v4060 = vsel %vm2000, %v3994, 0
        %v4063 = vsel %vm2000, %v3995, 0
        %v4066 = vsel %vm2000, %v3996, 0
        %v4069 = vsel %vm2000, %v3997, 0
        %v4072 = vsel %vm2000, %v3998, 0
        %v4075 = vsel %vm2000, %v3999, 0
        %v4078 = vsel %vm2000, %v4000, 0
        %v4081 = vsel %vm2000, %v4001, 0
        %v4084 = vsel %vm2000, %v4002, 0
        %v4087 = vsel %vm2000, %v4003, 0
        %v4090 = vsel %vm2000, %v4004, 0
        %v4093 = vsel %vm2000, %v4005, 0
        %v4096 = vsel %vm2000, %v4006, 0
        %v4099 = vsel %vm2000, %v4007, 0
        %v4102 = vsel %vm2000, %v4008, 0
        %v4105 = vsel %vm2000, %v4009, 0
        %v4108 = vsel %vm2000, %v4010, 0
        %v4111 = vsel %vm2000, %v4011, 0
        %v4114 = vsel %vm2000, %v4012, 0
        %v4117 = vsel %vm2000, %v4013, 0
        %v4120 = vsel %vm2000, %v4014, 0
        %v4123 = vsel %vm2097, %v4018, 0
        %4125 = vmatprep.subr.mxu0 0.0
        %4126 = vmatpush1.msra.mxu0 %v4015
        %4127 = vmatprep.subr.mxu0 0.0
        %4128 = vmatpush1.msra.mxu0 %v4016
        %4129 = vmatprep.subr.mxu0 0.0
        %4130 = vmatpush1.msra.mxu0 %v4017
        %4131 = vmatprep.subr.mxu0 0.0
        %4132 = vmatpush1.msra.mxu0 %v4123
        %4133 = vmatprep.subr.mxu0 0.0
        %4134 = vmatpush1.msra.mxu0 0.0
        %4135 = vmatprep.subr.mxu0 0.0
        %4136 = vmatpush1.msra.mxu0 0.0
        %4137 = vmatprep.subr.mxu0 0.0
        %4138 = vmatpush1.msra.mxu0 0.0
        %4139 = vmatprep.subr.mxu0 0.0
        %4140 = vmatpush1.msra.mxu0 0.0
        %4141 = vmatprep.subr.mxu0 0.0
        %4142 = vmatpush1.msra.mxu0 0.0
        %4143 = vmatprep.subr.mxu0 0.0
        %4144 = vmatpush1.msra.mxu0 0.0
        %4145 = vmatprep.subr.mxu0 0.0
        %4146 = vmatpush1.msra.mxu0 0.0
        %4147 = vmatprep.subr.mxu0 0.0
        %4148 = vmatpush1.msra.mxu0 0.0
        %4149 = vmatprep.subr.mxu0 0.0
        %4150 = vmatpush1.msra.mxu0 0.0
        %4151 = vmatprep.subr.mxu0 0.0
        %4152 = vmatpush1.msra.mxu0 0.0
        %4153 = vmatprep.subr.mxu0 0.0
        %4154 = vmatpush1.msra.mxu0 0.0
        %4155 = vmatprep.subr.mxu0 0.0
        %4156 = vmatpush1.msra.mxu0 0.0
        %4157 = vmatprep.subr.mxu0 0.0
        %4158 = vmatpush1.msra.mxu0 0.0
        %4159 = vmatprep.subr.mxu0 0.0
        %4160 = vmatpush1.msra.mxu0 0.0
        %4161 = vmatprep.subr.mxu0 0.0
        %4162 = vmatpush1.msra.mxu0 0.0
        %4163 = vmatprep.subr.mxu0 0.0
        %4164 = vmatpush1.msra.mxu0 0.0
        %4165 = vmatprep.subr.mxu0 0.0
        %4166 = vmatpush1.msra.mxu0 0.0
        %4167 = vmatprep.subr.mxu0 0.0
        %4168 = vmatpush1.msra.mxu0 0.0
        %4169 = vmatprep.subr.mxu0 0.0
        %4170 = vmatpush1.msra.mxu0 0.0
        %4171 = vmatprep.subr.mxu0 0.0
        %4172 = vmatpush1.msra.mxu0 0.0
        %4173 = vmatprep.subr.mxu0 0.0
        %4174 = vmatpush1.msra.mxu0 0.0
        %4175 = vmatprep.subr.mxu0 0.0
        %4176 = vmatpush1.msra.mxu0 0.0
        %4177 = vmatprep.subr.mxu0 0.0
        %4178 = vmatpush1.msra.mxu0 0.0
        %4179 = vmatprep.subr.mxu0 0.0
        %4180 = vmatpush1.msra.mxu0 0.0
        %4181 = vmatprep.subr.mxu0 0.0
        %4182 = vmatpush1.msra.mxu0 0.0
        %4183 = vmatprep.subr.mxu0 0.0
        %4184 = vmatpush1.msra.mxu0 0.0
        %4185 = vmatprep.subr.mxu0 0.0
        %4186 = vmatpush1.msra.mxu0 0.0
        %4187 = vmatprep.subr.mxu0 0.0
        %4188 = vmatpush1.msra.mxu0 0.0
        %4189 = vmatprep.mubr.f32.mxu0 0.0
        %4190 = vmatmul.mubr.f32.gmra.mrb[0].mxu0 %v4027
        %v4191 = vpop.f32.mrb[0].mxu0
        %v4192 = vadd.f32 %v4024, %v4191
        %v4193 = vpop.f32.mrb[0].mxu0
        %4194 = vmatprep.mubr.f32.mxu0 0.0
        %4195 = vmatmul.mubr.f32.gmra.mrb[0].mxu0 %v4030
        %v4196 = vpop.f32.mrb[0].mxu0
        %v4197 = vadd.f32 %v4024, %v4196
        %v4198 = vpop.f32.mrb[0].mxu0
        %4199 = vmatprep.mubr.f32.mxu0 0.0
        %4200 = vmatmul.mubr.f32.gmra.mrb[0].mxu0 %v4033
        %v4201 = vpop.f32.mrb[0].mxu0
        %v4202 = vadd.f32 %v4024, %v4201
        %v4203 = vpop.f32.mrb[0].mxu0
        %4204 = vmatprep.mubr.f32.mxu0 0.0
        %4205 = vmatmul.mubr.f32.gmra.mrb[0].mxu0 %v4036
        %v4206 = vpop.f32.mrb[0].mxu0
        %v4207 = vadd.f32 %v4024, %v4206
        %v4208 = vpop.f32.mrb[0].mxu0
        %4209 = vmatprep.mubr.f32.mxu0 0.0
        %4210 = vmatmul.mubr.f32.gmra.mrb[0].mxu0 %v4039
        %v4211 = vpop.f32.mrb[0].mxu0
        %v4212 = vadd.f32 %v4024, %v4211
        %v4213 = vpop.f32.mrb[0].mxu0
        %4214 = vmatprep.mubr.f32.mxu0 0.0
        %4215 = vmatmul.mubr.f32.gmra.mrb[0].mxu0 %v4042
        %v4216 = vpop.f32.mrb[0].mxu0
        %v4217 = vadd.f32 %v4024, %v4216
        %v4218 = vpop.f32.mrb[0].mxu0
        %4219 = vmatprep.mubr.f32.mxu0 0.0
        %4220 = vmatmul.mubr.f32.gmra.mrb[0].mxu0 %v4045
        %v4221 = vpop.f32.mrb[0].mxu0
        %v4222 = vadd.f32 %v4024, %v4221
        %v4223 = vpop.f32.mrb[0].mxu0
        %4224 = vmatprep.mubr.f32.mxu0 0.0
        %4225 = vmatmul.mubr.f32.gmra.mrb[0].mxu0 %v4048
        %v4226 = vpop.f32.mrb[0].mxu0
        %v4227 = vadd.f32 %v4024, %v4226
        %v4228 = vpop.f32.mrb[0].mxu0
        %4229 = vmatprep.mubr.f32.mxu0 0.0
        %4230 = vmatmul.mubr.f32.gmra.mrb[0].mxu0 %v4051
        %v4231 = vpop.f32.mrb[0].mxu0
        %v4232 = vadd.f32 %v4024, %v4231
        %v4233 = vpop.f32.mrb[0].mxu0
        %4234 = vmatprep.mubr.f32.mxu0 0.0
        %4235 = vmatmul.mubr.f32.gmra.mrb[0].mxu0 %v4054
        %v4236 = vpop.f32.mrb[0].mxu0
        %v4237 = vadd.f32 %v4024, %v4236
        %v4238 = vpop.f32.mrb[0].mxu0
        %4239 = vmatprep.mubr.f32.mxu0 0.0
        %4240 = vmatmul.mubr.f32.gmra.mrb[0].mxu0 %v4057
        %v4241 = vpop.f32.mrb[0].mxu0
        %v4242 = vadd.f32 %v4024, %v4241
        %v4243 = vpop.f32.mrb[0].mxu0
        %4244 = vmatprep.mubr.f32.mxu0 0.0
        %4245 = vmatmul.mubr.f32.gmra.mrb[0].mxu0 %v4060
        %v4246 = vpop.f32.mrb[0].mxu0
        %v4247 = vadd.f32 %v4024, %v4246
        %v4248 = vpop.f32.mrb[0].mxu0
        %4249 = vmatprep.mubr.f32.mxu0 0.0
        %4250 = vmatmul.mubr.f32.gmra.mrb[0].mxu0 %v4063
        %v4251 = vpop.f32.mrb[0].mxu0
        %v4252 = vadd.f32 %v4024, %v4251
        %v4253 = vpop.f32.mrb[0].mxu0
        %4254 = vmatprep.mubr.f32.mxu0 0.0
        %4255 = vmatmul.mubr.f32.gmra.mrb[0].mxu0 %v4066
        %v4256 = vpop.f32.mrb[0].mxu0
        %v4257 = vadd.f32 %v4024, %v4256
        %v4258 = vpop.f32.mrb[0].mxu0
        %4259 = vmatprep.mubr.f32.mxu0 0.0
        %4260 = vmatmul.mubr.f32.gmra.mrb[0].mxu0 %v4069
        %v4261 = vpop.f32.mrb[0].mxu0
        %v4262 = vadd.f32 %v4024, %v4261
        %v4263 = vpop.f32.mrb[0].mxu0
        %4264 = vmatprep.mubr.f32.mxu0 0.0
        %4265 = vmatmul.mubr.f32.gmra.mrb[0].mxu0 %v4072
        %v4266 = vpop.f32.mrb[0].mxu0
        %v4267 = vadd.f32 %v4024, %v4266
        %v4268 = vpop.f32.mrb[0].mxu0
        %4269 = vmatprep.mubr.f32.mxu0 0.0
        %4270 = vmatmul.mubr.f32.gmra.mrb[0].mxu0 %v4075
        %v4271 = vpop.f32.mrb[0].mxu0
        %v4272 = vadd.f32 %v4024, %v4271
        %v4273 = vpop.f32.mrb[0].mxu0
        %4274 = vmatprep.mubr.f32.mxu0 0.0
        %4275 = vmatmul.mubr.f32.gmra.mrb[0].mxu0 %v4078
        %v4276 = vpop.f32.mrb[0].mxu0
        %v4277 = vadd.f32 %v4024, %v4276
        %v4278 = vpop.f32.mrb[0].mxu0
        %4279 = vmatprep.mubr.f32.mxu0 0.0
        %4280 = vmatmul.mubr.f32.gmra.mrb[0].mxu0 %v4081
        %v4281 = vpop.f32.mrb[0].mxu0
        %v4282 = vadd.f32 %v4024, %v4281
        %v4283 = vpop.f32.mrb[0].mxu0
        %4284 = vmatprep.mubr.f32.mxu0 0.0
        %4285 = vmatmul.mubr.f32.gmra.mrb[0].mxu0 %v4084
        %v4286 = vpop.f32.mrb[0].mxu0
        %v4287 = vadd.f32 %v4024, %v4286
        %v4288 = vpop.f32.mrb[0].mxu0
        %4289 = vmatprep.mubr.f32.mxu0 0.0
        %4290 = vmatmul.mubr.f32.gmra.mrb[0].mxu0 %v4087
        %v4291 = vpop.f32.mrb[0].mxu0
        %v4292 = vadd.f32 %v4024, %v4291
        %v4293 = vpop.f32.mrb[0].mxu0
        %4294 = vmatprep.mubr.f32.mxu0 0.0
        %4295 = vmatmul.mubr.f32.gmra.mrb[0].mxu0 %v4090
        %v4296 = vpop.f32.mrb[0].mxu0
        %v4297 = vadd.f32 %v4024, %v4296
        %v4298 = vpop.f32.mrb[0].mxu0
        %4299 = vmatprep.mubr.f32.mxu0 0.0
        %4300 = vmatmul.mubr.f32.gmra.mrb[0].mxu0 %v4093
        %v4301 = vpop.f32.mrb[0].mxu0
        %v4302 = vadd.f32 %v4024, %v4301
        %v4303 = vpop.f32.mrb[0].mxu0
        %4304 = vmatprep.mubr.f32.mxu0 0.0
        %4305 = vmatmul.mubr.f32.gmra.mrb[0].mxu0 %v4096
        %v4306 = vpop.f32.mrb[0].mxu0
        %v4307 = vadd.f32 %v4024, %v4306
        %v4308 = vpop.f32.mrb[0].mxu0
        %4309 = vmatprep.mubr.f32.mxu0 0.0
        %4310 = vmatmul.mubr.f32.gmra.mrb[0].mxu0 %v4099
        %v4311 = vpop.f32.mrb[0].mxu0
        %v4312 = vadd.f32 %v4024, %v4311
        %v4313 = vpop.f32.mrb[0].mxu0
        %4314 = vmatprep.mubr.f32.mxu0 0.0
        %4315 = vmatmul.mubr.f32.gmra.mrb[0].mxu0 %v4102
        %v4316 = vpop.f32.mrb[0].mxu0
        %v4317 = vadd.f32 %v4024, %v4316
        %v4318 = vpop.f32.mrb[0].mxu0
        %4319 = vmatprep.mubr.f32.mxu0 0.0
        %4320 = vmatmul.mubr.f32.gmra.mrb[0].mxu0 %v4105
        %v4321 = vpop.f32.mrb[0].mxu0
        %v4322 = vadd.f32 %v4024, %v4321
        %v4323 = vpop.f32.mrb[0].mxu0
        %4324 = vmatprep.mubr.f32.mxu0 0.0
        %4325 = vmatmul.mubr.f32.gmra.mrb[0].mxu0 %v4108
        %v4326 = vpop.f32.mrb[0].mxu0
        %v4327 = vadd.f32 %v4024, %v4326
        %v4328 = vpop.f32.mrb[0].mxu0
        %4329 = vmatprep.mubr.f32.mxu0 0.0
        %4330 = vmatmul.mubr.f32.gmra.mrb[0].mxu0 %v4111
        %v4331 = vpop.f32.mrb[0].mxu0
        %v4332 = vadd.f32 %v4024, %v4331
        %v4333 = vpop.f32.mrb[0].mxu0
        %4334 = vmatprep.mubr.f32.mxu0 0.0
        %4335 = vmatmul.mubr.f32.gmra.mrb[0].mxu0 %v4114
        %v4336 = vpop.f32.mrb[0].mxu0
        %v4337 = vadd.f32 %v4024, %v4336
        %v4338 = vpop.f32.mrb[0].mxu0
        %4339 = vmatprep.mubr.f32.mxu0 0.0
        %4340 = vmatmul.mubr.f32.gmra.mrb[0].mxu0 %v4117
        %v4341 = vpop.f32.mrb[0].mxu0
        %v4342 = vadd.f32 %v4024, %v4341
        %v4343 = vpop.f32.mrb[0].mxu0
        %4344 = vmatprep.mubr.f32.mxu0 0.0
        %4345 = vmatmul.mubr.f32.gmra.mrb[0].mxu0 %v4120
        %v4346 = vpop.f32.mrb[0].mxu0
        %v4347 = vadd.f32 %v4024, %v4346
        %v4348 = vpop.f32.mrb[0].mxu0
        %4349 = vdwg.mxu0
        %v4350 = vmax.f32 %v4192, 0.0
        %v4351 = vmax.f32 %v4197, 0.0
        %v4352 = vmax.f32 %v4202, 0.0
        %v4353 = vmax.f32 %v4207, 0.0
        %v4354 = vmax.f32 %v4212, 0.0
        %v4355 = vmax.f32 %v4217, 0.0
        %v4356 = vmax.f32 %v4222, 0.0
        %v4357 = vmax.f32 %v4227, 0.0
        %v4358 = vmax.f32 %v4232, 0.0
        %v4359 = vmax.f32 %v4237, 0.0
        %v4360 = vmax.f32 %v4242, 0.0
        %v4361 = vmax.f32 %v4247, 0.0
        %v4362 = vmax.f32 %v4252, 0.0
        %v4363 = vmax.f32 %v4257, 0.0
        %v4364 = vmax.f32 %v4262, 0.0
        %v4365 = vmax.f32 %v4267, 0.0
        %v4366 = vmax.f32 %v4272, 0.0
        %v4367 = vmax.f32 %v4277, 0.0
        %v4368 = vmax.f32 %v4282, 0.0
        %v4369 = vmax.f32 %v4287, 0.0
        %v4370 = vmax.f32 %v4292, 0.0
        %v4371 = vmax.f32 %v4297, 0.0
        %v4372 = vmax.f32 %v4302, 0.0
        %v4373 = vmax.f32 %v4307, 0.0
        %v4374 = vmax.f32 %v4312, 0.0
        %v4375 = vmax.f32 %v4317, 0.0
        %v4376 = vmax.f32 %v4322, 0.0
        %v4377 = vmax.f32 %v4327, 0.0
        %v4378 = vmax.f32 %v4332, 0.0
        %v4379 = vmax.f32 %v4337, 0.0
        %v4380 = vmax.f32 %v4342, 0.0
        %v4381 = vmax.f32 %v4347, 0.0
        %vm4382 = vcmask 64512
        %4383 = vst.msk [vmem:[#allocation3] sm:$0xff] %vm4382, %v4350
        %4384 = vst.msk [vmem:[#allocation3 + $0x8] sm:$0xff] %vm4382, %v4351
        %4385 = vst.msk [vmem:[#allocation3 + $0x10] sm:$0xff] %vm4382, %v4352
        %4386 = vst.msk [vmem:[#allocation3 + $0x18] sm:$0xff] %vm4382, %v4353
        %4387 = vst.msk [vmem:[#allocation3 + $0x20] sm:$0xff] %vm4382, %v4354
        %4388 = vst.msk [vmem:[#allocation3 + $0x28] sm:$0xff] %vm4382, %v4355
        %4389 = vst.msk [vmem:[#allocation3 + $0x30] sm:$0xff] %vm4382, %v4356
        %4390 = vst.msk [vmem:[#allocation3 + $0x38] sm:$0xff] %vm4382, %v4357
        %4391 = vst.msk [vmem:[#allocation3 + $0x40] sm:$0xff] %vm4382, %v4358
        %4392 = vst.msk [vmem:[#allocation3 + $0x48] sm:$0xff] %vm4382, %v4359
        %4393 = vst.msk [vmem:[#allocation3 + $0x50] sm:$0xff] %vm4382, %v4360
        %4394 = vst.msk [vmem:[#allocation3 + $0x58] sm:$0xff] %vm4382, %v4361
        %4395 = vst.msk [vmem:[#allocation3 + $0x60] sm:$0xff] %vm4382, %v4362
        %4396 = vst.msk [vmem:[#allocation3 + $0x68] sm:$0xff] %vm4382, %v4363
        %4397 = vst.msk [vmem:[#allocation3 + $0x70] sm:$0xff] %vm4382, %v4364
        %4398 = vst.msk [vmem:[#allocation3 + $0x78] sm:$0xff] %vm4382, %v4365
        %4399 = vst.msk [vmem:[#allocation3 + $0x80] sm:$0xff] %vm4382, %v4366
        %4400 = vst.msk [vmem:[#allocation3 + $0x88] sm:$0xff] %vm4382, %v4367
        %4401 = vst.msk [vmem:[#allocation3 + $0x90] sm:$0xff] %vm4382, %v4368
        %4402 = vst.msk [vmem:[#allocation3 + $0x98] sm:$0xff] %vm4382, %v4369
        %4403 = vst.msk [vmem:[#allocation3 + $0xa0] sm:$0xff] %vm4382, %v4370
        %4404 = vst.msk [vmem:[#allocation3 + $0xa8] sm:$0xff] %vm4382, %v4371
        %4405 = vst.msk [vmem:[#allocation3 + $0xb0] sm:$0xff] %vm4382, %v4372
        %4406 = vst.msk [vmem:[#allocation3 + $0xb8] sm:$0xff] %vm4382, %v4373
        %4407 = vst.msk [vmem:[#allocation3 + $0xc0] sm:$0xff] %vm4382, %v4374
        %4408 = vst.msk [vmem:[#allocation3 + $0xc8] sm:$0xff] %vm4382, %v4375
        %4409 = vst.msk [vmem:[#allocation3 + $0xd0] sm:$0xff] %vm4382, %v4376
        %4410 = vst.msk [vmem:[#allocation3 + $0xd8] sm:$0xff] %vm4382, %v4377
        %4411 = vst.msk [vmem:[#allocation3 + $0xe0] sm:$0xff] %vm4382, %v4378
        %4412 = vst.msk [vmem:[#allocation3 + $0xe8] sm:$0xff] %vm4382, %v4379
        %4413 = vst.msk [vmem:[#allocation3 + $0xf0] sm:$0xff] %vm4382, %v4380
        %4414 = vst.msk [vmem:[#allocation3 + $0xf8] sm:$0xff] %vm4382, %v4381
        %v4415 = vld [vmem:[#allocation3] sm:$0xff]
        %v4416 = vld [vmem:[#allocation3 + $0x8] sm:$0xff]
        %v4417 = vld [vmem:[#allocation3 + $0x20] sm:$0xff]
        %v4418 = vld [vmem:[#allocation3 + $0x28] sm:$0xff]
        %v4419 = vld [vmem:[#allocation3 + $0x40] sm:$0xff]
        %v4420 = vld [vmem:[#allocation3 + $0x48] sm:$0xff]
        %v4421 = vld [vmem:[#allocation3 + $0x60] sm:$0xff]
        %v4422 = vld [vmem:[#allocation3 + $0x68] sm:$0xff]
        %v4423 = vld [vmem:[#allocation3 + $0x80] sm:$0xff]
        %v4424 = vld [vmem:[#allocation3 + $0x88] sm:$0xff]
        %v4425 = vld [vmem:[#allocation3 + $0xa0] sm:$0xff]
        %v4426 = vld [vmem:[#allocation3 + $0xa8] sm:$0xff]
        %v4427 = vld [vmem:[#allocation3 + $0xc0] sm:$0xff]
        %v4428 = vld [vmem:[#allocation3 + $0xc8] sm:$0xff]
        %v4429 = vld [vmem:[#allocation3 + $0xe0] sm:$0xff]
        %v4430 = vld [vmem:[#allocation3 + $0xe8] sm:$0xff]
        %s4431 = scalar_lea.vmem [#allocation3], 16
        %v4432 = vld [vmem:[%s4431] sm:$0xff]
        %v4433 = vld [vmem:[%s4431 + $0x8] sm:$0xff]
        %v4434 = vld [vmem:[%s4431 + $0x20] sm:$0xff]
        %v4435 = vld [vmem:[%s4431 + $0x28] sm:$0xff]
        %v4436 = vld [vmem:[%s4431 + $0x40] sm:$0xff]
        %v4437 = vld [vmem:[%s4431 + $0x48] sm:$0xff]
        %v4438 = vld [vmem:[%s4431 + $0x60] sm:$0xff]
        %v4439 = vld [vmem:[%s4431 + $0x68] sm:$0xff]
        %v4440 = vld [vmem:[%s4431 + $0x80] sm:$0xff]
        %v4441 = vld [vmem:[%s4431 + $0x88] sm:$0xff]
        %v4442 = vld [vmem:[%s4431 + $0xa0] sm:$0xff]
        %v4443 = vld [vmem:[%s4431 + $0xa8] sm:$0xff]
        %v4444 = vld [vmem:[%s4431 + $0xc0] sm:$0xff]
        %v4445 = vld [vmem:[%s4431 + $0xc8] sm:$0xff]
        %v4446 = vld [vmem:[%s4431 + $0xe0] sm:$0xff]
        %v4447 = vld [vmem:[%s4431 + $0xe8] sm:$0xff]
        %v4448 = vadd.f32 %v4415, %v4432
        %v4449 = vadd.f32 %v4416, %v4433
        %v4450 = vadd.f32 %v4417, %v4434
        %v4451 = vadd.f32 %v4418, %v4435
        %v4452 = vadd.f32 %v4419, %v4436
        %v4453 = vadd.f32 %v4420, %v4437
        %v4454 = vadd.f32 %v4421, %v4438
        %v4455 = vadd.f32 %v4422, %v4439
        %v4456 = vadd.f32 %v4423, %v4440
        %v4457 = vadd.f32 %v4424, %v4441
        %v4458 = vadd.f32 %v4425, %v4442
        %v4459 = vadd.f32 %v4426, %v4443
        %v4460 = vadd.f32 %v4427, %v4444
        %v4461 = vadd.f32 %v4428, %v4445
        %v4462 = vadd.f32 %v4429, %v4446
        %v4463 = vadd.f32 %v4430, %v4447
        %4464 = vst.msk [vmem:[#allocation4] sm:$0xff] %vm4382, %v4448
        %4465 = vst.msk [vmem:[#allocation4 + $0x8] sm:$0xff] %vm4382, %v4449
        %4466 = vst.msk [vmem:[#allocation4 + $0x10] sm:$0xff] %vm4382, %v4450
        %4467 = vst.msk [vmem:[#allocation4 + $0x18] sm:$0xff] %vm4382, %v4451
        %4468 = vst.msk [vmem:[#allocation4 + $0x20] sm:$0xff] %vm4382, %v4452
        %4469 = vst.msk [vmem:[#allocation4 + $0x28] sm:$0xff] %vm4382, %v4453
        %4470 = vst.msk [vmem:[#allocation4 + $0x30] sm:$0xff] %vm4382, %v4454
        %4471 = vst.msk [vmem:[#allocation4 + $0x38] sm:$0xff] %vm4382, %v4455
        %4472 = vst.msk [vmem:[#allocation4 + $0x40] sm:$0xff] %vm4382, %v4456
        %4473 = vst.msk [vmem:[#allocation4 + $0x48] sm:$0xff] %vm4382, %v4457
        %4474 = vst.msk [vmem:[#allocation4 + $0x50] sm:$0xff] %vm4382, %v4458
        %4475 = vst.msk [vmem:[#allocation4 + $0x58] sm:$0xff] %vm4382, %v4459
        %4476 = vst.msk [vmem:[#allocation4 + $0x60] sm:$0xff] %vm4382, %v4460
        %4477 = vst.msk [vmem:[#allocation4 + $0x68] sm:$0xff] %vm4382, %v4461
        %4478 = vst.msk [vmem:[#allocation4 + $0x70] sm:$0xff] %vm4382, %v4462
        %4479 = vst.msk [vmem:[#allocation4 + $0x78] sm:$0xff] %vm4382, %v4463
        %v4480 = vld [vmem:[#allocation4] ss:$2 sm:$0xff]
        %s4481 = scalar_lea.vmem [#allocation4], 16
        %v4482 = vld [vmem:[%s4481] ss:$2 sm:$0xff]
        %s4483 = scalar_lea.vmem [#allocation4], 32
        %v4484 = vld [vmem:[%s4483] ss:$2 sm:$0xff]
        %s4485 = scalar_lea.vmem [#allocation4], 48
        %v4486 = vld [vmem:[%s4485] ss:$2 sm:$0xff]
        %s4487 = scalar_lea.vmem [#allocation4], 64
        %v4488 = vld [vmem:[%s4487] ss:$2 sm:$0xff]
        %s4489 = scalar_lea.vmem [#allocation4], 80
        %v4490 = vld [vmem:[%s4489] ss:$2 sm:$0xff]
        %s4491 = scalar_lea.vmem [#allocation4], 96
        %v4492 = vld [vmem:[%s4491] ss:$2 sm:$0xff]
        %s4493 = scalar_lea.vmem [#allocation4], 112
        %v4494 = vld [vmem:[%s4493] ss:$2 sm:$0xff]
        %s4495 = scalar_lea.vmem [#allocation4], 1
        %v4496 = vld [vmem:[%s4495] ss:$2 sm:$0xff]
        %s4497 = scalar_lea.vmem [#allocation4], 17
        %v4498 = vld [vmem:[%s4497] ss:$2 sm:$0xff]
        %s4499 = scalar_lea.vmem [#allocation4], 33
        %v4500 = vld [vmem:[%s4499] ss:$2 sm:$0xff]
        %s4501 = scalar_lea.vmem [#allocation4], 49
        %v4502 = vld [vmem:[%s4501] ss:$2 sm:$0xff]
        %s4503 = scalar_lea.vmem [#allocation4], 65
        %v4504 = vld [vmem:[%s4503] ss:$2 sm:$0xff]
        %s4505 = scalar_lea.vmem [#allocation4], 81
        %v4506 = vld [vmem:[%s4505] ss:$2 sm:$0xff]
        %s4507 = scalar_lea.vmem [#allocation4], 97
        %v4508 = vld [vmem:[%s4507] ss:$2 sm:$0xff]
        %s4509 = scalar_lea.vmem [#allocation4], 113
        %v4510 = vld [vmem:[%s4509] ss:$2 sm:$0xff]
        %v4511 = vadd.f32 %v4480, %v4496
        %v4512 = vadd.f32 %v4482, %v4498
        %v4513 = vadd.f32 %v4484, %v4500
        %v4514 = vadd.f32 %v4486, %v4502
        %v4515 = vadd.f32 %v4488, %v4504
        %v4516 = vadd.f32 %v4490, %v4506
        %v4517 = vadd.f32 %v4492, %v4508
        %v4518 = vadd.f32 %v4494, %v4510
        %v4519 = vmul.f32 %v4511, 0.25
        %v4520 = vmul.f32 %v4512, 0.25
        %v4521 = vmul.f32 %v4513, 0.25
        %v4522 = vmul.f32 %v4514, 0.25
        %v4523 = vmul.f32 %v4515, 0.25
        %v4524 = vmul.f32 %v4516, 0.25
        %v4525 = vmul.f32 %v4517, 0.25
        %v4526 = vmul.f32 %v4518, 0.25
        %4527 = vst.msk [vmem:[#allocation5] sm:$0xff] %vm4382, 0.0
        %vm4528 = vcmask 58368
        %4529 = vst.msk [vmem:[#allocation5 + $0x8] sm:$0x3] %vm4528, 0.0
        %4530 = vst.msk [vmem:[#allocation5 + $0x10] sm:$0xff] %vm4382, 0.0
        %4531 = vst.msk [vmem:[#allocation5 + $0x18] sm:$0x3] %vm4528, 0.0
        %4532 = vst.msk [vmem:[#allocation5 + $0x20] sm:$0xff] %vm4382, 0.0
        %4533 = vst.msk [vmem:[#allocation5 + $0x28] sm:$0x3] %vm4528, 0.0
        %4534 = vst.msk [vmem:[#allocation5 + $0x30] sm:$0xff] %vm4382, 0.0
        %4535 = vst.msk [vmem:[#allocation5 + $0x38] sm:$0x3] %vm4528, 0.0
        %4536 = vst.msk [vmem:[#allocation5 + $0x40] sm:$0xff] %vm4382, 0.0
        %4537 = vst.msk [vmem:[#allocation5 + $0x48] sm:$0x3] %vm4528, 0.0
        %4538 = vst.msk [vmem:[#allocation5 + $0x50] sm:$0xff] %vm4382, 0.0
        %4539 = vst.msk [vmem:[#allocation5 + $0x58] sm:$0x3] %vm4528, 0.0
        %4540 = vst.msk [vmem:[#allocation5 + $0x60] sm:$0xff] %vm4382, 0.0
        %4541 = vst.msk [vmem:[#allocation5 + $0x68] sm:$0x3] %vm4528, 0.0
        %4542 = vst.msk [vmem:[#allocation5 + $0x70] sm:$0xff] %vm4382, 0.0
        %4543 = vst.msk [vmem:[#allocation5 + $0x78] sm:$0x3] %vm4528, 0.0
        %4544 = vst.msk [vmem:[#allocation5 + $0x80] sm:$0xff] %vm4382, 0.0
        %4545 = vst.msk [vmem:[#allocation5 + $0x88] sm:$0x3] %vm4528, 0.0
        %4546 = vst.msk [vmem:[#allocation5 + $0x90] sm:$0xff] %vm4382, 0.0
        %4547 = vst.msk [vmem:[#allocation5 + $0x98] sm:$0x3] %vm4528, 0.0
        %s4548 = scalar_lea.vmem [#allocation5], 16
        %4549 = vst.msk [vmem:[%s4548 + $0x1] sm:$0xff] %vm4382, %v4519
        %4550 = vst.msk [vmem:[%s4548 + $0x11] sm:$0xff] %vm4382, %v4520
        %4551 = vst.msk [vmem:[%s4548 + $0x21] sm:$0xff] %vm4382, %v4521
        %4552 = vst.msk [vmem:[%s4548 + $0x31] sm:$0xff] %vm4382, %v4522
        %4553 = vst.msk [vmem:[%s4548 + $0x41] sm:$0xff] %vm4382, %v4523
        %4554 = vst.msk [vmem:[%s4548 + $0x51] sm:$0xff] %vm4382, %v4524
        %4555 = vst.msk [vmem:[%s4548 + $0x61] sm:$0xff] %vm4382, %v4525
        %4556 = vst.msk [vmem:[%s4548 + $0x71] sm:$0xff] %vm4382, %v4526
        %v4557 = vld [vmem:[#allocation5] sm:$0xff]
        %v4558 = vld [vmem:[#allocation5 + $0x10] sm:$0xff]
        %v4559 = vld [vmem:[#allocation5 + $0x20] sm:$0xff]
        %v4560 = vld [vmem:[#allocation5 + $0x30] sm:$0xff]
        %v4561 = vld [vmem:[#allocation5 + $0x40] sm:$0xff]
        %v4562 = vld [vmem:[#allocation5 + $0x50] sm:$0xff]
        %v4563 = vld [vmem:[#allocation5 + $0x60] sm:$0xff]
        %v4564 = vld [vmem:[#allocation5 + $0x70] sm:$0xff]
        %v4565 = vld [vmem:[#allocation5 + $0x1] sm:$0xff]
        %v4566 = vld [vmem:[#allocation5 + $0x11] sm:$0xff]
        %v4567 = vld [vmem:[#allocation5 + $0x21] sm:$0xff]
        %v4568 = vld [vmem:[#allocation5 + $0x31] sm:$0xff]
        %v4569 = vld [vmem:[#allocation5 + $0x41] sm:$0xff]
        %v4570 = vld [vmem:[#allocation5 + $0x51] sm:$0xff]
        %v4571 = vld [vmem:[#allocation5 + $0x61] sm:$0xff]
        %v4572 = vld [vmem:[#allocation5 + $0x71] sm:$0xff]
        %v4573 = vld [vmem:[#allocation5 + $0x2] sm:$0xff]
        %v4574 = vld [vmem:[#allocation5 + $0x12] sm:$0xff]
        %v4575 = vld [vmem:[#allocation5 + $0x22] sm:$0xff]
        %v4576 = vld [vmem:[#allocation5 + $0x32] sm:$0xff]
        %v4577 = vld [vmem:[#allocation5 + $0x42] sm:$0xff]
        %v4578 = vld [vmem:[#allocation5 + $0x52] sm:$0xff]
        %v4579 = vld [vmem:[#allocation5 + $0x62] sm:$0xff]
        %v4580 = vld [vmem:[#allocation5 + $0x72] sm:$0xff]
        %v4581 = vld [vmem:[%s4548] sm:$0xff]
        %v4582 = vld [vmem:[%s4548 + $0x10] sm:$0xff]
        %v4583 = vld [vmem:[%s4548 + $0x20] sm:$0xff]
        %v4584 = vld [vmem:[%s4548 + $0x30] sm:$0xff]
        %v4585 = vld [vmem:[%s4548 + $0x40] sm:$0xff]
        %v4586 = vld [vmem:[%s4548 + $0x50] sm:$0xff]
        %v4587 = vld [vmem:[%s4548 + $0x60] sm:$0xff]
        %v4588 = vld [vmem:[%s4548 + $0x70] sm:$0xff]
        %v4589 = vld [vmem:[%s4548 + $0x1] sm:$0xff]
        %v4590 = vld [vmem:[%s4548 + $0x11] sm:$0xff]
        %v4591 = vld [vmem:[%s4548 + $0x21] sm:$0xff]
        %v4592 = vld [vmem:[%s4548 + $0x31] sm:$0xff]
        %v4593 = vld [vmem:[%s4548 + $0x41] sm:$0xff]
        %v4594 = vld [vmem:[%s4548 + $0x51] sm:$0xff]
        %v4595 = vld [vmem:[%s4548 + $0x61] sm:$0xff]
        %v4596 = vld [vmem:[%s4548 + $0x71] sm:$0xff]
        %v4597 = vld [vmem:[%s4548 + $0x2] sm:$0xff]
        %v4598 = vld [vmem:[%s4548 + $0x12] sm:$0xff]
        %v4599 = vld [vmem:[%s4548 + $0x22] sm:$0xff]
        %v4600 = vld [vmem:[%s4548 + $0x32] sm:$0xff]
        %v4601 = vld [vmem:[%s4548 + $0x42] sm:$0xff]
        %v4602 = vld [vmem:[%s4548 + $0x52] sm:$0xff]
        %v4603 = vld [vmem:[%s4548 + $0x62] sm:$0xff]
        %v4604 = vld [vmem:[%s4548 + $0x72] sm:$0xff]
        %s4605 = scalar_lea.vmem [#allocation5], 32
        %v4606 = vld [vmem:[%s4605] sm:$0xff]
        %v4607 = vld [vmem:[%s4605 + $0x10] sm:$0xff]
        %v4608 = vld [vmem:[%s4605 + $0x20] sm:$0xff]
        %v4609 = vld [vmem:[%s4605 + $0x30] sm:$0xff]
        %v4610 = vld [vmem:[%s4605 + $0x40] sm:$0xff]
        %v4611 = vld [vmem:[%s4605 + $0x50] sm:$0xff]
        %v4612 = vld [vmem:[%s4605 + $0x60] sm:$0xff]
        %v4613 = vld [vmem:[%s4605 + $0x70] sm:$0xff]
        %v4614 = vld [vmem:[%s4605 + $0x1] sm:$0xff]
        %v4615 = vld [vmem:[%s4605 + $0x11] sm:$0xff]
        %v4616 = vld [vmem:[%s4605 + $0x21] sm:$0xff]
        %v4617 = vld [vmem:[%s4605 + $0x31] sm:$0xff]
        %v4618 = vld [vmem:[%s4605 + $0x41] sm:$0xff]
        %v4619 = vld [vmem:[%s4605 + $0x51] sm:$0xff]
        %v4620 = vld [vmem:[%s4605 + $0x61] sm:$0xff]
        %v4621 = vld [vmem:[%s4605 + $0x71] sm:$0xff]
        %v4622 = vld [vmem:[%s4605 + $0x2] sm:$0xff]
        %v4623 = vld [vmem:[%s4605 + $0x12] sm:$0xff]
        %v4624 = vld [vmem:[%s4605 + $0x22] sm:$0xff]
        %v4625 = vld [vmem:[%s4605 + $0x32] sm:$0xff]
        %v4626 = vld [vmem:[%s4605 + $0x42] sm:$0xff]
        %v4627 = vld [vmem:[%s4605 + $0x52] sm:$0xff]
        %v4628 = vld [vmem:[%s4605 + $0x62] sm:$0xff]
        %v4629 = vld [vmem:[%s4605 + $0x72] sm:$0xff]
        %4638 = vrot.lane.b32.xlu0 %v4565, 8
        %v4639 = vpop.permute.xlu0 %4638
        %4640 = vrot.lane.b32.xlu0 %v4566, 8
        %v4641 = vpop.permute.xlu0 %4640
        %4642 = vrot.lane.b32.xlu0 %v4567, 8
        %v4643 = vpop.permute.xlu0 %4642
        %4644 = vrot.lane.b32.xlu0 %v4568, 8
        %v4645 = vpop.permute.xlu0 %4644
        %4646 = vrot.lane.b32.xlu0 %v4569, 8
        %v4647 = vpop.permute.xlu0 %4646
        %4648 = vrot.lane.b32.xlu0 %v4570, 8
        %v4649 = vpop.permute.xlu0 %4648
        %4650 = vrot.lane.b32.xlu0 %v4571, 8
        %v4651 = vpop.permute.xlu0 %4650
        %4652 = vrot.lane.b32.xlu0 %v4572, 8
        %v4653 = vpop.permute.xlu0 %4652
        %4670 = vrot.lane.b32.xlu0 %v4573, 16
        %v4671 = vpop.permute.xlu0 %4670
        %4672 = vrot.lane.b32.xlu0 %v4574, 16
        %v4673 = vpop.permute.xlu0 %4672
        %4674 = vrot.lane.b32.xlu0 %v4575, 16
        %v4675 = vpop.permute.xlu0 %4674
        %4676 = vrot.lane.b32.xlu0 %v4576, 16
        %v4677 = vpop.permute.xlu0 %4676
        %4678 = vrot.lane.b32.xlu0 %v4577, 16
        %v4679 = vpop.permute.xlu0 %4678
        %4680 = vrot.lane.b32.xlu0 %v4578, 16
        %v4681 = vpop.permute.xlu0 %4680
        %4682 = vrot.lane.b32.xlu0 %v4579, 16
        %v4683 = vpop.permute.xlu0 %4682
        %4684 = vrot.lane.b32.xlu0 %v4580, 16
        %v4685 = vpop.permute.xlu0 %4684
        %4702 = vrot.lane.b32.xlu0 %v4581, 24
        %v4703 = vpop.permute.xlu0 %4702
        %4704 = vrot.lane.b32.xlu0 %v4582, 24
        %v4705 = vpop.permute.xlu0 %4704
        %4706 = vrot.lane.b32.xlu0 %v4583, 24
        %v4707 = vpop.permute.xlu0 %4706
        %4708 = vrot.lane.b32.xlu0 %v4584, 24
        %v4709 = vpop.permute.xlu0 %4708
        %4710 = vrot.lane.b32.xlu0 %v4585, 24
        %v4711 = vpop.permute.xlu0 %4710
        %4712 = vrot.lane.b32.xlu0 %v4586, 24
        %v4713 = vpop.permute.xlu0 %4712
        %4714 = vrot.lane.b32.xlu0 %v4587, 24
        %v4715 = vpop.permute.xlu0 %4714
        %4716 = vrot.lane.b32.xlu0 %v4588, 24
        %v4717 = vpop.permute.xlu0 %4716
        %4734 = vrot.lane.b32.xlu0 %v4589, 32
        %v4735 = vpop.permute.xlu0 %4734
        %4736 = vrot.lane.b32.xlu0 %v4590, 32
        %v4737 = vpop.permute.xlu0 %4736
        %4738 = vrot.lane.b32.xlu0 %v4591, 32
        %v4739 = vpop.permute.xlu0 %4738
        %4740 = vrot.lane.b32.xlu0 %v4592, 32
        %v4741 = vpop.permute.xlu0 %4740
        %4742 = vrot.lane.b32.xlu0 %v4593, 32
        %v4743 = vpop.permute.xlu0 %4742
        %4744 = vrot.lane.b32.xlu0 %v4594, 32
        %v4745 = vpop.permute.xlu0 %4744
        %4746 = vrot.lane.b32.xlu0 %v4595, 32
        %v4747 = vpop.permute.xlu0 %4746
        %4748 = vrot.lane.b32.xlu0 %v4596, 32
        %v4749 = vpop.permute.xlu0 %4748
        %4766 = vrot.lane.b32.xlu0 %v4597, 40
        %v4767 = vpop.permute.xlu0 %4766
        %4768 = vrot.lane.b32.xlu0 %v4598, 40
        %v4769 = vpop.permute.xlu0 %4768
        %4770 = vrot.lane.b32.xlu0 %v4599, 40
        %v4771 = vpop.permute.xlu0 %4770
        %4772 = vrot.lane.b32.xlu0 %v4600, 40
        %v4773 = vpop.permute.xlu0 %4772
        %4774 = vrot.lane.b32.xlu0 %v4601, 40
        %v4775 = vpop.permute.xlu0 %4774
        %4776 = vrot.lane.b32.xlu0 %v4602, 40
        %v4777 = vpop.permute.xlu0 %4776
        %4778 = vrot.lane.b32.xlu0 %v4603, 40
        %v4779 = vpop.permute.xlu0 %4778
        %4780 = vrot.lane.b32.xlu0 %v4604, 40
        %v4781 = vpop.permute.xlu0 %4780
        %4798 = vrot.lane.b32.xlu0 %v4606, 48
        %v4799 = vpop.permute.xlu0 %4798
        %4800 = vrot.lane.b32.xlu0 %v4607, 48
        %v4801 = vpop.permute.xlu0 %4800
        %4802 = vrot.lane.b32.xlu0 %v4608, 48
        %v4803 = vpop.permute.xlu0 %4802
        %4804 = vrot.lane.b32.xlu0 %v4609, 48
        %v4805 = vpop.permute.xlu0 %4804
        %4806 = vrot.lane.b32.xlu0 %v4610, 48
        %v4807 = vpop.permute.xlu0 %4806
        %4808 = vrot.lane.b32.xlu0 %v4611, 48
        %v4809 = vpop.permute.xlu0 %4808
        %4810 = vrot.lane.b32.xlu0 %v4612, 48
        %v4811 = vpop.permute.xlu0 %4810
        %4812 = vrot.lane.b32.xlu0 %v4613, 48
        %v4813 = vpop.permute.xlu0 %4812
        %4830 = vrot.lane.b32.xlu0 %v4614, 56
        %v4831 = vpop.permute.xlu0 %4830
        %4832 = vrot.lane.b32.xlu0 %v4615, 56
        %v4833 = vpop.permute.xlu0 %4832
        %4834 = vrot.lane.b32.xlu0 %v4616, 56
        %v4835 = vpop.permute.xlu0 %4834
        %4836 = vrot.lane.b32.xlu0 %v4617, 56
        %v4837 = vpop.permute.xlu0 %4836
        %4838 = vrot.lane.b32.xlu0 %v4618, 56
        %v4839 = vpop.permute.xlu0 %4838
        %4840 = vrot.lane.b32.xlu0 %v4619, 56
        %v4841 = vpop.permute.xlu0 %4840
        %4842 = vrot.lane.b32.xlu0 %v4620, 56
        %v4843 = vpop.permute.xlu0 %4842
        %4844 = vrot.lane.b32.xlu0 %v4621, 56
        %v4845 = vpop.permute.xlu0 %4844
        %4862 = vrot.lane.b32.xlu0 %v4622, 64
        %v4863 = vpop.permute.xlu0 %4862
        %4864 = vrot.lane.b32.xlu0 %v4623, 64
        %v4865 = vpop.permute.xlu0 %4864
        %4866 = vrot.lane.b32.xlu0 %v4624, 64
        %v4867 = vpop.permute.xlu0 %4866
        %4868 = vrot.lane.b32.xlu0 %v4625, 64
        %v4869 = vpop.permute.xlu0 %4868
        %4870 = vrot.lane.b32.xlu0 %v4626, 64
        %v4871 = vpop.permute.xlu0 %4870
        %4872 = vrot.lane.b32.xlu0 %v4627, 64
        %v4873 = vpop.permute.xlu0 %4872
        %4874 = vrot.lane.b32.xlu0 %v4628, 64
        %v4875 = vpop.permute.xlu0 %4874
        %4876 = vrot.lane.b32.xlu0 %v4629, 64
        %v4877 = vpop.permute.xlu0 %4876
        %v4886 = vsel %vm4382, %v4557, %v4639
        %v4887 = vsel %vm4382, %v4558, %v4641
        %v4888 = vsel %vm4382, %v4559, %v4643
        %v4889 = vsel %vm4382, %v4560, %v4645
        %v4890 = vsel %vm4382, %v4561, %v4647
        %v4891 = vsel %vm4382, %v4562, %v4649
        %v4892 = vsel %vm4382, %v4563, %v4651
        %v4893 = vsel %vm4382, %v4564, %v4653
        %vm4894 = vcmask 130048
        %v4895 = vsel %vm4894, %v4886, %v4671
        %v4896 = vsel %vm4894, %v4887, %v4673
        %v4897 = vsel %vm4894, %v4888, %v4675
        %v4898 = vsel %vm4894, %v4889, %v4677
        %v4899 = vsel %vm4894, %v4890, %v4679
        %v4900 = vsel %vm4894, %v4891, %v4681
        %v4901 = vsel %vm4894, %v4892, %v4683
        %v4902 = vsel %vm4894, %v4893, %v4685
        %v4903 = vsel %vm1956, %v4895, %v4703
        %v4904 = vsel %vm1956, %v4896, %v4705
        %v4905 = vsel %vm1956, %v4897, %v4707
        %v4906 = vsel %vm1956, %v4898, %v4709
        %v4907 = vsel %vm1956, %v4899, %v4711
        %v4908 = vsel %vm1956, %v4900, %v4713
        %v4909 = vsel %vm1956, %v4901, %v4715
        %v4910 = vsel %vm1956, %v4902, %v4717
        %vm4911 = vcmask 261120
        %v4912 = vsel %vm4911, %v4903, %v4735
        %v4913 = vsel %vm4911, %v4904, %v4737
        %v4914 = vsel %vm4911, %v4905, %v4739
        %v4915 = vsel %vm4911, %v4906, %v4741
        %v4916 = vsel %vm4911, %v4907, %v4743
        %v4917 = vsel %vm4911, %v4908, %v4745
        %v4918 = vsel %vm4911, %v4909, %v4747
        %v4919 = vsel %vm4911, %v4910, %v4749
        %vm4920 = vcmask 326656
        %v4921 = vsel %vm4920, %v4912, %v4767
        %v4922 = vsel %vm4920, %v4913, %v4769
        %v4923 = vsel %vm4920, %v4914, %v4771
        %v4924 = vsel %vm4920, %v4915, %v4773
        %v4925 = vsel %vm4920, %v4916, %v4775
        %v4926 = vsel %vm4920, %v4917, %v4777
        %v4927 = vsel %vm4920, %v4918, %v4779
        %v4928 = vsel %vm4920, %v4919, %v4781
        %vm4929 = vcmask 392192
        %v4930 = vsel %vm4929, %v4921, %v4799
        %v4931 = vsel %vm4929, %v4922, %v4801
        %v4932 = vsel %vm4929, %v4923, %v4803
        %v4933 = vsel %vm4929, %v4924, %v4805
        %v4934 = vsel %vm4929, %v4925, %v4807
        %v4935 = vsel %vm4929, %v4926, %v4809
        %v4936 = vsel %vm4929, %v4927, %v4811
        %v4937 = vsel %vm4929, %v4928, %v4813
        %vm4938 = vcmask 457728
        %v4939 = vsel %vm4938, %v4930, %v4831
        %v4940 = vsel %vm4938, %v4931, %v4833
        %v4941 = vsel %vm4938, %v4932, %v4835
        %v4942 = vsel %vm4938, %v4933, %v4837
        %v4943 = vsel %vm4938, %v4934, %v4839
        %v4944 = vsel %vm4938, %v4935, %v4841
        %v4945 = vsel %vm4938, %v4936, %v4843
        %v4946 = vsel %vm4938, %v4937, %v4845
        %vm4947 = vcmask 523264
        %v4948 = vsel %vm4947, %v4939, %v4863
        %v4949 = vsel %vm4947, %v4940, %v4865
        %v4950 = vsel %vm4947, %v4941, %v4867
        %v4951 = vsel %vm4947, %v4942, %v4869
        %v4952 = vsel %vm4947, %v4943, %v4871
        %v4953 = vsel %vm4947, %v4944, %v4873
        %v4954 = vsel %vm4947, %v4945, %v4875
        %v4955 = vsel %vm4947, %v4946, %v4877
        %v4956 = vld [vmem:[%s5] sm:$0xff]
        %v4957 = vld [vmem:[%s5 + $0x8] sm:$0xff]
        %v4958 = vld [vmem:[%s5 + $0x10] sm:$0xff]
        %v4959 = vld [vmem:[%s5 + $0x18] sm:$0xff]
        %v4960 = vld [vmem:[%s5 + $0x20] sm:$0xff]
        %v4961 = vld [vmem:[%s5 + $0x28] sm:$0xff]
        %v4962 = vld [vmem:[%s5 + $0x30] sm:$0xff]
        %v4963 = vld [vmem:[%s5 + $0x38] sm:$0xff]
        %v4964 = vld [vmem:[%s5 + $0x40] sm:$0xff]
        %v4965 = vld [vmem:[%s6] sm:$0x1]
        %v4967 = vlaneseq
        %v4968 = vshrl.u32 %v4967, 7
        %v4969 = vsub.s32 0, %v4968
        %v4970 = vrot.slane %v4965, %v4969
        %vm4972 = vcmask 588800
        %v4974 = vsel %vm4972, %v4948, 0
        %v4977 = vsel %vm4972, %v4949, 0
        %v4980 = vsel %vm4972, %v4950, 0
        %v4983 = vsel %vm4972, %v4951, 0
        %v4986 = vsel %vm4972, %v4952, 0
        %v4989 = vsel %vm4972, %v4953, 0
        %v4992 = vsel %vm4972, %v4954, 0
        %v4995 = vsel %vm4972, %v4955, 0
        %4997 = vmatprep.subr.mxu0 0.0
        %4998 = vmatpush1.msra.mxu0 %v4956
        %4999 = vmatprep.subr.mxu0 0.0
        %5000 = vmatpush1.msra.mxu0 %v4957
        %5001 = vmatprep.subr.mxu0 0.0
        %5002 = vmatpush1.msra.mxu0 %v4958
        %5003 = vmatprep.subr.mxu0 0.0
        %5004 = vmatpush1.msra.mxu0 %v4959
        %5005 = vmatprep.subr.mxu0 0.0
        %5006 = vmatpush1.msra.mxu0 %v4960
        %5007 = vmatprep.subr.mxu0 0.0
        %5008 = vmatpush1.msra.mxu0 %v4961
        %5009 = vmatprep.subr.mxu0 0.0
        %5010 = vmatpush1.msra.mxu0 %v4962
        %5011 = vmatprep.subr.mxu0 0.0
        %5012 = vmatpush1.msra.mxu0 %v4963
        %5013 = vmatprep.subr.mxu0 0.0
        %5014 = vmatpush1.msra.mxu0 %v4964
        %5015 = vmatprep.subr.mxu0 0.0
        %5016 = vmatpush1.msra.mxu0 0.0
        %5017 = vmatprep.subr.mxu0 0.0
        %5018 = vmatpush1.msra.mxu0 0.0
        %5019 = vmatprep.subr.mxu0 0.0
        %5020 = vmatpush1.msra.mxu0 0.0
        %5021 = vmatprep.subr.mxu0 0.0
        %5022 = vmatpush1.msra.mxu0 0.0
        %5023 = vmatprep.subr.mxu0 0.0
        %5024 = vmatpush1.msra.mxu0 0.0
        %5025 = vmatprep.subr.mxu0 0.0
        %5026 = vmatpush1.msra.mxu0 0.0
        %5027 = vmatprep.subr.mxu0 0.0
        %5028 = vmatpush1.msra.mxu0 0.0
        %5029 = vmatprep.subr.mxu0 0.0
        %5030 = vmatpush1.msra.mxu0 0.0
        %5031 = vmatprep.subr.mxu0 0.0
        %5032 = vmatpush1.msra.mxu0 0.0
        %5033 = vmatprep.subr.mxu0 0.0
        %5034 = vmatpush1.msra.mxu0 0.0
        %5035 = vmatprep.subr.mxu0 0.0
        %5036 = vmatpush1.msra.mxu0 0.0
        %5037 = vmatprep.subr.mxu0 0.0
        %5038 = vmatpush1.msra.mxu0 0.0
        %5039 = vmatprep.subr.mxu0 0.0
        %5040 = vmatpush1.msra.mxu0 0.0
        %5041 = vmatprep.subr.mxu0 0.0
        %5042 = vmatpush1.msra.mxu0 0.0
        %5043 = vmatprep.subr.mxu0 0.0
        %5044 = vmatpush1.msra.mxu0 0.0
        %5045 = vmatprep.subr.mxu0 0.0
        %5046 = vmatpush1.msra.mxu0 0.0
        %5047 = vmatprep.subr.mxu0 0.0
        %5048 = vmatpush1.msra.mxu0 0.0
        %5049 = vmatprep.subr.mxu0 0.0
        %5050 = vmatpush1.msra.mxu0 0.0
        %5051 = vmatprep.subr.mxu0 0.0
        %5052 = vmatpush1.msra.mxu0 0.0
        %5053 = vmatprep.subr.mxu0 0.0
        %5054 = vmatpush1.msra.mxu0 0.0
        %5055 = vmatprep.subr.mxu0 0.0
        %5056 = vmatpush1.msra.mxu0 0.0
        %5057 = vmatprep.subr.mxu0 0.0
        %5058 = vmatpush1.msra.mxu0 0.0
        %5059 = vmatprep.subr.mxu0 0.0
        %5060 = vmatpush1.msra.mxu0 0.0
        %5061 = vmatprep.mubr.f32.mxu0 0.0
        %5062 = vmatmul.mubr.f32.gmra.mrb[0].mxu0 %v4974
        %v5063 = vpop.f32.mrb[0].mxu0
        %v5064 = vadd.f32 %v4970, %v5063
        %v5065 = vpop.f32.mrb[0].mxu0
        %5066 = vmatprep.mubr.f32.mxu0 0.0
        %5067 = vmatmul.mubr.f32.gmra.mrb[0].mxu0 %v4977
        %v5068 = vpop.f32.mrb[0].mxu0
        %v5069 = vadd.f32 %v4970, %v5068
        %v5070 = vpop.f32.mrb[0].mxu0
        %5071 = vmatprep.mubr.f32.mxu0 0.0
        %5072 = vmatmul.mubr.f32.gmra.mrb[0].mxu0 %v4980
        %v5073 = vpop.f32.mrb[0].mxu0
        %v5074 = vadd.f32 %v4970, %v5073
        %v5075 = vpop.f32.mrb[0].mxu0
        %5076 = vmatprep.mubr.f32.mxu0 0.0
        %5077 = vmatmul.mubr.f32.gmra.mrb[0].mxu0 %v4983
        %v5078 = vpop.f32.mrb[0].mxu0
        %v5079 = vadd.f32 %v4970, %v5078
        %v5080 = vpop.f32.mrb[0].mxu0
        %5081 = vmatprep.mubr.f32.mxu0 0.0
        %5082 = vmatmul.mubr.f32.gmra.mrb[0].mxu0 %v4986
        %v5083 = vpop.f32.mrb[0].mxu0
        %v5084 = vadd.f32 %v4970, %v5083
        %v5085 = vpop.f32.mrb[0].mxu0
        %5086 = vmatprep.mubr.f32.mxu0 0.0
        %5087 = vmatmul.mubr.f32.gmra.mrb[0].mxu0 %v4989
        %v5088 = vpop.f32.mrb[0].mxu0
        %v5089 = vadd.f32 %v4970, %v5088
        %v5090 = vpop.f32.mrb[0].mxu0
        %5091 = vmatprep.mubr.f32.mxu0 0.0
        %5092 = vmatmul.mubr.f32.gmra.mrb[0].mxu0 %v4992
        %v5093 = vpop.f32.mrb[0].mxu0
        %v5094 = vadd.f32 %v4970, %v5093
        %v5095 = vpop.f32.mrb[0].mxu0
        %5096 = vmatprep.mubr.f32.mxu0 0.0
        %5097 = vmatmul.mubr.f32.gmra.mrb[0].mxu0 %v4995
        %v5098 = vpop.f32.mrb[0].mxu0
        %v5099 = vadd.f32 %v4970, %v5098
        %v5100 = vpop.f32.mrb[0].mxu0
        %5101 = vdwg.mxu0
        %v5102 = vmax.f32 %v5064, 0.0
        %v5103 = vmax.f32 %v5069, 0.0
        %v5104 = vmax.f32 %v5074, 0.0
        %v5105 = vmax.f32 %v5079, 0.0
        %v5106 = vmax.f32 %v5084, 0.0
        %v5107 = vmax.f32 %v5089, 0.0
        %v5108 = vmax.f32 %v5094, 0.0
        %v5109 = vmax.f32 %v5099, 0.0
        %5110 = vst.msk [vmem:[#allocation6] sm:$0xff] %vm4894, %v5102
        %5111 = vst.msk [vmem:[#allocation6 + $0x8] sm:$0xff] %vm4894, %v5103
        %5112 = vst.msk [vmem:[#allocation6 + $0x10] sm:$0xff] %vm4894, %v5104
        %5113 = vst.msk [vmem:[#allocation6 + $0x18] sm:$0xff] %vm4894, %v5105
        %5114 = vst.msk [vmem:[#allocation6 + $0x20] sm:$0xff] %vm4894, %v5106
        %5115 = vst.msk [vmem:[#allocation6 + $0x28] sm:$0xff] %vm4894, %v5107
        %5116 = vst.msk [vmem:[#allocation6 + $0x30] sm:$0xff] %vm4894, %v5108
        %5117 = vst.msk [vmem:[#allocation6 + $0x38] sm:$0xff] %vm4894, %v5109
        %v5118 = vld [vmem:[#allocation6] sm:$0xff]
        %v5119 = vld [vmem:[#allocation6 + $0x10] sm:$0xff]
        %v5120 = vld [vmem:[#allocation6 + $0x20] sm:$0xff]
        %v5121 = vld [vmem:[#allocation6 + $0x30] sm:$0xff]
        %s5122 = scalar_lea.vmem [#allocation6], 8
        %v5123 = vld [vmem:[%s5122] sm:$0xff]
        %v5124 = vld [vmem:[%s5122 + $0x10] sm:$0xff]
        %v5125 = vld [vmem:[%s5122 + $0x20] sm:$0xff]
        %v5126 = vld [vmem:[%s5122 + $0x30] sm:$0xff]
        %v5127 = vadd.f32 %v5118, %v5123
        %v5128 = vadd.f32 %v5119, %v5124
        %v5129 = vadd.f32 %v5120, %v5125
        %v5130 = vadd.f32 %v5121, %v5126
        %5131 = vst.msk [vmem:[#allocation7] sm:$0xff] %vm4894, %v5127
        %5132 = vst.msk [vmem:[#allocation7 + $0x8] sm:$0xff] %vm4894, %v5128
        %5133 = vst.msk [vmem:[#allocation7 + $0x10] sm:$0xff] %vm4894, %v5129
        %5134 = vst.msk [vmem:[#allocation7 + $0x18] sm:$0xff] %vm4894, %v5130
        %v5135 = vld [vmem:[#allocation7] ss:$2 sm:$0xf]
        %s5136 = scalar_lea.vmem [#allocation7], 8
        %v5137 = vld [vmem:[%s5136] ss:$2 sm:$0xf]
        %s5138 = scalar_lea.vmem [#allocation7], 16
        %v5139 = vld [vmem:[%s5138] ss:$2 sm:$0xf]
        %s5140 = scalar_lea.vmem [#allocation7], 24
        %v5141 = vld [vmem:[%s5140] ss:$2 sm:$0xf]
        %s5142 = scalar_lea.vmem [#allocation7], 1
        %v5143 = vld [vmem:[%s5142] ss:$2 sm:$0xf]
        %s5144 = scalar_lea.vmem [#allocation7], 9
        %v5145 = vld [vmem:[%s5144] ss:$2 sm:$0xf]
        %s5146 = scalar_lea.vmem [#allocation7], 17
        %v5147 = vld [vmem:[%s5146] ss:$2 sm:$0xf]
        %s5148 = scalar_lea.vmem [#allocation7], 25
        %v5149 = vld [vmem:[%s5148] ss:$2 sm:$0xf]
        %v5150 = vadd.f32 %v5135, %v5143
        %v5151 = vadd.f32 %v5137, %v5145
        %v5152 = vadd.f32 %v5139, %v5147
        %v5153 = vadd.f32 %v5141, %v5149
        %v5154 = vmul.f32 %v5150, 0.25
        %v5155 = vmul.f32 %v5151, 0.25
        %v5156 = vmul.f32 %v5152, 0.25
        %v5157 = vmul.f32 %v5153, 0.25
        %vm5158 = vcmask 128000
        %5159 = vst.msk [vmem:[#allocation8] sm:$0x3f] %vm5158, 0.0
        %5160 = vst.msk [vmem:[#allocation8 + $0x8] sm:$0x3f] %vm5158, 0.0
        %5161 = vst.msk [vmem:[#allocation8 + $0x10] sm:$0x3f] %vm5158, 0.0
        %5162 = vst.msk [vmem:[#allocation8 + $0x18] sm:$0x3f] %vm5158, 0.0
        %5163 = vst.msk [vmem:[#allocation8 + $0x20] sm:$0x3f] %vm5158, 0.0
        %5164 = vst.msk [vmem:[#allocation8 + $0x28] sm:$0x3f] %vm5158, 0.0
        %s5165 = scalar_lea.vmem [#allocation8], 8
        %vm5166 = vcmask 125952
        %5167 = vst.msk [vmem:[%s5165 + $0x1] sm:$0xf] %vm5166, %v5154
        %5168 = vst.msk [vmem:[%s5165 + $0x9] sm:$0xf] %vm5166, %v5155
        %5169 = vst.msk [vmem:[%s5165 + $0x11] sm:$0xf] %vm5166, %v5156
        %5170 = vst.msk [vmem:[%s5165 + $0x19] sm:$0xf] %vm5166, %v5157
        %v5171 = vld [vmem:[#allocation8] sm:$0xf]
        %v5172 = vld [vmem:[#allocation8 + $0x1] sm:$0xf]
        %v5173 = vld [vmem:[#allocation8 + $0x2] sm:$0xf]
        %v5174 = vld [vmem:[%s5165] sm:$0xf]
        %v5175 = vld [vmem:[%s5165 + $0x1] sm:$0xf]
        %v5176 = vld [vmem:[%s5165 + $0x2] sm:$0xf]
        %s5177 = scalar_lea.vmem [#allocation8], 16
        %v5178 = vld [vmem:[%s5177] sm:$0xf]
        %v5179 = vld [vmem:[%s5177 + $0x1] sm:$0xf]
        %v5180 = vld [vmem:[%s5177 + $0x2] sm:$0xf]
        %5182 = vrot.lane.b32.xlu0 %v5172, 16
        %v5183 = vpop.permute.xlu0 %5182
        %5186 = vrot.lane.b32.xlu0 %v5173, 32
        %v5187 = vpop.permute.xlu0 %5186
        %5190 = vrot.lane.b32.xlu0 %v5174, 48
        %v5191 = vpop.permute.xlu0 %5190
        %5194 = vrot.lane.b32.xlu0 %v5175, 64
        %v5195 = vpop.permute.xlu0 %5194
        %5198 = vrot.lane.b32.xlu0 %v5176, 80
        %v5199 = vpop.permute.xlu0 %5198
        %5202 = vrot.lane.b32.xlu0 %v5178, 96
        %v5203 = vpop.permute.xlu0 %5202
        %5206 = vrot.lane.b32.xlu0 %v5179, 112
        %v5207 = vpop.permute.xlu0 %5206
        %v5209 = vsel %vm4894, %v5171, %v5183
        %v5210 = vsel %vm4911, %v5209, %v5187
        %v5211 = vsel %vm4929, %v5210, %v5191
        %v5212 = vsel %vm4947, %v5211, %v5195
        %vm5213 = vcmask 654336
        %v5214 = vsel %vm5213, %v5212, %v5199
        %vm5215 = vcmask 785408
        %v5216 = vsel %vm5215, %v5214, %v5203
        %vm5217 = vcmask 916480
        %v5218 = vsel %vm5217, %v5216, %v5207
        %5219 = vst [vmem:[#allocation9] sm:$0xf] %v5218
        %5220 = vst.msk [vmem:[#allocation9 + $0x8] sm:$0xf] %vm5166, %v5180
        %v5221 = vld [vmem:[%s5165] sm:$0xf]
        %v5222 = vld [vmem:[%s5165 + $0x1] sm:$0xf]
        %v5223 = vld [vmem:[%s5165 + $0x2] sm:$0xf]
        %v5224 = vld [vmem:[%s5177] sm:$0xf]
        %v5225 = vld [vmem:[%s5177 + $0x1] sm:$0xf]
        %v5226 = vld [vmem:[%s5177 + $0x2] sm:$0xf]
        %s5227 = scalar_lea.vmem [#allocation8], 24
        %v5228 = vld [vmem:[%s5227] sm:$0xf]
        %v5229 = vld [vmem:[%s5227 + $0x1] sm:$0xf]
        %v5230 = vld [vmem:[%s5227 + $0x2] sm:$0xf]
        %5232 = vrot.lane.b32.xlu0 %v5222, 16
        %v5233 = vpop.permute.xlu0 %5232
        %5236 = vrot.lane.b32.xlu0 %v5223, 32
        %v5237 = vpop.permute.xlu0 %5236
        %5240 = vrot.lane.b32.xlu0 %v5224, 48
        %v5241 = vpop.permute.xlu0 %5240
        %5244 = vrot.lane.b32.xlu0 %v5225, 64
        %v5245 = vpop.permute.xlu0 %5244
        %5248 = vrot.lane.b32.xlu0 %v5226, 80
        %v5249 = vpop.permute.xlu0 %5248
        %5252 = vrot.lane.b32.xlu0 %v5228, 96
        %v5253 = vpop.permute.xlu0 %5252
        %5256 = vrot.lane.b32.xlu0 %v5229, 112
        %v5257 = vpop.permute.xlu0 %5256
        %v5259 = vsel %vm4894, %v5221, %v5233
        %v5260 = vsel %vm4911, %v5259, %v5237
        %v5261 = vsel %vm4929, %v5260, %v5241
        %v5262 = vsel %vm4947, %v5261, %v5245
        %v5263 = vsel %vm5213, %v5262, %v5249
        %v5264 = vsel %vm5215, %v5263, %v5253
        %v5265 = vsel %vm5217, %v5264, %v5257
        %v5268 = vrot.slane %v5265, 4
        %v5269 = vrot.slane %v5230, 4
        %5272 = vst [vmem:[#allocation9] sm:$0xf0] %v5268
        %vm5273 = vcmask 130052
        %5274 = vst.msk [vmem:[#allocation9 + $0x8] sm:$0xf0] %vm5273, %v5269
        %v5275 = vld [vmem:[%s5177] sm:$0xf]
        %v5276 = vld [vmem:[%s5177 + $0x1] sm:$0xf]
        %v5277 = vld [vmem:[%s5177 + $0x2] sm:$0xf]
        %v5278 = vld [vmem:[%s5227] sm:$0xf]
        %v5279 = vld [vmem:[%s5227 + $0x1] sm:$0xf]
        %v5280 = vld [vmem:[%s5227 + $0x2] sm:$0xf]
        %s5281 = scalar_lea.vmem [#allocation8], 32
        %v5282 = vld [vmem:[%s5281] sm:$0xf]
        %v5283 = vld [vmem:[%s5281 + $0x1] sm:$0xf]
        %v5284 = vld [vmem:[%s5281 + $0x2] sm:$0xf]
        %5286 = vrot.lane.b32.xlu0 %v5276, 16
        %v5287 = vpop.permute.xlu0 %5286
        %5290 = vrot.lane.b32.xlu0 %v5277, 32
        %v5291 = vpop.permute.xlu0 %5290
        %5294 = vrot.lane.b32.xlu0 %v5278, 48
        %v5295 = vpop.permute.xlu0 %5294
        %5298 = vrot.lane.b32.xlu0 %v5279, 64
        %v5299 = vpop.permute.xlu0 %5298
        %5302 = vrot.lane.b32.xlu0 %v5280, 80
        %v5303 = vpop.permute.xlu0 %5302
        %5306 = vrot.lane.b32.xlu0 %v5282, 96
        %v5307 = vpop.permute.xlu0 %5306
        %5310 = vrot.lane.b32.xlu0 %v5283, 112
        %v5311 = vpop.permute.xlu0 %5310
        %v5313 = vsel %vm4894, %v5275, %v5287
        %v5314 = vsel %vm4911, %v5313, %v5291
        %v5315 = vsel %vm4929, %v5314, %v5295
        %v5316 = vsel %vm4947, %v5315, %v5299
        %v5317 = vsel %vm5213, %v5316, %v5303
        %v5318 = vsel %vm5215, %v5317, %v5307
        %v5319 = vsel %vm5217, %v5318, %v5311
        %5320 = vst [vmem:[#allocation9 + $0x10] sm:$0xf] %v5319
        %5321 = vst.msk [vmem:[#allocation9 + $0x18] sm:$0xf] %vm5166, %v5284
        %v5322 = vld [vmem:[%s5227] sm:$0xf]
        %v5323 = vld [vmem:[%s5227 + $0x1] sm:$0xf]
        %v5324 = vld [vmem:[%s5227 + $0x2] sm:$0xf]
        %v5325 = vld [vmem:[%s5281] sm:$0xf]
        %v5326 = vld [vmem:[%s5281 + $0x1] sm:$0xf]
        %v5327 = vld [vmem:[%s5281 + $0x2] sm:$0xf]
        %s5328 = scalar_lea.vmem [#allocation8], 40
        %v5329 = vld [vmem:[%s5328] sm:$0xf]
        %v5330 = vld [vmem:[%s5328 + $0x1] sm:$0xf]
        %v5331 = vld [vmem:[%s5328 + $0x2] sm:$0xf]
        %5333 = vrot.lane.b32.xlu0 %v5323, 16
        %v5334 = vpop.permute.xlu0 %5333
        %5337 = vrot.lane.b32.xlu0 %v5324, 32
        %v5338 = vpop.permute.xlu0 %5337
        %5341 = vrot.lane.b32.xlu0 %v5325, 48
        %v5342 = vpop.permute.xlu0 %5341
        %5345 = vrot.lane.b32.xlu0 %v5326, 64
        %v5346 = vpop.permute.xlu0 %5345
        %5349 = vrot.lane.b32.xlu0 %v5327, 80
        %v5350 = vpop.permute.xlu0 %5349
        %5353 = vrot.lane.b32.xlu0 %v5329, 96
        %v5354 = vpop.permute.xlu0 %5353
        %5357 = vrot.lane.b32.xlu0 %v5330, 112
        %v5358 = vpop.permute.xlu0 %5357
        %v5360 = vsel %vm4894, %v5322, %v5334
        %v5361 = vsel %vm4911, %v5360, %v5338
        %v5362 = vsel %vm4929, %v5361, %v5342
        %v5363 = vsel %vm4947, %v5362, %v5346
        %v5364 = vsel %vm5213, %v5363, %v5350
        %v5365 = vsel %vm5215, %v5364, %v5354
        %v5366 = vsel %vm5217, %v5365, %v5358
        %v5369 = vrot.slane %v5366, 4
        %v5370 = vrot.slane %v5331, 4
        %5373 = vst [vmem:[#allocation9 + $0x10] sm:$0xf0] %v5369
        %5374 = vst.msk [vmem:[#allocation9 + $0x18] sm:$0xf0] %vm5273, %v5370
        %v5375 = vld [vmem:[#allocation9] sm:$0xff]
        %v5376 = vld [vmem:[#allocation9 + $0x8] sm:$0xff]
        %v5377 = vld [vmem:[#allocation9 + $0x10] sm:$0xff]
        %v5378 = vld [vmem:[#allocation9 + $0x18] sm:$0xff]
        %v5379 = vld [vmem:[%s7] sm:$0xff]
        %v5380 = vld [vmem:[%s7 + $0x8] sm:$0xff]
        %v5381 = vld [vmem:[%s7 + $0x10] sm:$0xff]
        %v5382 = vld [vmem:[%s7 + $0x18] sm:$0xff]
        %v5383 = vld [vmem:[%s7 + $0x20] sm:$0xff]
        %v5384 = vld [vmem:[%s7 + $0x28] sm:$0xff]
        %v5385 = vld [vmem:[%s7 + $0x30] sm:$0xff]
        %v5386 = vld [vmem:[%s7 + $0x38] sm:$0xff]
        %v5387 = vld [vmem:[%s7 + $0x40] sm:$0xff]
        %v5388 = vld [vmem:[%s7 + $0x48] sm:$0xff]
        %v5389 = vld [vmem:[%s7 + $0x50] sm:$0xff]
        %v5390 = vld [vmem:[%s7 + $0x58] sm:$0xff]
        %v5391 = vld [vmem:[%s7 + $0x60] sm:$0xff]
        %v5392 = vld [vmem:[%s7 + $0x68] sm:$0xff]
        %v5393 = vld [vmem:[%s7 + $0x70] sm:$0xff]
        %v5394 = vld [vmem:[%s7 + $0x78] sm:$0xff]
        %v5395 = vld [vmem:[%s7 + $0x80] sm:$0xff]
        %v5396 = vld [vmem:[%s7 + $0x88] sm:$0xff]
        %v5397 = vld [vmem:[%s8] sm:$0x1]
        %v5399 = vlaneseq
        %v5400 = vshrl.u32 %v5399, 7
        %v5401 = vsub.s32 0, %v5400
        %v5402 = vrot.slane %v5397, %v5401
        %v5405 = vsel %vm4894, %v5376, 0
        %v5408 = vsel %vm4894, %v5378, 0
        %5410 = vmatprep.subr.mxu0 0.0
        %5411 = vmatpush1.msra.mxu0 %v5379
        %5412 = vmatprep.subr.mxu0 0.0
        %5413 = vmatpush1.msra.mxu0 %v5380
        %5414 = vmatprep.subr.mxu0 0.0
        %5415 = vmatpush1.msra.mxu0 %v5381
        %5416 = vmatprep.subr.mxu0 0.0
        %5417 = vmatpush1.msra.mxu0 %v5382
        %5418 = vmatprep.subr.mxu0 0.0
        %5419 = vmatpush1.msra.mxu0 %v5383
        %5420 = vmatprep.subr.mxu0 0.0
        %5421 = vmatpush1.msra.mxu0 %v5384
        %5422 = vmatprep.subr.mxu0 0.0
        %5423 = vmatpush1.msra.mxu0 %v5385
        %5424 = vmatprep.subr.mxu0 0.0
        %5425 = vmatpush1.msra.mxu0 %v5386
        %5426 = vmatprep.subr.mxu0 0.0
        %5427 = vmatpush1.msra.mxu0 %v5387
        %5428 = vmatprep.subr.mxu0 0.0
        %5429 = vmatpush1.msra.mxu0 %v5388
        %5430 = vmatprep.subr.mxu0 0.0
        %5431 = vmatpush1.msra.mxu0 %v5389
        %5432 = vmatprep.subr.mxu0 0.0
        %5433 = vmatpush1.msra.mxu0 %v5390
        %5434 = vmatprep.subr.mxu0 0.0
        %5435 = vmatpush1.msra.mxu0 %v5391
        %5436 = vmatprep.subr.mxu0 0.0
        %5437 = vmatpush1.msra.mxu0 %v5392
        %5438 = vmatprep.subr.mxu0 0.0
        %5439 = vmatpush1.msra.mxu0 %v5393
        %5440 = vmatprep.subr.mxu0 0.0
        %5441 = vmatpush1.msra.mxu0 %v5394
        %5442 = vmatprep.subr.mxu0 0.0
        %5443 = vmatpush1.msra.mxu0 %v5395
        %5444 = vmatprep.subr.mxu0 0.0
        %5445 = vmatpush1.msra.mxu0 %v5396
        %5446 = vmatprep.subr.mxu0 0.0
        %5447 = vmatpush1.msra.mxu0 0.0
        %5448 = vmatprep.subr.mxu0 0.0
        %5449 = vmatpush1.msra.mxu0 0.0
        %5450 = vmatprep.subr.mxu0 0.0
        %5451 = vmatpush1.msra.mxu0 0.0
        %5452 = vmatprep.subr.mxu0 0.0
        %5453 = vmatpush1.msra.mxu0 0.0
        %5454 = vmatprep.subr.mxu0 0.0
        %5455 = vmatpush1.msra.mxu0 0.0
        %5456 = vmatprep.subr.mxu0 0.0
        %5457 = vmatpush1.msra.mxu0 0.0
        %5458 = vmatprep.subr.mxu0 0.0
        %5459 = vmatpush1.msra.mxu0 0.0
        %5460 = vmatprep.subr.mxu0 0.0
        %5461 = vmatpush1.msra.mxu0 0.0
        %5462 = vmatprep.subr.mxu0 0.0
        %5463 = vmatpush1.msra.mxu0 0.0
        %5464 = vmatprep.subr.mxu0 0.0
        %5465 = vmatpush1.msra.mxu0 0.0
        %5466 = vmatprep.subr.mxu0 0.0
        %5467 = vmatpush1.msra.mxu0 0.0
        %5468 = vmatprep.subr.mxu0 0.0
        %5469 = vmatpush1.msra.mxu0 0.0
        %5470 = vmatprep.subr.mxu0 0.0
        %5471 = vmatpush1.msra.mxu0 0.0
        %5472 = vmatprep.subr.mxu0 0.0
        %5473 = vmatpush1.msra.mxu0 0.0
        %5474 = vmatprep.mubr.f32.mxu0 %v5405
        %5475 = vmatmul.mubr.f32.gmra.mrb[0].mxu0 %v5375
        %v5476 = vpop.f32.mrb[0].mxu0
        %v5477 = vadd.f32 %v5402, %v5476
        %v5478 = vpop.f32.mrb[0].mxu0
        %5479 = vmatprep.mubr.f32.mxu0 %v5408
        %5480 = vmatmul.mubr.f32.gmra.mrb[0].mxu0 %v5377
        %v5481 = vpop.f32.mrb[0].mxu0
        %v5482 = vadd.f32 %v5402, %v5481
        %v5483 = vpop.f32.mrb[0].mxu0
        %5484 = vdwg.mxu0
        %v5485 = vmax.f32 %v5477, 0.0
        %v5486 = vmax.f32 %v5482, 0.0
        %v5487 = vld [vmem:[%s9] sm:$0xff]
        %v5488 = vld [vmem:[%s9 + $0x8] sm:$0xff]
        %v5489 = vmul.f32 %v5485, %v5487
        %v5490 = vmul.f32 %v5486, %v5488
        %v5491 = vsel %vm4911, %v5489, 0.0
        %v5492 = vsel %vm4911, %v5490, 0.0
        %v5493 = vadd.f32 %v5491, %v5492
        %v5494 = vrot.slane %v5493, 4
        %v5495 = vadd.f32 %v5493, %v5494
        %v5496 = vrot.slane %v5495, 2
        %v5497 = vadd.f32 %v5495, %v5496
        %v5498 = vrot.slane %v5497, 1
        %v5499 = vadd.f32 %v5497, %v5498
        %v5500 = vld [vmem:[%s10] sm:$0xff]
        %v5501 = vld [vmem:[%s10 + $0x8] sm:$0xff]
        %v5502 = vmul.f32 %v5485, %v5500
        %v5503 = vmul.f32 %v5486, %v5501
        %v5504 = vsel %vm4911, %v5502, 0.0
        %v5505 = vsel %vm4911, %v5503, 0.0
        %v5506 = vadd.f32 %v5504, %v5505
        %v5507 = vrot.slane %v5506, 4
        %v5508 = vadd.f32 %v5506, %v5507
        %v5509 = vrot.slane %v5508, 2
        %v5510 = vadd.f32 %v5508, %v5509
        %v5511 = vrot.slane %v5510, 1
        %v5512 = vadd.f32 %v5510, %v5511
        %v5513 = vsel %vm4911, %v5499, 0.0
        %5514 = vadd.xlane.f32.xlu0 %v5513
        %v5515 = vpop.xlane.xlu0 %5514
        %v5516 = vsel %vm4911, %v5512, 0.0
        %5517 = vadd.xlane.f32.xlu0 %v5516
        %v5518 = vpop.xlane.xlu0 %5517
        %vm5519 = vcmask 7168
        %v5520 = vsel %vm5519, %v5515, %v5518
        %v5521 = vld [vmem:[%s11] sm:$0x1]
        %v5522 = vadd.f32 %v5520, %v5521
        %vm5523 = vcmask 8192
        %5524 = vst.msk [vmem:[%s405] sm:$0x1] %vm5523, %v5522
        %s5525 = sand.u32 %s291, 1
        %s5526 = scalar_lea.sflag [#allocation11], %s5525
        %s5527 = sand.u32 %s291, 1
        %s5528 = scalar_lea.vmem [#allocation10], %s5527
        // Predicated region
        $region69: #{_lambda_.1} parent=67 // pred_check
          %p5529 = pneg %p301
        $region70: #{_lambda_.1} parent=67 // pred_check_branch
          %5531 = sbr.rel (%p5529) target = $region72
        $region71: #{_lambda_.1} parent=67 // pred_region
          %s5533 = ssub.s32 16, 16
          %5534 = vsyncadd %s5526, %s5533
          %s5535 = smul.addr %s26, 16
          %s5536 = scalar_lea.hbm %s12, %s5535
          %s5538 = sshll.u32 %s5528, 4
          %s5539 = int_to_ptr.vmem [resolvable:$true] %s5538
          %5541 = dma.vmem_to_hbm [thread:$0]  %s5539, 16, %s5536, %s5526
        $region72: #{_lambda_.1} parent=67 // pred_fallthru
          _
      $region68: #{_lambda_.1} parent=5 // pred_fallthru
        _
      %p5542 = scmp.le.s32.totalorder 2, %s21
      // Predicated region
      $region73: #{_lambda_.1} parent=5 // pred_check
        %p5543 = pneg %p5542
      $region74: #{_lambda_.1} parent=5 // pred_check_branch
        %5545 = sbr.rel (%p5543) target = $region76
      $region75: #{_lambda_.1} parent=5 // pred_region
        %s5546 = ssub.s32 %s21, 2
        // Predicated region
        $region77: #{_lambda_.1} parent=75 // pred_check
          %p5547 = pneg %p307
        $region78: #{_lambda_.1} parent=75 // pred_check_branch
          %5549 = sbr.rel (%p5547) target = $region80
        $region79: #{_lambda_.1} parent=75 // pred_region
          %s5550 = sand.u32 %s292, 1
          %s5551 = scalar_lea.sflag [#allocation11], %s5550
          %s5552 = sand.u32 %s292, 1
          %s5553 = scalar_lea.vmem [#allocation10], %s5552
          %5554 = dma.done %s5551, 16
        $region80: #{_lambda_.1} parent=75 // pred_fallthru
          _
      $region76: #{_lambda_.1} parent=5 // pred_fallthru
        _
    $region6: #{_lambda_.1} parent=1 // loop_footer
      %s25 = sadd.s32 1, %s21
    $region7: #{_lambda_.1} parent=1 // loop_footer_branch
      %20 = sbr.rel target = $region3
    $region8: #{_lambda_.1} parent=1 // loop_exit
      _
    %5555 = vsyncpa [#allocation11], 1
    %s5556 = scalar_lea.sflag [#allocation11], 1
    %5557 = vsyncpa %s5556, 1

</llo_original>
